<compile_context>
chip_gen: v6e
topology: v6e:2x2x1
jax: 0.10.0
libtpu: 0.0.40
codegen_flags: <defaults>
</compile_context>

<pallas_src>
import jax
import jax.numpy as jnp
from jax.experimental import pallas as pl
from jax.experimental.pallas import tpu as pltpu


# ----------------------------------------------------------------------------
# Fused SpliceAI kernel (whole forward pass, gridded over batch)
# ----------------------------------------------------------------------------
def _skip_connection(i, n_layers):
    return ((i + 1) % 4 == 0) or ((i + 1) == n_layers)


def _build_fused_kernel(widths, ars, skip_flags, S, L, cl, pad_off):
    n = len(widths)
    pads = [ars[i] * (widths[i] - 1) // 2 for i in range(n)]

    def kernel(*refs):
        o_ref = refs[-2]
        scratch = refs[-1]                       # (S + 2*pad_off, L) f32 VMEM
        it = iter(refs[:-2])
        x_ref = next(it)
        c1w, c1b, c2w, c2b = next(it), next(it), next(it), next(it)
        res = [tuple(next(it) for _ in range(8)) for _ in range(n)]
        skips = [(next(it), next(it)) if skip_flags[i] else None
                 for i in range(n)]
        ow, ob = next(it), next(it)

        def pw(act_f32, w_ref, b_ref):
            # 1x1 conv: bf16 operands, f32 accumulation, bias added in f32.
            return (
                jnp.dot(act_f32.astype(jnp.bfloat16), w_ref[...],
                        preferred_element_type=jnp.float32)
                + b_ref[...]
            )

        # ---- fused entry 1x1 convs (conv1 then conv2 on the same block) ----
        conv = pw(x_ref[0], c1w, c1b)            # (S, L) f32
        skip = pw(conv, c2w, c2b)                # (S, L) f32

        # Zero only the two halo strips of the padded scratch, once per grid
        # step; the interior is always overwritten by every dilated conv.
        strip = jnp.zeros((pad_off, L), jnp.float32)
        scratch[pl.ds(0, pad_off), :] = strip
        scratch[pl.ds(pad_off + S, pad_off), :] = strip

        def dilated_conv(act_f32, w_ref, b_ref, width, ar, pad):
            # "same"-padded dilated conv as a single im2col matmul.
            scratch[pl.ds(pad_off, S), :] = act_f32        # sublane-aligned
            cols = [scratch[pl.ds(pad_off - pad + k * ar, S), :]
                    for k in range(width)]
            col = jnp.concatenate(cols, axis=-1)           # (S, width*L)
            return (
                jnp.dot(col.astype(jnp.bfloat16), w_ref[...],
                        preferred_element_type=jnp.float32)
                + b_ref[...]
            )

        for i in range(n):
            s1, t1, w1, b1, s2, t2, w2, b2 = res[i]
            a1 = jnp.maximum(conv * s1[...] + t1[...], 0.0)    # BN1 + ReLU
            c1 = dilated_conv(a1, w1, b1, widths[i], ars[i], pads[i])
            a2 = jnp.maximum(c1 * s2[...] + t2[...], 0.0)      # BN2 + ReLU
            c2 = dilated_conv(a2, w2, b2, widths[i], ars[i], pads[i])
            conv = conv + c2                                   # residual add
            if skip_flags[i]:
                skw, skb = skips[i]
                skip = skip + pw(conv, skw, skb)

        # crop the seq axis (== skip[:, :, cl//2:-cl//2] in torch NCW layout)
        # then the final 1x1 conv to 3 output channels.
        skip_c = skip[cl // 2: S - cl // 2, :]
        o_ref[0] = pw(skip_c, ow, ob).astype(o_ref.dtype)

    return kernel


def spliceai_forward(x, params, widths, ars):
    """x: (N, S, starting_channels) -> (N, S - cl, 3)."""
    n = len(widths)
    assert len(ars) == n
    # even widths would silently shift the receptive field with "same" padding
    assert all(w % 2 == 1 for w in widths)
    N, S, Cin = x.shape
    L = params["conv1_w"].shape[1]
    cl = 2 * int(sum(ars[i] * (widths[i] - 1) for i in range(n)))
    assert 0 < cl < S
    pads = [ars[i] * (widths[i] - 1) // 2 for i in range(n)]
    pad_off = max(8, -(-max(pads) // 8) * 8)     # halo offset, sublane aligned
    S_out = S - cl
    skip_flags = [_skip_connection(i, n) for i in range(n)]

    def full_spec(arr):
        nd = len(arr.shape)
        return pl.BlockSpec(arr.shape, lambda b: (0,) * nd)

    flat_args = [x]
    in_specs = [pl.BlockSpec((1, S, Cin), lambda b: (b, 0, 0))]

    def add(arr):
        flat_args.append(arr)
        in_specs.append(full_spec(arr))

    add(params["conv1_w"]); add(params["conv1_b"])
    add(params["conv2_w"]); add(params["conv2_b"])
    for i in range(n):
        p = params["res"][i]
        for name in ("scale1", "shift1", "w1", "b1",
                     "scale2", "shift2", "w2", "b2"):
            add(p[name])
    for i in range(n):
        if skip_flags[i]:
            add(params["skip_w"][i]); add(params["skip_b"][i])
    add(params["out_w"]); add(params["out_b"])

    kernel = _build_fused_kernel(tuple(widths), tuple(ars), tuple(skip_flags),
                                 S, L, cl, pad_off)

    return pl.pallas_call(
        kernel,
        out_shape=jax.ShapeDtypeStruct((N, S_out, 3), jnp.float32),
        grid=(N,),
        in_specs=in_specs,
        out_specs=pl.BlockSpec((1, S_out, 3), lambda b: (b, 0, 0)),
        scratch_shapes=[pltpu.VMEM((S + 2 * pad_off, L), jnp.float32)],
        compiler_params=pltpu.CompilerParams(
            dimension_semantics=("parallel",)),
    )(*flat_args)


# ----------------------------------------------------------------------------
# Parameter init (random weights; eval-mode BN folded to scale/shift)
# ----------------------------------------------------------------------------
def init_spliceai_params(key, l, widths, ars, starting_channels=4, eps=1e-5):
    keys = iter(jax.random.split(key, 512))

    def conv_pw(cin, cout):
        # torch Conv1d weight (Cout, Cin, 1) stored transposed as (Cin, Cout),
        # bf16 so it feeds the MXU at native rate; bias kept f32.
        wt = (0.1 * jax.random.normal(next(keys), (cin, cout), jnp.float32)
              ).astype(jnp.bfloat16)
        b = 0.1 * jax.random.normal(next(keys), (1, cout), jnp.float32)
        return wt, b

    def bn(c):
        gamma = 1.0 + 0.1 * jax.random.normal(next(keys), (1, c), jnp.float32)
        beta = 0.1 * jax.random.normal(next(keys), (1, c), jnp.float32)
        mean = 0.1 * jax.random.normal(next(keys), (1, c), jnp.float32)
        var = jnp.abs(jax.random.normal(next(keys), (1, c), jnp.float32)) + 0.5
        scale = gamma / jnp.sqrt(var + eps)
        shift = beta - mean * scale
        return scale, shift

    def conv_dilated(cin, cout, width):
        # torch dilated Conv1d weight (Cout, Cin, K) pre-folded, tap-major,
        # to (K*Cin, Cout) so the in-kernel im2col is a single matmul.
        w = (0.1 / width) * jax.random.normal(
            next(keys), (width, cin, cout), jnp.float32)
        w_fold = w.reshape(width * cin, cout).astype(jnp.bfloat16)
        b = 0.1 * jax.random.normal(next(keys), (1, cout), jnp.float32)
        return w_fold, b

    n = len(widths)
    params = {}
    params["conv1_w"], params["conv1_b"] = conv_pw(starting_channels, l)
    params["conv2_w"], params["conv2_b"] = conv_pw(l, l)
    params["res"], params["skip_w"], params["skip_b"] = [], [], []
    for i in range(n):
        s1, t1 = bn(l)
        s2, t2 = bn(l)
        w1, b1 = conv_dilated(l, l, widths[i])
        w2, b2 = conv_dilated(l, l, widths[i])
        params["res"].append(dict(scale1=s1, shift1=t1, w1=w1, b1=b1,
                                  scale2=s2, shift2=t2, w2=w2, b2=b2))
        if _skip_connection(i, n):
            sw, sb = conv_pw(l, l)
        else:
            sw, sb = None, None
        params["skip_w"].append(sw)
        params["skip_b"].append(sb)
    params["out_w"], params["out_b"] = conv_pw(l, 3)
    return params


# ----------------------------------------------------------------------------
# Pure-JAX reference (mirrors the kernel's bf16 rounding points exactly)
# ----------------------------------------------------------------------------
def spliceai_reference(x, params, widths, ars):
    n = len(widths)
    cl = 2 * int(sum(ars[i] * (widths[i] - 1) for i in range(n)))

    def pw(h, w, b):
        return jnp.dot(h.astype(jnp.bfloat16), w,
                       preferred_element_type=jnp.float32) + b

    def dilated(h, w_fold, b, width, ar):
        pad = ar * (width - 1) // 2
        S = h.shape[0]
        hp = jnp.pad(h, ((pad, pad), (0, 0)))
        col = jnp.concatenate([hp[k * ar: k * ar + S] for k in range(width)],
                              axis=-1)
        return jnp.dot(col.astype(jnp.bfloat16), w_fold,
                       preferred_element_type=jnp.float32) + b

    outs = []
    for bidx in range(x.shape[0]):
        conv = pw(x[bidx], params["conv1_w"], params["conv1_b"])
        skip = pw(conv, params["conv2_w"], params["conv2_b"])
        for i in range(n):
            p = params["res"][i]
            a1 = jnp.maximum(conv * p["scale1"] + p["shift1"], 0.0)
            c1 = dilated(a1, p["w1"], p["b1"], widths[i], ars[i])
            a2 = jnp.maximum(c1 * p["scale2"] + p["shift2"], 0.0)
            c2 = dilated(a2, p["w2"], p["b2"], widths[i], ars[i])
            conv = conv + c2
            if _skip_connection(i, n):
                skip = skip + pw(conv, params["skip_w"][i], params["skip_b"][i])
        skip = skip[cl // 2: skip.shape[0] - cl // 2, :]
        outs.append(pw(skip, params["out_w"], params["out_b"]))
    return jnp.stack(outs, axis=0)


# ----------------------------------------------------------------------------
if __name__ == "__main__":
    key = jax.random.PRNGKey(0)
    k_x, k_p = jax.random.split(key)

    # Small config: l=32 channels, 4 residual units (w=3, dilations 1,1,2,2)
    L_CH = 32
    WIDTHS = [3, 3, 3, 3]
    ARS = [1, 1, 2, 2]
    START_CH = 4
    N, S = 2, 48  # cl = 2*(2+2+4+4) = 24 -> output seq length 24

    x = jax.random.normal(k_x, (N, S, START_CH), jnp.float32)
    params = init_spliceai_params(k_p, L_CH, WIDTHS, ARS, START_CH)

    y = spliceai_forward(x, params, WIDTHS, ARS)
    y = jax.block_until_ready(y)

    expected_len = S - 2 * sum(a * (w - 1) for w, a in zip(WIDTHS, ARS))
    assert y.shape == (N, expected_len, 3), y.shape
    assert bool(jnp.all(jnp.isfinite(y)))

    y_ref = jax.block_until_ready(spliceai_reference(x, params, WIDTHS, ARS))
    err = float(jnp.max(jnp.abs(y - y_ref)))
    assert err < 5e-3, f"max |kernel - reference| = {err}"
    print("KERNEL_OK")
</pallas_src>

<mosaic_0001>
module attributes {stable_mosaic.version = 11 : i64} {
  func.func @kernel(%arg0: i32, %arg1: memref<1x48x4xf32, #tpu.memory_space<vmem>>, %arg2: memref<4x32xbf16, #tpu.memory_space<vmem>>, %arg3: memref<1x32xf32, #tpu.memory_space<vmem>>, %arg4: memref<32x32xbf16, #tpu.memory_space<vmem>>, %arg5: memref<1x32xf32, #tpu.memory_space<vmem>>, %arg6: memref<1x32xf32, #tpu.memory_space<vmem>>, %arg7: memref<1x32xf32, #tpu.memory_space<vmem>>, %arg8: memref<96x32xbf16, #tpu.memory_space<vmem>>, %arg9: memref<1x32xf32, #tpu.memory_space<vmem>>, %arg10: memref<1x32xf32, #tpu.memory_space<vmem>>, %arg11: memref<1x32xf32, #tpu.memory_space<vmem>>, %arg12: memref<96x32xbf16, #tpu.memory_space<vmem>>, %arg13: memref<1x32xf32, #tpu.memory_space<vmem>>, %arg14: memref<1x32xf32, #tpu.memory_space<vmem>>, %arg15: memref<1x32xf32, #tpu.memory_space<vmem>>, %arg16: memref<96x32xbf16, #tpu.memory_space<vmem>>, %arg17: memref<1x32xf32, #tpu.memory_space<vmem>>, %arg18: memref<1x32xf32, #tpu.memory_space<vmem>>, %arg19: memref<1x32xf32, #tpu.memory_space<vmem>>, %arg20: memref<96x32xbf16, #tpu.memory_space<vmem>>, %arg21: memref<1x32xf32, #tpu.memory_space<vmem>>, %arg22: memref<1x32xf32, #tpu.memory_space<vmem>>, %arg23: memref<1x32xf32, #tpu.memory_space<vmem>>, %arg24: memref<96x32xbf16, #tpu.memory_space<vmem>>, %arg25: memref<1x32xf32, #tpu.memory_space<vmem>>, %arg26: memref<1x32xf32, #tpu.memory_space<vmem>>, %arg27: memref<1x32xf32, #tpu.memory_space<vmem>>, %arg28: memref<96x32xbf16, #tpu.memory_space<vmem>>, %arg29: memref<1x32xf32, #tpu.memory_space<vmem>>, %arg30: memref<1x32xf32, #tpu.memory_space<vmem>>, %arg31: memref<1x32xf32, #tpu.memory_space<vmem>>, %arg32: memref<96x32xbf16, #tpu.memory_space<vmem>>, %arg33: memref<1x32xf32, #tpu.memory_space<vmem>>, %arg34: memref<1x32xf32, #tpu.memory_space<vmem>>, %arg35: memref<1x32xf32, #tpu.memory_space<vmem>>, %arg36: memref<96x32xbf16, #tpu.memory_space<vmem>>, %arg37: memref<1x32xf32, #tpu.memory_space<vmem>>, %arg38: memref<32x32xbf16, #tpu.memory_space<vmem>>, %arg39: memref<1x32xf32, #tpu.memory_space<vmem>>, %arg40: memref<32x3xbf16, #tpu.memory_space<vmem>>, %arg41: memref<1x3xf32, #tpu.memory_space<vmem>>, %arg42: memref<1x24x3xf32, #tpu.memory_space<vmem>>, %arg43: memref<64x32xf32, #tpu.memory_space<vmem>>) attributes {dimension_semantics = [#tpu.dimension_semantics<parallel>], iteration_bounds = array<i64: 2>, scalar_prefetch = 0 : i64, scratch_operands = 1 : i64, tpu.core_type = #tpu.core_type<tc>, window_params = [{transform_indices = @transform_0, window_bounds = array<i64: 1, 48, 4>}, {pipeline_mode = #tpu.pipeline_mode<synchronous>, transform_indices = @transform_1, window_bounds = array<i64: 4, 32>}, {pipeline_mode = #tpu.pipeline_mode<synchronous>, transform_indices = @transform_2, window_bounds = array<i64: 1, 32>}, {pipeline_mode = #tpu.pipeline_mode<synchronous>, transform_indices = @transform_3, window_bounds = array<i64: 32, 32>}, {pipeline_mode = #tpu.pipeline_mode<synchronous>, transform_indices = @transform_4, window_bounds = array<i64: 1, 32>}, {pipeline_mode = #tpu.pipeline_mode<synchronous>, transform_indices = @transform_5, window_bounds = array<i64: 1, 32>}, {pipeline_mode = #tpu.pipeline_mode<synchronous>, transform_indices = @transform_6, window_bounds = array<i64: 1, 32>}, {pipeline_mode = #tpu.pipeline_mode<synchronous>, transform_indices = @transform_7, window_bounds = array<i64: 96, 32>}, {pipeline_mode = #tpu.pipeline_mode<synchronous>, transform_indices = @transform_8, window_bounds = array<i64: 1, 32>}, {pipeline_mode = #tpu.pipeline_mode<synchronous>, transform_indices = @transform_9, window_bounds = array<i64: 1, 32>}, {pipeline_mode = #tpu.pipeline_mode<synchronous>, transform_indices = @transform_10, window_bounds = array<i64: 1, 32>}, {pipeline_mode = #tpu.pipeline_mode<synchronous>, transform_indices = @transform_11, window_bounds = array<i64: 96, 32>}, {pipeline_mode = #tpu.pipeline_mode<synchronous>, transform_indices = @transform_12, window_bounds = array<i64: 1, 32>}, {pipeline_mode = #tpu.pipeline_mode<synchronous>, transform_indices = @transform_13, window_bounds = array<i64: 1, 32>}, {pipeline_mode = #tpu.pipeline_mode<synchronous>, transform_indices = @transform_14, window_bounds = array<i64: 1, 32>}, {pipeline_mode = #tpu.pipeline_mode<synchronous>, transform_indices = @transform_15, window_bounds = array<i64: 96, 32>}, {pipeline_mode = #tpu.pipeline_mode<synchronous>, transform_indices = @transform_16, window_bounds = array<i64: 1, 32>}, {pipeline_mode = #tpu.pipeline_mode<synchronous>, transform_indices = @transform_17, window_bounds = array<i64: 1, 32>}, {pipeline_mode = #tpu.pipeline_mode<synchronous>, transform_indices = @transform_18, window_bounds = array<i64: 1, 32>}, {pipeline_mode = #tpu.pipeline_mode<synchronous>, transform_indices = @transform_19, window_bounds = array<i64: 96, 32>}, {pipeline_mode = #tpu.pipeline_mode<synchronous>, transform_indices = @transform_20, window_bounds = array<i64: 1, 32>}, {pipeline_mode = #tpu.pipeline_mode<synchronous>, transform_indices = @transform_21, window_bounds = array<i64: 1, 32>}, {pipeline_mode = #tpu.pipeline_mode<synchronous>, transform_indices = @transform_22, window_bounds = array<i64: 1, 32>}, {pipeline_mode = #tpu.pipeline_mode<synchronous>, transform_indices = @transform_23, window_bounds = array<i64: 96, 32>}, {pipeline_mode = #tpu.pipeline_mode<synchronous>, transform_indices = @transform_24, window_bounds = array<i64: 1, 32>}, {pipeline_mode = #tpu.pipeline_mode<synchronous>, transform_indices = @transform_25, window_bounds = array<i64: 1, 32>}, {pipeline_mode = #tpu.pipeline_mode<synchronous>, transform_indices = @transform_26, window_bounds = array<i64: 1, 32>}, {pipeline_mode = #tpu.pipeline_mode<synchronous>, transform_indices = @transform_27, window_bounds = array<i64: 96, 32>}, {pipeline_mode = #tpu.pipeline_mode<synchronous>, transform_indices = @transform_28, window_bounds = array<i64: 1, 32>}, {pipeline_mode = #tpu.pipeline_mode<synchronous>, transform_indices = @transform_29, window_bounds = array<i64: 1, 32>}, {pipeline_mode = #tpu.pipeline_mode<synchronous>, transform_indices = @transform_30, window_bounds = array<i64: 1, 32>}, {pipeline_mode = #tpu.pipeline_mode<synchronous>, transform_indices = @transform_31, window_bounds = array<i64: 96, 32>}, {pipeline_mode = #tpu.pipeline_mode<synchronous>, transform_indices = @transform_32, window_bounds = array<i64: 1, 32>}, {pipeline_mode = #tpu.pipeline_mode<synchronous>, transform_indices = @transform_33, window_bounds = array<i64: 1, 32>}, {pipeline_mode = #tpu.pipeline_mode<synchronous>, transform_indices = @transform_34, window_bounds = array<i64: 1, 32>}, {pipeline_mode = #tpu.pipeline_mode<synchronous>, transform_indices = @transform_35, window_bounds = array<i64: 96, 32>}, {pipeline_mode = #tpu.pipeline_mode<synchronous>, transform_indices = @transform_36, window_bounds = array<i64: 1, 32>}, {pipeline_mode = #tpu.pipeline_mode<synchronous>, transform_indices = @transform_37, window_bounds = array<i64: 32, 32>}, {pipeline_mode = #tpu.pipeline_mode<synchronous>, transform_indices = @transform_38, window_bounds = array<i64: 1, 32>}, {pipeline_mode = #tpu.pipeline_mode<synchronous>, transform_indices = @transform_39, window_bounds = array<i64: 32, 3>}, {pipeline_mode = #tpu.pipeline_mode<synchronous>, transform_indices = @transform_40, window_bounds = array<i64: 1, 3>}, {transform_indices = @transform_41, window_bounds = array<i64: 1, 24, 3>}]} {
    %c0 = arith.constant 0 : index
    %c0_0 = arith.constant 0 : index
    %c0_1 = arith.constant 0 : index
    %0 = vector.load %arg1[%c0, %c0_0, %c0_1] : memref<1x48x4xf32, #tpu.memory_space<vmem>>, vector<1x48x4xf32>
    %1 = vector.shape_cast %0 : vector<1x48x4xf32> to vector<48x4xf32>
    %2 = arith.truncf %1 : vector<48x4xf32> to vector<48x4xbf16>
    %c0_2 = arith.constant 0 : index
    %c0_3 = arith.constant 0 : index
    %3 = vector.load %arg2[%c0_2, %c0_3] : memref<4x32xbf16, #tpu.memory_space<vmem>>, vector<4x32xbf16>
    %cst = arith.constant dense<0.000000e+00> : vector<48x32xf32>
    %4 = tpu.matmul %2, %3, %cst {dimension_numbers = #tpu.dot_dimension_numbers<[1], [0], [0], [1], [0, 0, 1, 1], [], []>} : vector<48x4xbf16>, vector<4x32xbf16>, vector<48x32xf32> -> vector<48x32xf32>
    %c0_4 = arith.constant 0 : index
    %c0_5 = arith.constant 0 : index
    %5 = vector.load %arg3[%c0_4, %c0_5] : memref<1x32xf32, #tpu.memory_space<vmem>>, vector<1x32xf32>
    %6 = vector.broadcast %5 : vector<1x32xf32> to vector<48x32xf32>
    %7 = arith.addf %4, %6 : vector<48x32xf32>
    %8 = arith.truncf %7 : vector<48x32xf32> to vector<48x32xbf16>
    %c0_6 = arith.constant 0 : index
    %c0_7 = arith.constant 0 : index
    %9 = vector.load %arg4[%c0_6, %c0_7] : memref<32x32xbf16, #tpu.memory_space<vmem>>, vector<32x32xbf16>
    %cst_8 = arith.constant dense<0.000000e+00> : vector<48x32xf32>
    %10 = tpu.matmul %8, %9, %cst_8 {dimension_numbers = #tpu.dot_dimension_numbers<[1], [0], [0], [1], [0, 0, 1, 1], [], []>} : vector<48x32xbf16>, vector<32x32xbf16>, vector<48x32xf32> -> vector<48x32xf32>
    %c0_9 = arith.constant 0 : index
    %c0_10 = arith.constant 0 : index
    %11 = vector.load %arg5[%c0_9, %c0_10] : memref<1x32xf32, #tpu.memory_space<vmem>>, vector<1x32xf32>
    %12 = vector.broadcast %11 : vector<1x32xf32> to vector<48x32xf32>
    %13 = arith.addf %10, %12 : vector<48x32xf32>
    %cst_11 = arith.constant 0.000000e+00 : f32
    %14 = vector.broadcast %cst_11 : f32 to vector<8x32xf32>
    %c0_12 = arith.constant 0 : index
    %c0_13 = arith.constant 0 : index
    %15 = vector.load %arg43[%c0_12, %c0_13] : memref<64x32xf32, #tpu.memory_space<vmem>>, vector<8x32xf32>
    tpu.vector_store %arg43[%c0_12, %c0_13], %14 {strides = array<i32>} : memref<64x32xf32, #tpu.memory_space<vmem>>, vector<8x32xf32>,
    %c56 = arith.constant 56 : index
    %c0_14 = arith.constant 0 : index
    %16 = vector.load %arg43[%c56, %c0_14] : memref<64x32xf32, #tpu.memory_space<vmem>>, vector<8x32xf32>
    tpu.vector_store %arg43[%c56, %c0_14], %14 {strides = array<i32>} : memref<64x32xf32, #tpu.memory_space<vmem>>, vector<8x32xf32>,
    %c0_15 = arith.constant 0 : index
    %c0_16 = arith.constant 0 : index
    %17 = vector.load %arg6[%c0_15, %c0_16] : memref<1x32xf32, #tpu.memory_space<vmem>>, vector<1x32xf32>
    %18 = vector.broadcast %17 : vector<1x32xf32> to vector<48x32xf32>
    %19 = arith.mulf %7, %18 : vector<48x32xf32>
    %c0_17 = arith.constant 0 : index
    %c0_18 = arith.constant 0 : index
    %20 = vector.load %arg7[%c0_17, %c0_18] : memref<1x32xf32, #tpu.memory_space<vmem>>, vector<1x32xf32>
    %21 = vector.broadcast %20 : vector<1x32xf32> to vector<48x32xf32>
    %22 = arith.addf %19, %21 : vector<48x32xf32>
    %cst_19 = arith.constant 0.000000e+00 : f32
    %23 = vector.broadcast %cst_19 : f32 to vector<48x32xf32>
    %24 = arith.maximumf %22, %23 : vector<48x32xf32>
    %c8 = arith.constant 8 : index
    %c0_20 = arith.constant 0 : index
    %25 = vector.load %arg43[%c8, %c0_20] : memref<64x32xf32, #tpu.memory_space<vmem>>, vector<48x32xf32>
    tpu.vector_store %arg43[%c8, %c0_20], %24 {strides = array<i32>} : memref<64x32xf32, #tpu.memory_space<vmem>>, vector<48x32xf32>,
    %c7 = arith.constant 7 : index
    %c0_21 = arith.constant 0 : index
    %26 = vector.load %arg43[%c7, %c0_21] : memref<64x32xf32, #tpu.memory_space<vmem>>, vector<48x32xf32>
    %c8_22 = arith.constant 8 : index
    %c0_23 = arith.constant 0 : index
    %27 = vector.load %arg43[%c8_22, %c0_23] : memref<64x32xf32, #tpu.memory_space<vmem>>, vector<48x32xf32>
    %c9 = arith.constant 9 : index
    %c0_24 = arith.constant 0 : index
    %28 = vector.load %arg43[%c9, %c0_24] : memref<64x32xf32, #tpu.memory_space<vmem>>, vector<48x32xf32>
    %29 = tpu.concatenate %26, %27, %28 in 1 : vector<48x32xf32>, vector<48x32xf32>, vector<48x32xf32> -> vector<48x96xf32>
    %30 = arith.truncf %29 : vector<48x96xf32> to vector<48x96xbf16>
    %c0_25 = arith.constant 0 : index
    %c0_26 = arith.constant 0 : index
    %31 = vector.load %arg8[%c0_25, %c0_26] : memref<96x32xbf16, #tpu.memory_space<vmem>>, vector<96x32xbf16>
    %cst_27 = arith.constant dense<0.000000e+00> : vector<48x32xf32>
    %32 = tpu.matmul %30, %31, %cst_27 {dimension_numbers = #tpu.dot_dimension_numbers<[1], [0], [0], [1], [0, 0, 1, 1], [], []>} : vector<48x96xbf16>, vector<96x32xbf16>, vector<48x32xf32> -> vector<48x32xf32>
    %c0_28 = arith.constant 0 : index
    %c0_29 = arith.constant 0 : index
    %33 = vector.load %arg9[%c0_28, %c0_29] : memref<1x32xf32, #tpu.memory_space<vmem>>, vector<1x32xf32>
    %34 = vector.broadcast %33 : vector<1x32xf32> to vector<48x32xf32>
    %35 = arith.addf %32, %34 : vector<48x32xf32>
    %c0_30 = arith.constant 0 : index
    %c0_31 = arith.constant 0 : index
    %36 = vector.load %arg10[%c0_30, %c0_31] : memref<1x32xf32, #tpu.memory_space<vmem>>, vector<1x32xf32>
    %37 = vector.broadcast %36 : vector<1x32xf32> to vector<48x32xf32>
    %38 = arith.mulf %35, %37 : vector<48x32xf32>
    %c0_32 = arith.constant 0 : index
    %c0_33 = arith.constant 0 : index
    %39 = vector.load %arg11[%c0_32, %c0_33] : memref<1x32xf32, #tpu.memory_space<vmem>>, vector<1x32xf32>
    %40 = vector.broadcast %39 : vector<1x32xf32> to vector<48x32xf32>
    %41 = arith.addf %38, %40 : vector<48x32xf32>
    %cst_34 = arith.constant 0.000000e+00 : f32
    %42 = vector.broadcast %cst_34 : f32 to vector<48x32xf32>
    %43 = arith.maximumf %41, %42 : vector<48x32xf32>
    %c8_35 = arith.constant 8 : index
    %c0_36 = arith.constant 0 : index
    %44 = vector.load %arg43[%c8_35, %c0_36] : memref<64x32xf32, #tpu.memory_space<vmem>>, vector<48x32xf32>
    tpu.vector_store %arg43[%c8_35, %c0_36], %43 {strides = array<i32>} : memref<64x32xf32, #tpu.memory_space<vmem>>, vector<48x32xf32>,
    %c7_37 = arith.constant 7 : index
    %c0_38 = arith.constant 0 : index
    %45 = vector.load %arg43[%c7_37, %c0_38] : memref<64x32xf32, #tpu.memory_space<vmem>>, vector<48x32xf32>
    %c8_39 = arith.constant 8 : index
    %c0_40 = arith.constant 0 : index
    %46 = vector.load %arg43[%c8_39, %c0_40] : memref<64x32xf32, #tpu.memory_space<vmem>>, vector<48x32xf32>
    %c9_41 = arith.constant 9 : index
    %c0_42 = arith.constant 0 : index
    %47 = vector.load %arg43[%c9_41, %c0_42] : memref<64x32xf32, #tpu.memory_space<vmem>>, vector<48x32xf32>
    %48 = tpu.concatenate %45, %46, %47 in 1 : vector<48x32xf32>, vector<48x32xf32>, vector<48x32xf32> -> vector<48x96xf32>
    %49 = arith.truncf %48 : vector<48x96xf32> to vector<48x96xbf16>
    %c0_43 = arith.constant 0 : index
    %c0_44 = arith.constant 0 : index
    %50 = vector.load %arg12[%c0_43, %c0_44] : memref<96x32xbf16, #tpu.memory_space<vmem>>, vector<96x32xbf16>
    %cst_45 = arith.constant dense<0.000000e+00> : vector<48x32xf32>
    %51 = tpu.matmul %49, %50, %cst_45 {dimension_numbers = #tpu.dot_dimension_numbers<[1], [0], [0], [1], [0, 0, 1, 1], [], []>} : vector<48x96xbf16>, vector<96x32xbf16>, vector<48x32xf32> -> vector<48x32xf32>
    %c0_46 = arith.constant 0 : index
    %c0_47 = arith.constant 0 : index
    %52 = vector.load %arg13[%c0_46, %c0_47] : memref<1x32xf32, #tpu.memory_space<vmem>>, vector<1x32xf32>
    %53 = vector.broadcast %52 : vector<1x32xf32> to vector<48x32xf32>
    %54 = arith.addf %51, %53 : vector<48x32xf32>
    %55 = arith.addf %7, %54 : vector<48x32xf32>
    %c0_48 = arith.constant 0 : index
    %c0_49 = arith.constant 0 : index
    %56 = vector.load %arg14[%c0_48, %c0_49] : memref<1x32xf32, #tpu.memory_space<vmem>>, vector<1x32xf32>
    %57 = vector.broadcast %56 : vector<1x32xf32> to vector<48x32xf32>
    %58 = arith.mulf %55, %57 : vector<48x32xf32>
    %c0_50 = arith.constant 0 : index
    %c0_51 = arith.constant 0 : index
    %59 = vector.load %arg15[%c0_50, %c0_51] : memref<1x32xf32, #tpu.memory_space<vmem>>, vector<1x32xf32>
    %60 = vector.broadcast %59 : vector<1x32xf32> to vector<48x32xf32>
    %61 = arith.addf %58, %60 : vector<48x32xf32>
    %cst_52 = arith.constant 0.000000e+00 : f32
    %62 = vector.broadcast %cst_52 : f32 to vector<48x32xf32>
    %63 = arith.maximumf %61, %62 : vector<48x32xf32>
    %c8_53 = arith.constant 8 : index
    %c0_54 = arith.constant 0 : index
    %64 = vector.load %arg43[%c8_53, %c0_54] : memref<64x32xf32, #tpu.memory_space<vmem>>, vector<48x32xf32>
    tpu.vector_store %arg43[%c8_53, %c0_54], %63 {strides = array<i32>} : memref<64x32xf32, #tpu.memory_space<vmem>>, vector<48x32xf32>,
    %c7_55 = arith.constant 7 : index
    %c0_56 = arith.constant 0 : index
    %65 = vector.load %arg43[%c7_55, %c0_56] : memref<64x32xf32, #tpu.memory_space<vmem>>, vector<48x32xf32>
    %c8_57 = arith.constant 8 : index
    %c0_58 = arith.constant 0 : index
    %66 = vector.load %arg43[%c8_57, %c0_58] : memref<64x32xf32, #tpu.memory_space<vmem>>, vector<48x32xf32>
    %c9_59 = arith.constant 9 : index
    %c0_60 = arith.constant 0 : index
    %67 = vector.load %arg43[%c9_59, %c0_60] : memref<64x32xf32, #tpu.memory_space<vmem>>, vector<48x32xf32>
    %68 = tpu.concatenate %65, %66, %67 in 1 : vector<48x32xf32>, vector<48x32xf32>, vector<48x32xf32> -> vector<48x96xf32>
    %69 = arith.truncf %68 : vector<48x96xf32> to vector<48x96xbf16>
    %c0_61 = arith.constant 0 : index
    %c0_62 = arith.constant 0 : index
    %70 = vector.load %arg16[%c0_61, %c0_62] : memref<96x32xbf16, #tpu.memory_space<vmem>>, vector<96x32xbf16>
    %cst_63 = arith.constant dense<0.000000e+00> : vector<48x32xf32>
    %71 = tpu.matmul %69, %70, %cst_63 {dimension_numbers = #tpu.dot_dimension_numbers<[1], [0], [0], [1], [0, 0, 1, 1], [], []>} : vector<48x96xbf16>, vector<96x32xbf16>, vector<48x32xf32> -> vector<48x32xf32>
    %c0_64 = arith.constant 0 : index
    %c0_65 = arith.constant 0 : index
    %72 = vector.load %arg17[%c0_64, %c0_65] : memref<1x32xf32, #tpu.memory_space<vmem>>, vector<1x32xf32>
    %73 = vector.broadcast %72 : vector<1x32xf32> to vector<48x32xf32>
    %74 = arith.addf %71, %73 : vector<48x32xf32>
    %c0_66 = arith.constant 0 : index
    %c0_67 = arith.constant 0 : index
    %75 = vector.load %arg18[%c0_66, %c0_67] : memref<1x32xf32, #tpu.memory_space<vmem>>, vector<1x32xf32>
    %76 = vector.broadcast %75 : vector<1x32xf32> to vector<48x32xf32>
    %77 = arith.mulf %74, %76 : vector<48x32xf32>
    %c0_68 = arith.constant 0 : index
    %c0_69 = arith.constant 0 : index
    %78 = vector.load %arg19[%c0_68, %c0_69] : memref<1x32xf32, #tpu.memory_space<vmem>>, vector<1x32xf32>
    %79 = vector.broadcast %78 : vector<1x32xf32> to vector<48x32xf32>
    %80 = arith.addf %77, %79 : vector<48x32xf32>
    %cst_70 = arith.constant 0.000000e+00 : f32
    %81 = vector.broadcast %cst_70 : f32 to vector<48x32xf32>
    %82 = arith.maximumf %80, %81 : vector<48x32xf32>
    %c8_71 = arith.constant 8 : index
    %c0_72 = arith.constant 0 : index
    %83 = vector.load %arg43[%c8_71, %c0_72] : memref<64x32xf32, #tpu.memory_space<vmem>>, vector<48x32xf32>
    tpu.vector_store %arg43[%c8_71, %c0_72], %82 {strides = array<i32>} : memref<64x32xf32, #tpu.memory_space<vmem>>, vector<48x32xf32>,
    %c7_73 = arith.constant 7 : index
    %c0_74 = arith.constant 0 : index
    %84 = vector.load %arg43[%c7_73, %c0_74] : memref<64x32xf32, #tpu.memory_space<vmem>>, vector<48x32xf32>
    %c8_75 = arith.constant 8 : index
    %c0_76 = arith.constant 0 : index
    %85 = vector.load %arg43[%c8_75, %c0_76] : memref<64x32xf32, #tpu.memory_space<vmem>>, vector<48x32xf32>
    %c9_77 = arith.constant 9 : index
    %c0_78 = arith.constant 0 : index
    %86 = vector.load %arg43[%c9_77, %c0_78] : memref<64x32xf32, #tpu.memory_space<vmem>>, vector<48x32xf32>
    %87 = tpu.concatenate %84, %85, %86 in 1 : vector<48x32xf32>, vector<48x32xf32>, vector<48x32xf32> -> vector<48x96xf32>
    %88 = arith.truncf %87 : vector<48x96xf32> to vector<48x96xbf16>
    %c0_79 = arith.constant 0 : index
    %c0_80 = arith.constant 0 : index
    %89 = vector.load %arg20[%c0_79, %c0_80] : memref<96x32xbf16, #tpu.memory_space<vmem>>, vector<96x32xbf16>
    %cst_81 = arith.constant dense<0.000000e+00> : vector<48x32xf32>
    %90 = tpu.matmul %88, %89, %cst_81 {dimension_numbers = #tpu.dot_dimension_numbers<[1], [0], [0], [1], [0, 0, 1, 1], [], []>} : vector<48x96xbf16>, vector<96x32xbf16>, vector<48x32xf32> -> vector<48x32xf32>
    %c0_82 = arith.constant 0 : index
    %c0_83 = arith.constant 0 : index
    %91 = vector.load %arg21[%c0_82, %c0_83] : memref<1x32xf32, #tpu.memory_space<vmem>>, vector<1x32xf32>
    %92 = vector.broadcast %91 : vector<1x32xf32> to vector<48x32xf32>
    %93 = arith.addf %90, %92 : vector<48x32xf32>
    %94 = arith.addf %55, %93 : vector<48x32xf32>
    %c0_84 = arith.constant 0 : index
    %c0_85 = arith.constant 0 : index
    %95 = vector.load %arg22[%c0_84, %c0_85] : memref<1x32xf32, #tpu.memory_space<vmem>>, vector<1x32xf32>
    %96 = vector.broadcast %95 : vector<1x32xf32> to vector<48x32xf32>
    %97 = arith.mulf %94, %96 : vector<48x32xf32>
    %c0_86 = arith.constant 0 : index
    %c0_87 = arith.constant 0 : index
    %98 = vector.load %arg23[%c0_86, %c0_87] : memref<1x32xf32, #tpu.memory_space<vmem>>, vector<1x32xf32>
    %99 = vector.broadcast %98 : vector<1x32xf32> to vector<48x32xf32>
    %100 = arith.addf %97, %99 : vector<48x32xf32>
    %cst_88 = arith.constant 0.000000e+00 : f32
    %101 = vector.broadcast %cst_88 : f32 to vector<48x32xf32>
    %102 = arith.maximumf %100, %101 : vector<48x32xf32>
    %c8_89 = arith.constant 8 : index
    %c0_90 = arith.constant 0 : index
    %103 = vector.load %arg43[%c8_89, %c0_90] : memref<64x32xf32, #tpu.memory_space<vmem>>, vector<48x32xf32>
    tpu.vector_store %arg43[%c8_89, %c0_90], %102 {strides = array<i32>} : memref<64x32xf32, #tpu.memory_space<vmem>>, vector<48x32xf32>,
    %c6 = arith.constant 6 : index
    %c0_91 = arith.constant 0 : index
    %104 = vector.load %arg43[%c6, %c0_91] : memref<64x32xf32, #tpu.memory_space<vmem>>, vector<48x32xf32>
    %c8_92 = arith.constant 8 : index
    %c0_93 = arith.constant 0 : index
    %105 = vector.load %arg43[%c8_92, %c0_93] : memref<64x32xf32, #tpu.memory_space<vmem>>, vector<48x32xf32>
    %c10 = arith.constant 10 : index
    %c0_94 = arith.constant 0 : index
    %106 = vector.load %arg43[%c10, %c0_94] : memref<64x32xf32, #tpu.memory_space<vmem>>, vector<48x32xf32>
    %107 = tpu.concatenate %104, %105, %106 in 1 : vector<48x32xf32>, vector<48x32xf32>, vector<48x32xf32> -> vector<48x96xf32>
    %108 = arith.truncf %107 : vector<48x96xf32> to vector<48x96xbf16>
    %c0_95 = arith.constant 0 : index
    %c0_96 = arith.constant 0 : index
    %109 = vector.load %arg24[%c0_95, %c0_96] : memref<96x32xbf16, #tpu.memory_space<vmem>>, vector<96x32xbf16>
    %cst_97 = arith.constant dense<0.000000e+00> : vector<48x32xf32>
    %110 = tpu.matmul %108, %109, %cst_97 {dimension_numbers = #tpu.dot_dimension_numbers<[1], [0], [0], [1], [0, 0, 1, 1], [], []>} : vector<48x96xbf16>, vector<96x32xbf16>, vector<48x32xf32> -> vector<48x32xf32>
    %c0_98 = arith.constant 0 : index
    %c0_99 = arith.constant 0 : index
    %111 = vector.load %arg25[%c0_98, %c0_99] : memref<1x32xf32, #tpu.memory_space<vmem>>, vector<1x32xf32>
    %112 = vector.broadcast %111 : vector<1x32xf32> to vector<48x32xf32>
    %113 = arith.addf %110, %112 : vector<48x32xf32>
    %c0_100 = arith.constant 0 : index
    %c0_101 = arith.constant 0 : index
    %114 = vector.load %arg26[%c0_100, %c0_101] : memref<1x32xf32, #tpu.memory_space<vmem>>, vector<1x32xf32>
    %115 = vector.broadcast %114 : vector<1x32xf32> to vector<48x32xf32>
    %116 = arith.mulf %113, %115 : vector<48x32xf32>
    %c0_102 = arith.constant 0 : index
    %c0_103 = arith.constant 0 : index
    %117 = vector.load %arg27[%c0_102, %c0_103] : memref<1x32xf32, #tpu.memory_space<vmem>>, vector<1x32xf32>
    %118 = vector.broadcast %117 : vector<1x32xf32> to vector<48x32xf32>
    %119 = arith.addf %116, %118 : vector<48x32xf32>
    %cst_104 = arith.constant 0.000000e+00 : f32
    %120 = vector.broadcast %cst_104 : f32 to vector<48x32xf32>
    %121 = arith.maximumf %119, %120 : vector<48x32xf32>
    %c8_105 = arith.constant 8 : index
    %c0_106 = arith.constant 0 : index
    %122 = vector.load %arg43[%c8_105, %c0_106] : memref<64x32xf32, #tpu.memory_space<vmem>>, vector<48x32xf32>
    tpu.vector_store %arg43[%c8_105, %c0_106], %121 {strides = array<i32>} : memref<64x32xf32, #tpu.memory_space<vmem>>, vector<48x32xf32>,
    %c6_107 = arith.constant 6 : index
    %c0_108 = arith.constant 0 : index
    %123 = vector.load %arg43[%c6_107, %c0_108] : memref<64x32xf32, #tpu.memory_space<vmem>>, vector<48x32xf32>
    %c8_109 = arith.constant 8 : index
    %c0_110 = arith.constant 0 : index
    %124 = vector.load %arg43[%c8_109, %c0_110] : memref<64x32xf32, #tpu.memory_space<vmem>>, vector<48x32xf32>
    %c10_111 = arith.constant 10 : index
    %c0_112 = arith.constant 0 : index
    %125 = vector.load %arg43[%c10_111, %c0_112] : memref<64x32xf32, #tpu.memory_space<vmem>>, vector<48x32xf32>
    %126 = tpu.concatenate %123, %124, %125 in 1 : vector<48x32xf32>, vector<48x32xf32>, vector<48x32xf32> -> vector<48x96xf32>
    %127 = arith.truncf %126 : vector<48x96xf32> to vector<48x96xbf16>
    %c0_113 = arith.constant 0 : index
    %c0_114 = arith.constant 0 : index
    %128 = vector.load %arg28[%c0_113, %c0_114] : memref<96x32xbf16, #tpu.memory_space<vmem>>, vector<96x32xbf16>
    %cst_115 = arith.constant dense<0.000000e+00> : vector<48x32xf32>
    %129 = tpu.matmul %127, %128, %cst_115 {dimension_numbers = #tpu.dot_dimension_numbers<[1], [0], [0], [1], [0, 0, 1, 1], [], []>} : vector<48x96xbf16>, vector<96x32xbf16>, vector<48x32xf32> -> vector<48x32xf32>
    %c0_116 = arith.constant 0 : index
    %c0_117 = arith.constant 0 : index
    %130 = vector.load %arg29[%c0_116, %c0_117] : memref<1x32xf32, #tpu.memory_space<vmem>>, vector<1x32xf32>
    %131 = vector.broadcast %130 : vector<1x32xf32> to vector<48x32xf32>
    %132 = arith.addf %129, %131 : vector<48x32xf32>
    %133 = arith.addf %94, %132 : vector<48x32xf32>
    %c0_118 = arith.constant 0 : index
    %c0_119 = arith.constant 0 : index
    %134 = vector.load %arg30[%c0_118, %c0_119] : memref<1x32xf32, #tpu.memory_space<vmem>>, vector<1x32xf32>
    %135 = vector.broadcast %134 : vector<1x32xf32> to vector<48x32xf32>
    %136 = arith.mulf %133, %135 : vector<48x32xf32>
    %c0_120 = arith.constant 0 : index
    %c0_121 = arith.constant 0 : index
    %137 = vector.load %arg31[%c0_120, %c0_121] : memref<1x32xf32, #tpu.memory_space<vmem>>, vector<1x32xf32>
    %138 = vector.broadcast %137 : vector<1x32xf32> to vector<48x32xf32>
    %139 = arith.addf %136, %138 : vector<48x32xf32>
    %cst_122 = arith.constant 0.000000e+00 : f32
    %140 = vector.broadcast %cst_122 : f32 to vector<48x32xf32>
    %141 = arith.maximumf %139, %140 : vector<48x32xf32>
    %c8_123 = arith.constant 8 : index
    %c0_124 = arith.constant 0 : index
    %142 = vector.load %arg43[%c8_123, %c0_124] : memref<64x32xf32, #tpu.memory_space<vmem>>, vector<48x32xf32>
    tpu.vector_store %arg43[%c8_123, %c0_124], %141 {strides = array<i32>} : memref<64x32xf32, #tpu.memory_space<vmem>>, vector<48x32xf32>,
    %c6_125 = arith.constant 6 : index
    %c0_126 = arith.constant 0 : index
    %143 = vector.load %arg43[%c6_125, %c0_126] : memref<64x32xf32, #tpu.memory_space<vmem>>, vector<48x32xf32>
    %c8_127 = arith.constant 8 : index
    %c0_128 = arith.constant 0 : index
    %144 = vector.load %arg43[%c8_127, %c0_128] : memref<64x32xf32, #tpu.memory_space<vmem>>, vector<48x32xf32>
    %c10_129 = arith.constant 10 : index
    %c0_130 = arith.constant 0 : index
    %145 = vector.load %arg43[%c10_129, %c0_130] : memref<64x32xf32, #tpu.memory_space<vmem>>, vector<48x32xf32>
    %146 = tpu.concatenate %143, %144, %145 in 1 : vector<48x32xf32>, vector<48x32xf32>, vector<48x32xf32> -> vector<48x96xf32>
    %147 = arith.truncf %146 : vector<48x96xf32> to vector<48x96xbf16>
    %c0_131 = arith.constant 0 : index
    %c0_132 = arith.constant 0 : index
    %148 = vector.load %arg32[%c0_131, %c0_132] : memref<96x32xbf16, #tpu.memory_space<vmem>>, vector<96x32xbf16>
    %cst_133 = arith.constant dense<0.000000e+00> : vector<48x32xf32>
    %149 = tpu.matmul %147, %148, %cst_133 {dimension_numbers = #tpu.dot_dimension_numbers<[1], [0], [0], [1], [0, 0, 1, 1], [], []>} : vector<48x96xbf16>, vector<96x32xbf16>, vector<48x32xf32> -> vector<48x32xf32>
    %c0_134 = arith.constant 0 : index
    %c0_135 = arith.constant 0 : index
    %150 = vector.load %arg33[%c0_134, %c0_135] : memref<1x32xf32, #tpu.memory_space<vmem>>, vector<1x32xf32>
    %151 = vector.broadcast %150 : vector<1x32xf32> to vector<48x32xf32>
    %152 = arith.addf %149, %151 : vector<48x32xf32>
    %c0_136 = arith.constant 0 : index
    %c0_137 = arith.constant 0 : index
    %153 = vector.load %arg34[%c0_136, %c0_137] : memref<1x32xf32, #tpu.memory_space<vmem>>, vector<1x32xf32>
    %154 = vector.broadcast %153 : vector<1x32xf32> to vector<48x32xf32>
    %155 = arith.mulf %152, %154 : vector<48x32xf32>
    %c0_138 = arith.constant 0 : index
    %c0_139 = arith.constant 0 : index
    %156 = vector.load %arg35[%c0_138, %c0_139] : memref<1x32xf32, #tpu.memory_space<vmem>>, vector<1x32xf32>
    %157 = vector.broadcast %156 : vector<1x32xf32> to vector<48x32xf32>
    %158 = arith.addf %155, %157 : vector<48x32xf32>
    %cst_140 = arith.constant 0.000000e+00 : f32
    %159 = vector.broadcast %cst_140 : f32 to vector<48x32xf32>
    %160 = arith.maximumf %158, %159 : vector<48x32xf32>
    %c8_141 = arith.constant 8 : index
    %c0_142 = arith.constant 0 : index
    %161 = vector.load %arg43[%c8_141, %c0_142] : memref<64x32xf32, #tpu.memory_space<vmem>>, vector<48x32xf32>
    tpu.vector_store %arg43[%c8_141, %c0_142], %160 {strides = array<i32>} : memref<64x32xf32, #tpu.memory_space<vmem>>, vector<48x32xf32>,
    %c6_143 = arith.constant 6 : index
    %c0_144 = arith.constant 0 : index
    %162 = vector.load %arg43[%c6_143, %c0_144] : memref<64x32xf32, #tpu.memory_space<vmem>>, vector<48x32xf32>
    %c8_145 = arith.constant 8 : index
    %c0_146 = arith.constant 0 : index
    %163 = vector.load %arg43[%c8_145, %c0_146] : memref<64x32xf32, #tpu.memory_space<vmem>>, vector<48x32xf32>
    %c10_147 = arith.constant 10 : index
    %c0_148 = arith.constant 0 : index
    %164 = vector.load %arg43[%c10_147, %c0_148] : memref<64x32xf32, #tpu.memory_space<vmem>>, vector<48x32xf32>
    %165 = tpu.concatenate %162, %163, %164 in 1 : vector<48x32xf32>, vector<48x32xf32>, vector<48x32xf32> -> vector<48x96xf32>
    %166 = arith.truncf %165 : vector<48x96xf32> to vector<48x96xbf16>
    %c0_149 = arith.constant 0 : index
    %c0_150 = arith.constant 0 : index
    %167 = vector.load %arg36[%c0_149, %c0_150] : memref<96x32xbf16, #tpu.memory_space<vmem>>, vector<96x32xbf16>
    %cst_151 = arith.constant dense<0.000000e+00> : vector<48x32xf32>
    %168 = tpu.matmul %166, %167, %cst_151 {dimension_numbers = #tpu.dot_dimension_numbers<[1], [0], [0], [1], [0, 0, 1, 1], [], []>} : vector<48x96xbf16>, vector<96x32xbf16>, vector<48x32xf32> -> vector<48x32xf32>
    %c0_152 = arith.constant 0 : index
    %c0_153 = arith.constant 0 : index
    %169 = vector.load %arg37[%c0_152, %c0_153] : memref<1x32xf32, #tpu.memory_space<vmem>>, vector<1x32xf32>
    %170 = vector.broadcast %169 : vector<1x32xf32> to vector<48x32xf32>
    %171 = arith.addf %168, %170 : vector<48x32xf32>
    %172 = arith.addf %133, %171 : vector<48x32xf32>
    %173 = arith.truncf %172 : vector<48x32xf32> to vector<48x32xbf16>
    %c0_154 = arith.constant 0 : index
    %c0_155 = arith.constant 0 : index
    %174 = vector.load %arg38[%c0_154, %c0_155] : memref<32x32xbf16, #tpu.memory_space<vmem>>, vector<32x32xbf16>
    %cst_156 = arith.constant dense<0.000000e+00> : vector<48x32xf32>
    %175 = tpu.matmul %173, %174, %cst_156 {dimension_numbers = #tpu.dot_dimension_numbers<[1], [0], [0], [1], [0, 0, 1, 1], [], []>} : vector<48x32xbf16>, vector<32x32xbf16>, vector<48x32xf32> -> vector<48x32xf32>
    %c0_157 = arith.constant 0 : index
    %c0_158 = arith.constant 0 : index
    %176 = vector.load %arg39[%c0_157, %c0_158] : memref<1x32xf32, #tpu.memory_space<vmem>>, vector<1x32xf32>
    %177 = vector.broadcast %176 : vector<1x32xf32> to vector<48x32xf32>
    %178 = arith.addf %175, %177 : vector<48x32xf32>
    %179 = arith.addf %13, %178 : vector<48x32xf32>
    %180 = vector.extract_strided_slice %179 {offsets = [12, 0], sizes = [24, 32], strides = [1, 1]} : vector<48x32xf32> to vector<24x32xf32>
    %181 = arith.truncf %180 : vector<24x32xf32> to vector<24x32xbf16>
    %c0_159 = arith.constant 0 : index
    %c0_160 = arith.constant 0 : index
    %182 = vector.load %arg40[%c0_159, %c0_160] : memref<32x3xbf16, #tpu.memory_space<vmem>>, vector<32x3xbf16>
    %cst_161 = arith.constant dense<0.000000e+00> : vector<24x3xf32>
    %183 = tpu.matmul %181, %182, %cst_161 {dimension_numbers = #tpu.dot_dimension_numbers<[1], [0], [0], [1], [0, 0, 1, 1], [], []>} : vector<24x32xbf16>, vector<32x3xbf16>, vector<24x3xf32> -> vector<24x3xf32>
    %c0_162 = arith.constant 0 : index
    %c0_163 = arith.constant 0 : index
    %184 = vector.load %arg41[%c0_162, %c0_163] : memref<1x3xf32, #tpu.memory_space<vmem>>, vector<1x3xf32>
    %185 = vector.broadcast %184 : vector<1x3xf32> to vector<24x3xf32>
    %186 = arith.addf %183, %185 : vector<24x3xf32>
    %c0_164 = arith.constant 0 : index
    %c0_165 = arith.constant 0 : index
    %c0_166 = arith.constant 0 : index
    %187 = vector.load %arg42[%c0_164, %c0_165, %c0_166] : memref<1x24x3xf32, #tpu.memory_space<vmem>>, vector<1x24x3xf32>
    %188 = vector.shape_cast %187 : vector<1x24x3xf32> to vector<24x3xf32>
    %189 = vector.shape_cast %186 : vector<24x3xf32> to vector<1x24x3xf32>
    tpu.vector_store %arg42[%c0_164, %c0_165, %c0_166], %189 {strides = array<i32>} : memref<1x24x3xf32, #tpu.memory_space<vmem>>, vector<1x24x3xf32>,
    return
  }
  func.func @transform_0(%arg0: i32) -> (i32, i32, i32) {
    %c0_i32 = arith.constant 0 : i32
    %c0_i32_0 = arith.constant 0 : i32
    %c0_i32_1 = arith.constant 0 : i32
    return %arg0, %c0_i32, %c0_i32_0 : i32, i32, i32
  }
  func.func @transform_1(%arg0: i32) -> (i32, i32) {
    %c0_i32 = arith.constant 0 : i32
    %c0_i32_0 = arith.constant 0 : i32
    %c0_i32_1 = arith.constant 0 : i32
    return %c0_i32, %c0_i32_0 : i32, i32
  }
  func.func @transform_2(%arg0: i32) -> (i32, i32) {
    %c0_i32 = arith.constant 0 : i32
    %c0_i32_0 = arith.constant 0 : i32
    %c0_i32_1 = arith.constant 0 : i32
    return %c0_i32, %c0_i32_0 : i32, i32
  }
  func.func @transform_3(%arg0: i32) -> (i32, i32) {
    %c0_i32 = arith.constant 0 : i32
    %c0_i32_0 = arith.constant 0 : i32
    %c0_i32_1 = arith.constant 0 : i32
    return %c0_i32, %c0_i32_0 : i32, i32
  }
  func.func @transform_4(%arg0: i32) -> (i32, i32) {
    %c0_i32 = arith.constant 0 : i32
    %c0_i32_0 = arith.constant 0 : i32
    %c0_i32_1 = arith.constant 0 : i32
    return %c0_i32, %c0_i32_0 : i32, i32
  }
  func.func @transform_5(%arg0: i32) -> (i32, i32) {
    %c0_i32 = arith.constant 0 : i32
    %c0_i32_0 = arith.constant 0 : i32
    %c0_i32_1 = arith.constant 0 : i32
    return %c0_i32, %c0_i32_0 : i32, i32
  }
  func.func @transform_6(%arg0: i32) -> (i32, i32) {
    %c0_i32 = arith.constant 0 : i32
    %c0_i32_0 = arith.constant 0 : i32
    %c0_i32_1 = arith.constant 0 : i32
    return %c0_i32, %c0_i32_0 : i32, i32
  }
  func.func @transform_7(%arg0: i32) -> (i32, i32) {
    %c0_i32 = arith.constant 0 : i32
    %c0_i32_0 = arith.constant 0 : i32
    %c0_i32_1 = arith.constant 0 : i32
    return %c0_i32, %c0_i32_0 : i32, i32
  }
  func.func @transform_8(%arg0: i32) -> (i32, i32) {
    %c0_i32 = arith.constant 0 : i32
    %c0_i32_0 = arith.constant 0 : i32
    %c0_i32_1 = arith.constant 0 : i32
    return %c0_i32, %c0_i32_0 : i32, i32
  }
  func.func @transform_9(%arg0: i32) -> (i32, i32) {
    %c0_i32 = arith.constant 0 : i32
    %c0_i32_0 = arith.constant 0 : i32
    %c0_i32_1 = arith.constant 0 : i32
    return %c0_i32, %c0_i32_0 : i32, i32
  }
  func.func @transform_10(%arg0: i32) -> (i32, i32) {
    %c0_i32 = arith.constant 0 : i32
    %c0_i32_0 = arith.constant 0 : i32
    %c0_i32_1 = arith.constant 0 : i32
    return %c0_i32, %c0_i32_0 : i32, i32
  }
  func.func @transform_11(%arg0: i32) -> (i32, i32) {
    %c0_i32 = arith.constant 0 : i32
    %c0_i32_0 = arith.constant 0 : i32
    %c0_i32_1 = arith.constant 0 : i32
    return %c0_i32, %c0_i32_0 : i32, i32
  }
  func.func @transform_12(%arg0: i32) -> (i32, i32) {
    %c0_i32 = arith.constant 0 : i32
    %c0_i32_0 = arith.constant 0 : i32
    %c0_i32_1 = arith.constant 0 : i32
    return %c0_i32, %c0_i32_0 : i32, i32
  }
  func.func @transform_13(%arg0: i32) -> (i32, i32) {
    %c0_i32 = arith.constant 0 : i32
    %c0_i32_0 = arith.constant 0 : i32
    %c0_i32_1 = arith.constant 0 : i32
    return %c0_i32, %c0_i32_0 : i32, i32
  }
  func.func @transform_14(%arg0: i32) -> (i32, i32) {
    %c0_i32 = arith.constant 0 : i32
    %c0_i32_0 = arith.constant 0 : i32
    %c0_i32_1 = arith.constant 0 : i32
    return %c0_i32, %c0_i32_0 : i32, i32
  }
  func.func @transform_15(%arg0: i32) -> (i32, i32) {
    %c0_i32 = arith.constant 0 : i32
    %c0_i32_0 = arith.constant 0 : i32
    %c0_i32_1 = arith.constant 0 : i32
    return %c0_i32, %c0_i32_0 : i32, i32
  }
  func.func @transform_16(%arg0: i32) -> (i32, i32) {
    %c0_i32 = arith.constant 0 : i32
    %c0_i32_0 = arith.constant 0 : i32
    %c0_i32_1 = arith.constant 0 : i32
    return %c0_i32, %c0_i32_0 : i32, i32
  }
  func.func @transform_17(%arg0: i32) -> (i32, i32) {
    %c0_i32 = arith.constant 0 : i32
    %c0_i32_0 = arith.constant 0 : i32
    %c0_i32_1 = arith.constant 0 : i32
    return %c0_i32, %c0_i32_0 : i32, i32
  }
  func.func @transform_18(%arg0: i32) -> (i32, i32) {
    %c0_i32 = arith.constant 0 : i32
    %c0_i32_0 = arith.constant 0 : i32
    %c0_i32_1 = arith.constant 0 : i32
    return %c0_i32, %c0_i32_0 : i32, i32
  }
  func.func @transform_19(%arg0: i32) -> (i32, i32) {
    %c0_i32 = arith.constant 0 : i32
    %c0_i32_0 = arith.constant 0 : i32
    %c0_i32_1 = arith.constant 0 : i32
    return %c0_i32, %c0_i32_0 : i32, i32
  }
  func.func @transform_20(%arg0: i32) -> (i32, i32) {
    %c0_i32 = arith.constant 0 : i32
    %c0_i32_0 = arith.constant 0 : i32
    %c0_i32_1 = arith.constant 0 : i32
    return %c0_i32, %c0_i32_0 : i32, i32
  }
  func.func @transform_21(%arg0: i32) -> (i32, i32) {
    %c0_i32 = arith.constant 0 : i32
    %c0_i32_0 = arith.constant 0 : i32
    %c0_i32_1 = arith.constant 0 : i32
    return %c0_i32, %c0_i32_0 : i32, i32
  }
  func.func @transform_22(%arg0: i32) -> (i32, i32) {
    %c0_i32 = arith.constant 0 : i32
    %c0_i32_0 = arith.constant 0 : i32
    %c0_i32_1 = arith.constant 0 : i32
    return %c0_i32, %c0_i32_0 : i32, i32
  }
  func.func @transform_23(%arg0: i32) -> (i32, i32) {
    %c0_i32 = arith.constant 0 : i32
    %c0_i32_0 = arith.constant 0 : i32
    %c0_i32_1 = arith.constant 0 : i32
    return %c0_i32, %c0_i32_0 : i32, i32
  }
  func.func @transform_24(%arg0: i32) -> (i32, i32) {
    %c0_i32 = arith.constant 0 : i32
    %c0_i32_0 = arith.constant 0 : i32
    %c0_i32_1 = arith.constant 0 : i32
    return %c0_i32, %c0_i32_0 : i32, i32
  }
  func.func @transform_25(%arg0: i32) -> (i32, i32) {
    %c0_i32 = arith.constant 0 : i32
    %c0_i32_0 = arith.constant 0 : i32
    %c0_i32_1 = arith.constant 0 : i32
    return %c0_i32, %c0_i32_0 : i32, i32
  }
  func.func @transform_26(%arg0: i32) -> (i32, i32) {
    %c0_i32 = arith.constant 0 : i32
    %c0_i32_0 = arith.constant 0 : i32
    %c0_i32_1 = arith.constant 0 : i32
    return %c0_i32, %c0_i32_0 : i32, i32
  }
  func.func @transform_27(%arg0: i32) -> (i32, i32) {
    %c0_i32 = arith.constant 0 : i32
    %c0_i32_0 = arith.constant 0 : i32
    %c0_i32_1 = arith.constant 0 : i32
    return %c0_i32, %c0_i32_0 : i32, i32
  }
  func.func @transform_28(%arg0: i32) -> (i32, i32) {
    %c0_i32 = arith.constant 0 : i32
    %c0_i32_0 = arith.constant 0 : i32
    %c0_i32_1 = arith.constant 0 : i32
    return %c0_i32, %c0_i32_0 : i32, i32
  }
  func.func @transform_29(%arg0: i32) -> (i32, i32) {
    %c0_i32 = arith.constant 0 : i32
    %c0_i32_0 = arith.constant 0 : i32
    %c0_i32_1 = arith.constant 0 : i32
    return %c0_i32, %c0_i32_0 : i32, i32
  }
  func.func @transform_30(%arg0: i32) -> (i32, i32) {
    %c0_i32 = arith.constant 0 : i32
    %c0_i32_0 = arith.constant 0 : i32
    %c0_i32_1 = arith.constant 0 : i32
    return %c0_i32, %c0_i32_0 : i32, i32
  }
  func.func @transform_31(%arg0: i32) -> (i32, i32) {
    %c0_i32 = arith.constant 0 : i32
    %c0_i32_0 = arith.constant 0 : i32
    %c0_i32_1 = arith.constant 0 : i32
    return %c0_i32, %c0_i32_0 : i32, i32
  }
  func.func @transform_32(%arg0: i32) -> (i32, i32) {
    %c0_i32 = arith.constant 0 : i32
    %c0_i32_0 = arith.constant 0 : i32
    %c0_i32_1 = arith.constant 0 : i32
    return %c0_i32, %c0_i32_0 : i32, i32
  }
  func.func @transform_33(%arg0: i32) -> (i32, i32) {
    %c0_i32 = arith.constant 0 : i32
    %c0_i32_0 = arith.constant 0 : i32
    %c0_i32_1 = arith.constant 0 : i32
    return %c0_i32, %c0_i32_0 : i32, i32
  }
  func.func @transform_34(%arg0: i32) -> (i32, i32) {
    %c0_i32 = arith.constant 0 : i32
    %c0_i32_0 = arith.constant 0 : i32
    %c0_i32_1 = arith.constant 0 : i32
    return %c0_i32, %c0_i32_0 : i32, i32
  }
  func.func @transform_35(%arg0: i32) -> (i32, i32) {
    %c0_i32 = arith.constant 0 : i32
    %c0_i32_0 = arith.constant 0 : i32
    %c0_i32_1 = arith.constant 0 : i32
    return %c0_i32, %c0_i32_0 : i32, i32
  }
  func.func @transform_36(%arg0: i32) -> (i32, i32) {
    %c0_i32 = arith.constant 0 : i32
    %c0_i32_0 = arith.constant 0 : i32
    %c0_i32_1 = arith.constant 0 : i32
    return %c0_i32, %c0_i32_0 : i32, i32
  }
  func.func @transform_37(%arg0: i32) -> (i32, i32) {
    %c0_i32 = arith.constant 0 : i32
    %c0_i32_0 = arith.constant 0 : i32
    %c0_i32_1 = arith.constant 0 : i32
    return %c0_i32, %c0_i32_0 : i32, i32
  }
  func.func @transform_38(%arg0: i32) -> (i32, i32) {
    %c0_i32 = arith.constant 0 : i32
    %c0_i32_0 = arith.constant 0 : i32
    %c0_i32_1 = arith.constant 0 : i32
    return %c0_i32, %c0_i32_0 : i32, i32
  }
  func.func @transform_39(%arg0: i32) -> (i32, i32) {
    %c0_i32 = arith.constant 0 : i32
    %c0_i32_0 = arith.constant 0 : i32
    %c0_i32_1 = arith.constant 0 : i32
    return %c0_i32, %c0_i32_0 : i32, i32
  }
  func.func @transform_40(%arg0: i32) -> (i32, i32) {
    %c0_i32 = arith.constant 0 : i32
    %c0_i32_0 = arith.constant 0 : i32
    %c0_i32_1 = arith.constant 0 : i32
    return %c0_i32, %c0_i32_0 : i32, i32
  }
  func.func @transform_41(%arg0: i32) -> (i32, i32, i32) {
    %c0_i32 = arith.constant 0 : i32
    %c0_i32_0 = arith.constant 0 : i32
    %c0_i32_1 = arith.constant 0 : i32
    return %arg0, %c0_i32, %c0_i32_0 : i32, i32, i32
  }
}

</mosaic_0001>

<llo_original>
// kernel: tpu_custom_call.1
$region0: #{tpu_custom_call.1}
  #allocation0 [shape = 'u32[]', space=smem, size = 0x4, offset = 0x4, fixed_abs, tag = 'smem constant byte address 0x4 - core index']
  #allocation1 [shape = 'u32[144,128]{1,0:T(1,128)}', space=vmem, size = 0x12000, scoped, tag = 'internal scratch']
  #allocation2 [shape = 'f32[64,32]{1,0:T(8,128)}', space=vmem, size = 0x8000, scoped, tag = 'scratch operand']
  %s0 = inlined_call_operand.smem [shape: u32[42], index: -1, kind: input, shape index: {}]
  %s1 = sld [smem:[%s0]]
  %s2 = scalar_lea.smem %s0, 1
  %s3 = sld [smem:[%s2]]
  %s4 = scalar_lea.smem %s0, 2
  %s5 = sld [smem:[%s4]]
  %s6 = scalar_lea.smem %s0, 3
  %s7 = sld [smem:[%s6]]
  %s8 = scalar_lea.smem %s0, 4
  %s9 = sld [smem:[%s8]]
  %s10 = scalar_lea.smem %s0, 5
  %s11 = sld [smem:[%s10]]
  %s12 = scalar_lea.smem %s0, 6
  %s13 = sld [smem:[%s12]]
  %s14 = scalar_lea.smem %s0, 7
  %s15 = sld [smem:[%s14]]
  %s16 = scalar_lea.smem %s0, 8
  %s17 = sld [smem:[%s16]]
  %s18 = scalar_lea.smem %s0, 9
  %s19 = sld [smem:[%s18]]
  %s20 = scalar_lea.smem %s0, 10
  %s21 = sld [smem:[%s20]]
  %s22 = scalar_lea.smem %s0, 11
  %s23 = sld [smem:[%s22]]
  %s24 = scalar_lea.smem %s0, 12
  %s25 = sld [smem:[%s24]]
  %s26 = scalar_lea.smem %s0, 13
  %s27 = sld [smem:[%s26]]
  %s28 = scalar_lea.smem %s0, 14
  %s29 = sld [smem:[%s28]]
  %s30 = scalar_lea.smem %s0, 15
  %s31 = sld [smem:[%s30]]
  %s32 = scalar_lea.smem %s0, 16
  %s33 = sld [smem:[%s32]]
  %s34 = scalar_lea.smem %s0, 17
  %s35 = sld [smem:[%s34]]
  %s36 = scalar_lea.smem %s0, 18
  %s37 = sld [smem:[%s36]]
  %s38 = scalar_lea.smem %s0, 19
  %s39 = sld [smem:[%s38]]
  %s40 = scalar_lea.smem %s0, 20
  %s41 = sld [smem:[%s40]]
  %s42 = scalar_lea.smem %s0, 21
  %s43 = sld [smem:[%s42]]
  %s44 = scalar_lea.smem %s0, 22
  %s45 = sld [smem:[%s44]]
  %s46 = scalar_lea.smem %s0, 23
  %s47 = sld [smem:[%s46]]
  %s48 = scalar_lea.smem %s0, 24
  %s49 = sld [smem:[%s48]]
  %s50 = scalar_lea.smem %s0, 25
  %s51 = sld [smem:[%s50]]
  %s52 = scalar_lea.smem %s0, 26
  %s53 = sld [smem:[%s52]]
  %s54 = scalar_lea.smem %s0, 27
  %s55 = sld [smem:[%s54]]
  %s56 = scalar_lea.smem %s0, 28
  %s57 = sld [smem:[%s56]]
  %s58 = scalar_lea.smem %s0, 29
  %s59 = sld [smem:[%s58]]
  %s60 = scalar_lea.smem %s0, 30
  %s61 = sld [smem:[%s60]]
  %s62 = scalar_lea.smem %s0, 31
  %s63 = sld [smem:[%s62]]
  %s64 = scalar_lea.smem %s0, 32
  %s65 = sld [smem:[%s64]]
  %s66 = scalar_lea.smem %s0, 33
  %s67 = sld [smem:[%s66]]
  %s68 = scalar_lea.smem %s0, 34
  %s69 = sld [smem:[%s68]]
  %s70 = scalar_lea.smem %s0, 35
  %s71 = sld [smem:[%s70]]
  %s72 = scalar_lea.smem %s0, 36
  %s73 = sld [smem:[%s72]]
  %s74 = scalar_lea.smem %s0, 37
  %s75 = sld [smem:[%s74]]
  %s76 = scalar_lea.smem %s0, 38
  %s77 = sld [smem:[%s76]]
  %s78 = scalar_lea.smem %s0, 39
  %s79 = sld [smem:[%s78]]
  %s80 = scalar_lea.smem %s0, 40
  %s81 = sld [smem:[%s80]]
  %s82 = scalar_lea.smem %s0, 41
  %s83 = sld [smem:[%s82]]
  %s84 = sld [smem:[#allocation0]]
  $region197: #{tpu_custom_call.1} parent=0
    _
  %s86 = ssub.s32 1, %s84
  %s87 = scalar_select 0, %s86, %s84
  loop: start=0, step=1, limit=4
  $region2: #{tpu_custom_call.1} parent=0 // loop_pre_header
    _
  $region3: #{tpu_custom_call.1} parent=0 // loop_header
    %s89 = sphi 0, %s93
    %p90 = scmp.ge.s32.totalorder %s89, 4
    %s99 = sphi 0, %s101
    %s102 = sphi 0, %s99
    %s103 = sphi 0, %s102
    %s119 = sphi 0, %s103
    %s123 = sphi 0, %s123
    %s125 = sphi 0, %s123
    %s126 = sphi 0, %s125
    %s140 = sphi 0, %s126
    %s144 = sphi 0, %s144
    %s146 = sphi 0, %s144
    %s147 = sphi 0, %s146
    %s161 = sphi 0, %s147
    %s165 = sphi 0, %s165
    %s167 = sphi 0, %s165
    %s168 = sphi 0, %s167
    %s182 = sphi 0, %s168
    %s186 = sphi 0, %s186
    %s188 = sphi 0, %s186
    %s189 = sphi 0, %s188
    %s203 = sphi 0, %s189
    %s207 = sphi 0, %s207
    %s209 = sphi 0, %s207
    %s210 = sphi 0, %s209
    %s224 = sphi 0, %s210
    %s228 = sphi 0, %s228
    %s230 = sphi 0, %s228
    %s231 = sphi 0, %s230
    %s245 = sphi 0, %s231
    %s249 = sphi 0, %s249
    %s251 = sphi 0, %s249
    %s252 = sphi 0, %s251
    %s266 = sphi 0, %s252
    %s270 = sphi 0, %s270
    %s272 = sphi 0, %s270
    %s273 = sphi 0, %s272
    %s287 = sphi 0, %s273
    %s291 = sphi 0, %s291
    %s293 = sphi 0, %s291
    %s294 = sphi 0, %s293
    %s308 = sphi 0, %s294
    %s312 = sphi 0, %s312
    %s314 = sphi 0, %s312
    %s315 = sphi 0, %s314
    %s329 = sphi 0, %s315
    %s333 = sphi 0, %s333
    %s335 = sphi 0, %s333
    %s336 = sphi 0, %s335
    %s350 = sphi 0, %s336
    %s354 = sphi 0, %s354
    %s356 = sphi 0, %s354
    %s357 = sphi 0, %s356
    %s371 = sphi 0, %s357
    %s375 = sphi 0, %s375
    %s377 = sphi 0, %s375
    %s378 = sphi 0, %s377
    %s392 = sphi 0, %s378
    %s396 = sphi 0, %s396
    %s398 = sphi 0, %s396
    %s399 = sphi 0, %s398
    %s413 = sphi 0, %s399
    %s417 = sphi 0, %s417
    %s419 = sphi 0, %s417
    %s420 = sphi 0, %s419
    %s434 = sphi 0, %s420
    %s438 = sphi 0, %s438
    %s440 = sphi 0, %s438
    %s441 = sphi 0, %s440
    %s455 = sphi 0, %s441
    %s459 = sphi 0, %s459
    %s461 = sphi 0, %s459
    %s462 = sphi 0, %s461
    %s476 = sphi 0, %s462
    %s480 = sphi 0, %s480
    %s482 = sphi 0, %s480
    %s483 = sphi 0, %s482
    %s497 = sphi 0, %s483
    %s501 = sphi 0, %s501
    %s503 = sphi 0, %s501
    %s504 = sphi 0, %s503
    %s518 = sphi 0, %s504
    %s522 = sphi 0, %s522
    %s524 = sphi 0, %s522
    %s525 = sphi 0, %s524
    %s539 = sphi 0, %s525
    %s543 = sphi 0, %s543
    %s545 = sphi 0, %s543
    %s546 = sphi 0, %s545
    %s560 = sphi 0, %s546
    %s564 = sphi 0, %s564
    %s566 = sphi 0, %s564
    %s567 = sphi 0, %s566
    %s581 = sphi 0, %s567
    %s585 = sphi 0, %s585
    %s587 = sphi 0, %s585
    %s588 = sphi 0, %s587
    %s602 = sphi 0, %s588
    %s606 = sphi 0, %s606
    %s608 = sphi 0, %s606
    %s609 = sphi 0, %s608
    %s623 = sphi 0, %s609
    %s627 = sphi 0, %s627
    %s629 = sphi 0, %s627
    %s630 = sphi 0, %s629
    %s644 = sphi 0, %s630
    %s648 = sphi 0, %s648
    %s650 = sphi 0, %s648
    %s651 = sphi 0, %s650
    %s665 = sphi 0, %s651
    %s669 = sphi 0, %s669
    %s671 = sphi 0, %s669
    %s672 = sphi 0, %s671
    %s686 = sphi 0, %s672
    %s690 = sphi 0, %s690
    %s692 = sphi 0, %s690
    %s693 = sphi 0, %s692
    %s707 = sphi 0, %s693
    %s711 = sphi 0, %s711
    %s713 = sphi 0, %s711
    %s714 = sphi 0, %s713
    %s728 = sphi 0, %s714
    %s732 = sphi 0, %s732
    %s734 = sphi 0, %s732
    %s735 = sphi 0, %s734
    %s749 = sphi 0, %s735
    %s753 = sphi 0, %s753
    %s755 = sphi 0, %s753
    %s756 = sphi 0, %s755
    %s770 = sphi 0, %s756
    %s774 = sphi 0, %s774
    %s776 = sphi 0, %s774
    %s777 = sphi 0, %s776
    %s791 = sphi 0, %s777
    %s795 = sphi 0, %s795
    %s797 = sphi 0, %s795
    %s798 = sphi 0, %s797
    %s812 = sphi 0, %s798
    %s816 = sphi 0, %s816
    %s818 = sphi 0, %s816
    %s819 = sphi 0, %s818
    %s833 = sphi 0, %s819
    %s837 = sphi 0, %s837
    %s839 = sphi 0, %s837
    %s840 = sphi 0, %s839
    %s854 = sphi 0, %s840
    %s858 = sphi 0, %s858
    %s860 = sphi 0, %s858
    %s861 = sphi 0, %s860
    %s875 = sphi 0, %s861
    %s879 = sphi 0, %s879
    %s881 = sphi 0, %s879
    %s882 = sphi 0, %s881
    %s896 = sphi 0, %s882
    %s900 = sphi 0, %s900
    %s902 = sphi 0, %s900
    %s903 = sphi 0, %s902
    %s917 = sphi 0, %s903
    %s921 = sphi 0, %s921
    %s923 = sphi 0, %s921
    %s924 = sphi 0, %s923
    %s938 = sphi 0, %s924
    %s942 = sphi 0, %s942
    %s944 = sphi 0, %s942
    %s945 = sphi 0, %s944
    %s959 = sphi 0, %s945
    %s965 = sphi 0, %s967
    %s968 = sphi 0, %s965
    %s969 = sphi 0, %s968
    %s985 = sphi 0, %s969
  $region4: #{tpu_custom_call.1} parent=0 // loop_header_branch
    %92 = sbr.rel (%p90) target = $region8
  $region5: #{tpu_custom_call.1} parent=0 // loop_body
    %s94 = ssub.s32 %s89, 1
    %s95 = ssub.s32 %s89, 2
    %s96 = sadd.s32 %s89, 1
    %s97 = ssub.s32 %s89, %s96
    %p98 = scmp.eq.s32.totalorder %s97, 0
    %s100 = sadd.s32 %s99, 1
    %s101 = scalar_select %p98, %s99, %s100
    %p104 = pneg %p98
    %p105 = scmp.eq.s32.totalorder %s89, 1
    %p106 = por %p104, %p105
    %p107 = scmp.ne.s32.totalorder %s99, %s102
    %p108 = scmp.eq.s32.totalorder %s89, 0
    %p109 = por %p107, %p108
    %p110 = scmp.ne.s32.totalorder %s99, %s102
    %p111 = scmp.eq.s32.totalorder %s94, 1
    %p112 = por %p110, %p111
    %p113 = scmp.ne.s32.totalorder %s102, %s103
    %p114 = scmp.eq.s32.totalorder %s94, 0
    %p115 = por %p113, %p114
    %p116 = scmp.ne.s32.totalorder %s102, %s103
    %p117 = scmp.eq.s32.totalorder %s95, 1
    %p118 = por %p116, %p117
    %p120 = scmp.ne.s32.totalorder %s103, %s119
    %p121 = scmp.eq.s32.totalorder %s95, 0
    %p122 = por %p120, %p121
    %s124 = sadd.s32 %s123, 1
    %p127 = scmp.eq.s32.totalorder %s89, 1
    %p128 = scmp.ne.s32.totalorder %s123, %s125
    %p129 = scmp.eq.s32.totalorder %s89, 0
    %p130 = por %p128, %p129
    %p131 = scmp.ne.s32.totalorder %s123, %s125
    %p132 = scmp.eq.s32.totalorder %s94, 1
    %p133 = por %p131, %p132
    %p134 = scmp.ne.s32.totalorder %s125, %s126
    %p135 = scmp.eq.s32.totalorder %s94, 0
    %p136 = por %p134, %p135
    %p137 = scmp.ne.s32.totalorder %s125, %s126
    %p138 = scmp.eq.s32.totalorder %s95, 1
    %p139 = por %p137, %p138
    %p141 = scmp.ne.s32.totalorder %s126, %s140
    %p142 = scmp.eq.s32.totalorder %s95, 0
    %p143 = por %p141, %p142
    %s145 = sadd.s32 %s144, 1
    %p148 = scmp.eq.s32.totalorder %s89, 1
    %p149 = scmp.ne.s32.totalorder %s144, %s146
    %p150 = scmp.eq.s32.totalorder %s89, 0
    %p151 = por %p149, %p150
    %p152 = scmp.ne.s32.totalorder %s144, %s146
    %p153 = scmp.eq.s32.totalorder %s94, 1
    %p154 = por %p152, %p153
    %p155 = scmp.ne.s32.totalorder %s146, %s147
    %p156 = scmp.eq.s32.totalorder %s94, 0
    %p157 = por %p155, %p156
    %p158 = scmp.ne.s32.totalorder %s146, %s147
    %p159 = scmp.eq.s32.totalorder %s95, 1
    %p160 = por %p158, %p159
    %p162 = scmp.ne.s32.totalorder %s147, %s161
    %p163 = scmp.eq.s32.totalorder %s95, 0
    %p164 = por %p162, %p163
    %s166 = sadd.s32 %s165, 1
    %p169 = scmp.eq.s32.totalorder %s89, 1
    %p170 = scmp.ne.s32.totalorder %s165, %s167
    %p171 = scmp.eq.s32.totalorder %s89, 0
    %p172 = por %p170, %p171
    %p173 = scmp.ne.s32.totalorder %s165, %s167
    %p174 = scmp.eq.s32.totalorder %s94, 1
    %p175 = por %p173, %p174
    %p176 = scmp.ne.s32.totalorder %s167, %s168
    %p177 = scmp.eq.s32.totalorder %s94, 0
    %p178 = por %p176, %p177
    %p179 = scmp.ne.s32.totalorder %s167, %s168
    %p180 = scmp.eq.s32.totalorder %s95, 1
    %p181 = por %p179, %p180
    %p183 = scmp.ne.s32.totalorder %s168, %s182
    %p184 = scmp.eq.s32.totalorder %s95, 0
    %p185 = por %p183, %p184
    %s187 = sadd.s32 %s186, 1
    %p190 = scmp.eq.s32.totalorder %s89, 1
    %p191 = scmp.ne.s32.totalorder %s186, %s188
    %p192 = scmp.eq.s32.totalorder %s89, 0
    %p193 = por %p191, %p192
    %p194 = scmp.ne.s32.totalorder %s186, %s188
    %p195 = scmp.eq.s32.totalorder %s94, 1
    %p196 = por %p194, %p195
    %p197 = scmp.ne.s32.totalorder %s188, %s189
    %p198 = scmp.eq.s32.totalorder %s94, 0
    %p199 = por %p197, %p198
    %p200 = scmp.ne.s32.totalorder %s188, %s189
    %p201 = scmp.eq.s32.totalorder %s95, 1
    %p202 = por %p200, %p201
    %p204 = scmp.ne.s32.totalorder %s189, %s203
    %p205 = scmp.eq.s32.totalorder %s95, 0
    %p206 = por %p204, %p205
    %s208 = sadd.s32 %s207, 1
    %p211 = scmp.eq.s32.totalorder %s89, 1
    %p212 = scmp.ne.s32.totalorder %s207, %s209
    %p213 = scmp.eq.s32.totalorder %s89, 0
    %p214 = por %p212, %p213
    %p215 = scmp.ne.s32.totalorder %s207, %s209
    %p216 = scmp.eq.s32.totalorder %s94, 1
    %p217 = por %p215, %p216
    %p218 = scmp.ne.s32.totalorder %s209, %s210
    %p219 = scmp.eq.s32.totalorder %s94, 0
    %p220 = por %p218, %p219
    %p221 = scmp.ne.s32.totalorder %s209, %s210
    %p222 = scmp.eq.s32.totalorder %s95, 1
    %p223 = por %p221, %p222
    %p225 = scmp.ne.s32.totalorder %s210, %s224
    %p226 = scmp.eq.s32.totalorder %s95, 0
    %p227 = por %p225, %p226
    %s229 = sadd.s32 %s228, 1
    %p232 = scmp.eq.s32.totalorder %s89, 1
    %p233 = scmp.ne.s32.totalorder %s228, %s230
    %p234 = scmp.eq.s32.totalorder %s89, 0
    %p235 = por %p233, %p234
    %p236 = scmp.ne.s32.totalorder %s228, %s230
    %p237 = scmp.eq.s32.totalorder %s94, 1
    %p238 = por %p236, %p237
    %p239 = scmp.ne.s32.totalorder %s230, %s231
    %p240 = scmp.eq.s32.totalorder %s94, 0
    %p241 = por %p239, %p240
    %p242 = scmp.ne.s32.totalorder %s230, %s231
    %p243 = scmp.eq.s32.totalorder %s95, 1
    %p244 = por %p242, %p243
    %p246 = scmp.ne.s32.totalorder %s231, %s245
    %p247 = scmp.eq.s32.totalorder %s95, 0
    %p248 = por %p246, %p247
    %s250 = sadd.s32 %s249, 1
    %p253 = scmp.eq.s32.totalorder %s89, 1
    %p254 = scmp.ne.s32.totalorder %s249, %s251
    %p255 = scmp.eq.s32.totalorder %s89, 0
    %p256 = por %p254, %p255
    %p257 = scmp.ne.s32.totalorder %s249, %s251
    %p258 = scmp.eq.s32.totalorder %s94, 1
    %p259 = por %p257, %p258
    %p260 = scmp.ne.s32.totalorder %s251, %s252
    %p261 = scmp.eq.s32.totalorder %s94, 0
    %p262 = por %p260, %p261
    %p263 = scmp.ne.s32.totalorder %s251, %s252
    %p264 = scmp.eq.s32.totalorder %s95, 1
    %p265 = por %p263, %p264
    %p267 = scmp.ne.s32.totalorder %s252, %s266
    %p268 = scmp.eq.s32.totalorder %s95, 0
    %p269 = por %p267, %p268
    %s271 = sadd.s32 %s270, 1
    %p274 = scmp.eq.s32.totalorder %s89, 1
    %p275 = scmp.ne.s32.totalorder %s270, %s272
    %p276 = scmp.eq.s32.totalorder %s89, 0
    %p277 = por %p275, %p276
    %p278 = scmp.ne.s32.totalorder %s270, %s272
    %p279 = scmp.eq.s32.totalorder %s94, 1
    %p280 = por %p278, %p279
    %p281 = scmp.ne.s32.totalorder %s272, %s273
    %p282 = scmp.eq.s32.totalorder %s94, 0
    %p283 = por %p281, %p282
    %p284 = scmp.ne.s32.totalorder %s272, %s273
    %p285 = scmp.eq.s32.totalorder %s95, 1
    %p286 = por %p284, %p285
    %p288 = scmp.ne.s32.totalorder %s273, %s287
    %p289 = scmp.eq.s32.totalorder %s95, 0
    %p290 = por %p288, %p289
    %s292 = sadd.s32 %s291, 1
    %p295 = scmp.eq.s32.totalorder %s89, 1
    %p296 = scmp.ne.s32.totalorder %s291, %s293
    %p297 = scmp.eq.s32.totalorder %s89, 0
    %p298 = por %p296, %p297
    %p299 = scmp.ne.s32.totalorder %s291, %s293
    %p300 = scmp.eq.s32.totalorder %s94, 1
    %p301 = por %p299, %p300
    %p302 = scmp.ne.s32.totalorder %s293, %s294
    %p303 = scmp.eq.s32.totalorder %s94, 0
    %p304 = por %p302, %p303
    %p305 = scmp.ne.s32.totalorder %s293, %s294
    %p306 = scmp.eq.s32.totalorder %s95, 1
    %p307 = por %p305, %p306
    %p309 = scmp.ne.s32.totalorder %s294, %s308
    %p310 = scmp.eq.s32.totalorder %s95, 0
    %p311 = por %p309, %p310
    %s313 = sadd.s32 %s312, 1
    %p316 = scmp.eq.s32.totalorder %s89, 1
    %p317 = scmp.ne.s32.totalorder %s312, %s314
    %p318 = scmp.eq.s32.totalorder %s89, 0
    %p319 = por %p317, %p318
    %p320 = scmp.ne.s32.totalorder %s312, %s314
    %p321 = scmp.eq.s32.totalorder %s94, 1
    %p322 = por %p320, %p321
    %p323 = scmp.ne.s32.totalorder %s314, %s315
    %p324 = scmp.eq.s32.totalorder %s94, 0
    %p325 = por %p323, %p324
    %p326 = scmp.ne.s32.totalorder %s314, %s315
    %p327 = scmp.eq.s32.totalorder %s95, 1
    %p328 = por %p326, %p327
    %p330 = scmp.ne.s32.totalorder %s315, %s329
    %p331 = scmp.eq.s32.totalorder %s95, 0
    %p332 = por %p330, %p331
    %s334 = sadd.s32 %s333, 1
    %p337 = scmp.eq.s32.totalorder %s89, 1
    %p338 = scmp.ne.s32.totalorder %s333, %s335
    %p339 = scmp.eq.s32.totalorder %s89, 0
    %p340 = por %p338, %p339
    %p341 = scmp.ne.s32.totalorder %s333, %s335
    %p342 = scmp.eq.s32.totalorder %s94, 1
    %p343 = por %p341, %p342
    %p344 = scmp.ne.s32.totalorder %s335, %s336
    %p345 = scmp.eq.s32.totalorder %s94, 0
    %p346 = por %p344, %p345
    %p347 = scmp.ne.s32.totalorder %s335, %s336
    %p348 = scmp.eq.s32.totalorder %s95, 1
    %p349 = por %p347, %p348
    %p351 = scmp.ne.s32.totalorder %s336, %s350
    %p352 = scmp.eq.s32.totalorder %s95, 0
    %p353 = por %p351, %p352
    %s355 = sadd.s32 %s354, 1
    %p358 = scmp.eq.s32.totalorder %s89, 1
    %p359 = scmp.ne.s32.totalorder %s354, %s356
    %p360 = scmp.eq.s32.totalorder %s89, 0
    %p361 = por %p359, %p360
    %p362 = scmp.ne.s32.totalorder %s354, %s356
    %p363 = scmp.eq.s32.totalorder %s94, 1
    %p364 = por %p362, %p363
    %p365 = scmp.ne.s32.totalorder %s356, %s357
    %p366 = scmp.eq.s32.totalorder %s94, 0
    %p367 = por %p365, %p366
    %p368 = scmp.ne.s32.totalorder %s356, %s357
    %p369 = scmp.eq.s32.totalorder %s95, 1
    %p370 = por %p368, %p369
    %p372 = scmp.ne.s32.totalorder %s357, %s371
    %p373 = scmp.eq.s32.totalorder %s95, 0
    %p374 = por %p372, %p373
    %s376 = sadd.s32 %s375, 1
    %p379 = scmp.eq.s32.totalorder %s89, 1
    %p380 = scmp.ne.s32.totalorder %s375, %s377
    %p381 = scmp.eq.s32.totalorder %s89, 0
    %p382 = por %p380, %p381
    %p383 = scmp.ne.s32.totalorder %s375, %s377
    %p384 = scmp.eq.s32.totalorder %s94, 1
    %p385 = por %p383, %p384
    %p386 = scmp.ne.s32.totalorder %s377, %s378
    %p387 = scmp.eq.s32.totalorder %s94, 0
    %p388 = por %p386, %p387
    %p389 = scmp.ne.s32.totalorder %s377, %s378
    %p390 = scmp.eq.s32.totalorder %s95, 1
    %p391 = por %p389, %p390
    %p393 = scmp.ne.s32.totalorder %s378, %s392
    %p394 = scmp.eq.s32.totalorder %s95, 0
    %p395 = por %p393, %p394
    %s397 = sadd.s32 %s396, 1
    %p400 = scmp.eq.s32.totalorder %s89, 1
    %p401 = scmp.ne.s32.totalorder %s396, %s398
    %p402 = scmp.eq.s32.totalorder %s89, 0
    %p403 = por %p401, %p402
    %p404 = scmp.ne.s32.totalorder %s396, %s398
    %p405 = scmp.eq.s32.totalorder %s94, 1
    %p406 = por %p404, %p405
    %p407 = scmp.ne.s32.totalorder %s398, %s399
    %p408 = scmp.eq.s32.totalorder %s94, 0
    %p409 = por %p407, %p408
    %p410 = scmp.ne.s32.totalorder %s398, %s399
    %p411 = scmp.eq.s32.totalorder %s95, 1
    %p412 = por %p410, %p411
    %p414 = scmp.ne.s32.totalorder %s399, %s413
    %p415 = scmp.eq.s32.totalorder %s95, 0
    %p416 = por %p414, %p415
    %s418 = sadd.s32 %s417, 1
    %p421 = scmp.eq.s32.totalorder %s89, 1
    %p422 = scmp.ne.s32.totalorder %s417, %s419
    %p423 = scmp.eq.s32.totalorder %s89, 0
    %p424 = por %p422, %p423
    %p425 = scmp.ne.s32.totalorder %s417, %s419
    %p426 = scmp.eq.s32.totalorder %s94, 1
    %p427 = por %p425, %p426
    %p428 = scmp.ne.s32.totalorder %s419, %s420
    %p429 = scmp.eq.s32.totalorder %s94, 0
    %p430 = por %p428, %p429
    %p431 = scmp.ne.s32.totalorder %s419, %s420
    %p432 = scmp.eq.s32.totalorder %s95, 1
    %p433 = por %p431, %p432
    %p435 = scmp.ne.s32.totalorder %s420, %s434
    %p436 = scmp.eq.s32.totalorder %s95, 0
    %p437 = por %p435, %p436
    %s439 = sadd.s32 %s438, 1
    %p442 = scmp.eq.s32.totalorder %s89, 1
    %p443 = scmp.ne.s32.totalorder %s438, %s440
    %p444 = scmp.eq.s32.totalorder %s89, 0
    %p445 = por %p443, %p444
    %p446 = scmp.ne.s32.totalorder %s438, %s440
    %p447 = scmp.eq.s32.totalorder %s94, 1
    %p448 = por %p446, %p447
    %p449 = scmp.ne.s32.totalorder %s440, %s441
    %p450 = scmp.eq.s32.totalorder %s94, 0
    %p451 = por %p449, %p450
    %p452 = scmp.ne.s32.totalorder %s440, %s441
    %p453 = scmp.eq.s32.totalorder %s95, 1
    %p454 = por %p452, %p453
    %p456 = scmp.ne.s32.totalorder %s441, %s455
    %p457 = scmp.eq.s32.totalorder %s95, 0
    %p458 = por %p456, %p457
    %s460 = sadd.s32 %s459, 1
    %p463 = scmp.eq.s32.totalorder %s89, 1
    %p464 = scmp.ne.s32.totalorder %s459, %s461
    %p465 = scmp.eq.s32.totalorder %s89, 0
    %p466 = por %p464, %p465
    %p467 = scmp.ne.s32.totalorder %s459, %s461
    %p468 = scmp.eq.s32.totalorder %s94, 1
    %p469 = por %p467, %p468
    %p470 = scmp.ne.s32.totalorder %s461, %s462
    %p471 = scmp.eq.s32.totalorder %s94, 0
    %p472 = por %p470, %p471
    %p473 = scmp.ne.s32.totalorder %s461, %s462
    %p474 = scmp.eq.s32.totalorder %s95, 1
    %p475 = por %p473, %p474
    %p477 = scmp.ne.s32.totalorder %s462, %s476
    %p478 = scmp.eq.s32.totalorder %s95, 0
    %p479 = por %p477, %p478
    %s481 = sadd.s32 %s480, 1
    %p484 = scmp.eq.s32.totalorder %s89, 1
    %p485 = scmp.ne.s32.totalorder %s480, %s482
    %p486 = scmp.eq.s32.totalorder %s89, 0
    %p487 = por %p485, %p486
    %p488 = scmp.ne.s32.totalorder %s480, %s482
    %p489 = scmp.eq.s32.totalorder %s94, 1
    %p490 = por %p488, %p489
    %p491 = scmp.ne.s32.totalorder %s482, %s483
    %p492 = scmp.eq.s32.totalorder %s94, 0
    %p493 = por %p491, %p492
    %p494 = scmp.ne.s32.totalorder %s482, %s483
    %p495 = scmp.eq.s32.totalorder %s95, 1
    %p496 = por %p494, %p495
    %p498 = scmp.ne.s32.totalorder %s483, %s497
    %p499 = scmp.eq.s32.totalorder %s95, 0
    %p500 = por %p498, %p499
    %s502 = sadd.s32 %s501, 1
    %p505 = scmp.eq.s32.totalorder %s89, 1
    %p506 = scmp.ne.s32.totalorder %s501, %s503
    %p507 = scmp.eq.s32.totalorder %s89, 0
    %p508 = por %p506, %p507
    %p509 = scmp.ne.s32.totalorder %s501, %s503
    %p510 = scmp.eq.s32.totalorder %s94, 1
    %p511 = por %p509, %p510
    %p512 = scmp.ne.s32.totalorder %s503, %s504
    %p513 = scmp.eq.s32.totalorder %s94, 0
    %p514 = por %p512, %p513
    %p515 = scmp.ne.s32.totalorder %s503, %s504
    %p516 = scmp.eq.s32.totalorder %s95, 1
    %p517 = por %p515, %p516
    %p519 = scmp.ne.s32.totalorder %s504, %s518
    %p520 = scmp.eq.s32.totalorder %s95, 0
    %p521 = por %p519, %p520
    %s523 = sadd.s32 %s522, 1
    %p526 = scmp.eq.s32.totalorder %s89, 1
    %p527 = scmp.ne.s32.totalorder %s522, %s524
    %p528 = scmp.eq.s32.totalorder %s89, 0
    %p529 = por %p527, %p528
    %p530 = scmp.ne.s32.totalorder %s522, %s524
    %p531 = scmp.eq.s32.totalorder %s94, 1
    %p532 = por %p530, %p531
    %p533 = scmp.ne.s32.totalorder %s524, %s525
    %p534 = scmp.eq.s32.totalorder %s94, 0
    %p535 = por %p533, %p534
    %p536 = scmp.ne.s32.totalorder %s524, %s525
    %p537 = scmp.eq.s32.totalorder %s95, 1
    %p538 = por %p536, %p537
    %p540 = scmp.ne.s32.totalorder %s525, %s539
    %p541 = scmp.eq.s32.totalorder %s95, 0
    %p542 = por %p540, %p541
    %s544 = sadd.s32 %s543, 1
    %p547 = scmp.eq.s32.totalorder %s89, 1
    %p548 = scmp.ne.s32.totalorder %s543, %s545
    %p549 = scmp.eq.s32.totalorder %s89, 0
    %p550 = por %p548, %p549
    %p551 = scmp.ne.s32.totalorder %s543, %s545
    %p552 = scmp.eq.s32.totalorder %s94, 1
    %p553 = por %p551, %p552
    %p554 = scmp.ne.s32.totalorder %s545, %s546
    %p555 = scmp.eq.s32.totalorder %s94, 0
    %p556 = por %p554, %p555
    %p557 = scmp.ne.s32.totalorder %s545, %s546
    %p558 = scmp.eq.s32.totalorder %s95, 1
    %p559 = por %p557, %p558
    %p561 = scmp.ne.s32.totalorder %s546, %s560
    %p562 = scmp.eq.s32.totalorder %s95, 0
    %p563 = por %p561, %p562
    %s565 = sadd.s32 %s564, 1
    %p568 = scmp.eq.s32.totalorder %s89, 1
    %p569 = scmp.ne.s32.totalorder %s564, %s566
    %p570 = scmp.eq.s32.totalorder %s89, 0
    %p571 = por %p569, %p570
    %p572 = scmp.ne.s32.totalorder %s564, %s566
    %p573 = scmp.eq.s32.totalorder %s94, 1
    %p574 = por %p572, %p573
    %p575 = scmp.ne.s32.totalorder %s566, %s567
    %p576 = scmp.eq.s32.totalorder %s94, 0
    %p577 = por %p575, %p576
    %p578 = scmp.ne.s32.totalorder %s566, %s567
    %p579 = scmp.eq.s32.totalorder %s95, 1
    %p580 = por %p578, %p579
    %p582 = scmp.ne.s32.totalorder %s567, %s581
    %p583 = scmp.eq.s32.totalorder %s95, 0
    %p584 = por %p582, %p583
    %s586 = sadd.s32 %s585, 1
    %p589 = scmp.eq.s32.totalorder %s89, 1
    %p590 = scmp.ne.s32.totalorder %s585, %s587
    %p591 = scmp.eq.s32.totalorder %s89, 0
    %p592 = por %p590, %p591
    %p593 = scmp.ne.s32.totalorder %s585, %s587
    %p594 = scmp.eq.s32.totalorder %s94, 1
    %p595 = por %p593, %p594
    %p596 = scmp.ne.s32.totalorder %s587, %s588
    %p597 = scmp.eq.s32.totalorder %s94, 0
    %p598 = por %p596, %p597
    %p599 = scmp.ne.s32.totalorder %s587, %s588
    %p600 = scmp.eq.s32.totalorder %s95, 1
    %p601 = por %p599, %p600
    %p603 = scmp.ne.s32.totalorder %s588, %s602
    %p604 = scmp.eq.s32.totalorder %s95, 0
    %p605 = por %p603, %p604
    %s607 = sadd.s32 %s606, 1
    %p610 = scmp.eq.s32.totalorder %s89, 1
    %p611 = scmp.ne.s32.totalorder %s606, %s608
    %p612 = scmp.eq.s32.totalorder %s89, 0
    %p613 = por %p611, %p612
    %p614 = scmp.ne.s32.totalorder %s606, %s608
    %p615 = scmp.eq.s32.totalorder %s94, 1
    %p616 = por %p614, %p615
    %p617 = scmp.ne.s32.totalorder %s608, %s609
    %p618 = scmp.eq.s32.totalorder %s94, 0
    %p619 = por %p617, %p618
    %p620 = scmp.ne.s32.totalorder %s608, %s609
    %p621 = scmp.eq.s32.totalorder %s95, 1
    %p622 = por %p620, %p621
    %p624 = scmp.ne.s32.totalorder %s609, %s623
    %p625 = scmp.eq.s32.totalorder %s95, 0
    %p626 = por %p624, %p625
    %s628 = sadd.s32 %s627, 1
    %p631 = scmp.eq.s32.totalorder %s89, 1
    %p632 = scmp.ne.s32.totalorder %s627, %s629
    %p633 = scmp.eq.s32.totalorder %s89, 0
    %p634 = por %p632, %p633
    %p635 = scmp.ne.s32.totalorder %s627, %s629
    %p636 = scmp.eq.s32.totalorder %s94, 1
    %p637 = por %p635, %p636
    %p638 = scmp.ne.s32.totalorder %s629, %s630
    %p639 = scmp.eq.s32.totalorder %s94, 0
    %p640 = por %p638, %p639
    %p641 = scmp.ne.s32.totalorder %s629, %s630
    %p642 = scmp.eq.s32.totalorder %s95, 1
    %p643 = por %p641, %p642
    %p645 = scmp.ne.s32.totalorder %s630, %s644
    %p646 = scmp.eq.s32.totalorder %s95, 0
    %p647 = por %p645, %p646
    %s649 = sadd.s32 %s648, 1
    %p652 = scmp.eq.s32.totalorder %s89, 1
    %p653 = scmp.ne.s32.totalorder %s648, %s650
    %p654 = scmp.eq.s32.totalorder %s89, 0
    %p655 = por %p653, %p654
    %p656 = scmp.ne.s32.totalorder %s648, %s650
    %p657 = scmp.eq.s32.totalorder %s94, 1
    %p658 = por %p656, %p657
    %p659 = scmp.ne.s32.totalorder %s650, %s651
    %p660 = scmp.eq.s32.totalorder %s94, 0
    %p661 = por %p659, %p660
    %p662 = scmp.ne.s32.totalorder %s650, %s651
    %p663 = scmp.eq.s32.totalorder %s95, 1
    %p664 = por %p662, %p663
    %p666 = scmp.ne.s32.totalorder %s651, %s665
    %p667 = scmp.eq.s32.totalorder %s95, 0
    %p668 = por %p666, %p667
    %s670 = sadd.s32 %s669, 1
    %p673 = scmp.eq.s32.totalorder %s89, 1
    %p674 = scmp.ne.s32.totalorder %s669, %s671
    %p675 = scmp.eq.s32.totalorder %s89, 0
    %p676 = por %p674, %p675
    %p677 = scmp.ne.s32.totalorder %s669, %s671
    %p678 = scmp.eq.s32.totalorder %s94, 1
    %p679 = por %p677, %p678
    %p680 = scmp.ne.s32.totalorder %s671, %s672
    %p681 = scmp.eq.s32.totalorder %s94, 0
    %p682 = por %p680, %p681
    %p683 = scmp.ne.s32.totalorder %s671, %s672
    %p684 = scmp.eq.s32.totalorder %s95, 1
    %p685 = por %p683, %p684
    %p687 = scmp.ne.s32.totalorder %s672, %s686
    %p688 = scmp.eq.s32.totalorder %s95, 0
    %p689 = por %p687, %p688
    %s691 = sadd.s32 %s690, 1
    %p694 = scmp.eq.s32.totalorder %s89, 1
    %p695 = scmp.ne.s32.totalorder %s690, %s692
    %p696 = scmp.eq.s32.totalorder %s89, 0
    %p697 = por %p695, %p696
    %p698 = scmp.ne.s32.totalorder %s690, %s692
    %p699 = scmp.eq.s32.totalorder %s94, 1
    %p700 = por %p698, %p699
    %p701 = scmp.ne.s32.totalorder %s692, %s693
    %p702 = scmp.eq.s32.totalorder %s94, 0
    %p703 = por %p701, %p702
    %p704 = scmp.ne.s32.totalorder %s692, %s693
    %p705 = scmp.eq.s32.totalorder %s95, 1
    %p706 = por %p704, %p705
    %p708 = scmp.ne.s32.totalorder %s693, %s707
    %p709 = scmp.eq.s32.totalorder %s95, 0
    %p710 = por %p708, %p709
    %s712 = sadd.s32 %s711, 1
    %p715 = scmp.eq.s32.totalorder %s89, 1
    %p716 = scmp.ne.s32.totalorder %s711, %s713
    %p717 = scmp.eq.s32.totalorder %s89, 0
    %p718 = por %p716, %p717
    %p719 = scmp.ne.s32.totalorder %s711, %s713
    %p720 = scmp.eq.s32.totalorder %s94, 1
    %p721 = por %p719, %p720
    %p722 = scmp.ne.s32.totalorder %s713, %s714
    %p723 = scmp.eq.s32.totalorder %s94, 0
    %p724 = por %p722, %p723
    %p725 = scmp.ne.s32.totalorder %s713, %s714
    %p726 = scmp.eq.s32.totalorder %s95, 1
    %p727 = por %p725, %p726
    %p729 = scmp.ne.s32.totalorder %s714, %s728
    %p730 = scmp.eq.s32.totalorder %s95, 0
    %p731 = por %p729, %p730
    %s733 = sadd.s32 %s732, 1
    %p736 = scmp.eq.s32.totalorder %s89, 1
    %p737 = scmp.ne.s32.totalorder %s732, %s734
    %p738 = scmp.eq.s32.totalorder %s89, 0
    %p739 = por %p737, %p738
    %p740 = scmp.ne.s32.totalorder %s732, %s734
    %p741 = scmp.eq.s32.totalorder %s94, 1
    %p742 = por %p740, %p741
    %p743 = scmp.ne.s32.totalorder %s734, %s735
    %p744 = scmp.eq.s32.totalorder %s94, 0
    %p745 = por %p743, %p744
    %p746 = scmp.ne.s32.totalorder %s734, %s735
    %p747 = scmp.eq.s32.totalorder %s95, 1
    %p748 = por %p746, %p747
    %p750 = scmp.ne.s32.totalorder %s735, %s749
    %p751 = scmp.eq.s32.totalorder %s95, 0
    %p752 = por %p750, %p751
    %s754 = sadd.s32 %s753, 1
    %p757 = scmp.eq.s32.totalorder %s89, 1
    %p758 = scmp.ne.s32.totalorder %s753, %s755
    %p759 = scmp.eq.s32.totalorder %s89, 0
    %p760 = por %p758, %p759
    %p761 = scmp.ne.s32.totalorder %s753, %s755
    %p762 = scmp.eq.s32.totalorder %s94, 1
    %p763 = por %p761, %p762
    %p764 = scmp.ne.s32.totalorder %s755, %s756
    %p765 = scmp.eq.s32.totalorder %s94, 0
    %p766 = por %p764, %p765
    %p767 = scmp.ne.s32.totalorder %s755, %s756
    %p768 = scmp.eq.s32.totalorder %s95, 1
    %p769 = por %p767, %p768
    %p771 = scmp.ne.s32.totalorder %s756, %s770
    %p772 = scmp.eq.s32.totalorder %s95, 0
    %p773 = por %p771, %p772
    %s775 = sadd.s32 %s774, 1
    %p778 = scmp.eq.s32.totalorder %s89, 1
    %p779 = scmp.ne.s32.totalorder %s774, %s776
    %p780 = scmp.eq.s32.totalorder %s89, 0
    %p781 = por %p779, %p780
    %p782 = scmp.ne.s32.totalorder %s774, %s776
    %p783 = scmp.eq.s32.totalorder %s94, 1
    %p784 = por %p782, %p783
    %p785 = scmp.ne.s32.totalorder %s776, %s777
    %p786 = scmp.eq.s32.totalorder %s94, 0
    %p787 = por %p785, %p786
    %p788 = scmp.ne.s32.totalorder %s776, %s777
    %p789 = scmp.eq.s32.totalorder %s95, 1
    %p790 = por %p788, %p789
    %p792 = scmp.ne.s32.totalorder %s777, %s791
    %p793 = scmp.eq.s32.totalorder %s95, 0
    %p794 = por %p792, %p793
    %s796 = sadd.s32 %s795, 1
    %p799 = scmp.eq.s32.totalorder %s89, 1
    %p800 = scmp.ne.s32.totalorder %s795, %s797
    %p801 = scmp.eq.s32.totalorder %s89, 0
    %p802 = por %p800, %p801
    %p803 = scmp.ne.s32.totalorder %s795, %s797
    %p804 = scmp.eq.s32.totalorder %s94, 1
    %p805 = por %p803, %p804
    %p806 = scmp.ne.s32.totalorder %s797, %s798
    %p807 = scmp.eq.s32.totalorder %s94, 0
    %p808 = por %p806, %p807
    %p809 = scmp.ne.s32.totalorder %s797, %s798
    %p810 = scmp.eq.s32.totalorder %s95, 1
    %p811 = por %p809, %p810
    %p813 = scmp.ne.s32.totalorder %s798, %s812
    %p814 = scmp.eq.s32.totalorder %s95, 0
    %p815 = por %p813, %p814
    %s817 = sadd.s32 %s816, 1
    %p820 = scmp.eq.s32.totalorder %s89, 1
    %p821 = scmp.ne.s32.totalorder %s816, %s818
    %p822 = scmp.eq.s32.totalorder %s89, 0
    %p823 = por %p821, %p822
    %p824 = scmp.ne.s32.totalorder %s816, %s818
    %p825 = scmp.eq.s32.totalorder %s94, 1
    %p826 = por %p824, %p825
    %p827 = scmp.ne.s32.totalorder %s818, %s819
    %p828 = scmp.eq.s32.totalorder %s94, 0
    %p829 = por %p827, %p828
    %p830 = scmp.ne.s32.totalorder %s818, %s819
    %p831 = scmp.eq.s32.totalorder %s95, 1
    %p832 = por %p830, %p831
    %p834 = scmp.ne.s32.totalorder %s819, %s833
    %p835 = scmp.eq.s32.totalorder %s95, 0
    %p836 = por %p834, %p835
    %s838 = sadd.s32 %s837, 1
    %p841 = scmp.eq.s32.totalorder %s89, 1
    %p842 = scmp.ne.s32.totalorder %s837, %s839
    %p843 = scmp.eq.s32.totalorder %s89, 0
    %p844 = por %p842, %p843
    %p845 = scmp.ne.s32.totalorder %s837, %s839
    %p846 = scmp.eq.s32.totalorder %s94, 1
    %p847 = por %p845, %p846
    %p848 = scmp.ne.s32.totalorder %s839, %s840
    %p849 = scmp.eq.s32.totalorder %s94, 0
    %p850 = por %p848, %p849
    %p851 = scmp.ne.s32.totalorder %s839, %s840
    %p852 = scmp.eq.s32.totalorder %s95, 1
    %p853 = por %p851, %p852
    %p855 = scmp.ne.s32.totalorder %s840, %s854
    %p856 = scmp.eq.s32.totalorder %s95, 0
    %p857 = por %p855, %p856
    %s859 = sadd.s32 %s858, 1
    %p862 = scmp.eq.s32.totalorder %s89, 1
    %p863 = scmp.ne.s32.totalorder %s858, %s860
    %p864 = scmp.eq.s32.totalorder %s89, 0
    %p865 = por %p863, %p864
    %p866 = scmp.ne.s32.totalorder %s858, %s860
    %p867 = scmp.eq.s32.totalorder %s94, 1
    %p868 = por %p866, %p867
    %p869 = scmp.ne.s32.totalorder %s860, %s861
    %p870 = scmp.eq.s32.totalorder %s94, 0
    %p871 = por %p869, %p870
    %p872 = scmp.ne.s32.totalorder %s860, %s861
    %p873 = scmp.eq.s32.totalorder %s95, 1
    %p874 = por %p872, %p873
    %p876 = scmp.ne.s32.totalorder %s861, %s875
    %p877 = scmp.eq.s32.totalorder %s95, 0
    %p878 = por %p876, %p877
    %s880 = sadd.s32 %s879, 1
    %p883 = scmp.eq.s32.totalorder %s89, 1
    %p884 = scmp.ne.s32.totalorder %s879, %s881
    %p885 = scmp.eq.s32.totalorder %s89, 0
    %p886 = por %p884, %p885
    %p887 = scmp.ne.s32.totalorder %s879, %s881
    %p888 = scmp.eq.s32.totalorder %s94, 1
    %p889 = por %p887, %p888
    %p890 = scmp.ne.s32.totalorder %s881, %s882
    %p891 = scmp.eq.s32.totalorder %s94, 0
    %p892 = por %p890, %p891
    %p893 = scmp.ne.s32.totalorder %s881, %s882
    %p894 = scmp.eq.s32.totalorder %s95, 1
    %p895 = por %p893, %p894
    %p897 = scmp.ne.s32.totalorder %s882, %s896
    %p898 = scmp.eq.s32.totalorder %s95, 0
    %p899 = por %p897, %p898
    %s901 = sadd.s32 %s900, 1
    %p904 = scmp.eq.s32.totalorder %s89, 1
    %p905 = scmp.ne.s32.totalorder %s900, %s902
    %p906 = scmp.eq.s32.totalorder %s89, 0
    %p907 = por %p905, %p906
    %p908 = scmp.ne.s32.totalorder %s900, %s902
    %p909 = scmp.eq.s32.totalorder %s94, 1
    %p910 = por %p908, %p909
    %p911 = scmp.ne.s32.totalorder %s902, %s903
    %p912 = scmp.eq.s32.totalorder %s94, 0
    %p913 = por %p911, %p912
    %p914 = scmp.ne.s32.totalorder %s902, %s903
    %p915 = scmp.eq.s32.totalorder %s95, 1
    %p916 = por %p914, %p915
    %p918 = scmp.ne.s32.totalorder %s903, %s917
    %p919 = scmp.eq.s32.totalorder %s95, 0
    %p920 = por %p918, %p919
    %s922 = sadd.s32 %s921, 1
    %p925 = scmp.eq.s32.totalorder %s89, 1
    %p926 = scmp.ne.s32.totalorder %s921, %s923
    %p927 = scmp.eq.s32.totalorder %s89, 0
    %p928 = por %p926, %p927
    %p929 = scmp.ne.s32.totalorder %s921, %s923
    %p930 = scmp.eq.s32.totalorder %s94, 1
    %p931 = por %p929, %p930
    %p932 = scmp.ne.s32.totalorder %s923, %s924
    %p933 = scmp.eq.s32.totalorder %s94, 0
    %p934 = por %p932, %p933
    %p935 = scmp.ne.s32.totalorder %s923, %s924
    %p936 = scmp.eq.s32.totalorder %s95, 1
    %p937 = por %p935, %p936
    %p939 = scmp.ne.s32.totalorder %s924, %s938
    %p940 = scmp.eq.s32.totalorder %s95, 0
    %p941 = por %p939, %p940
    %s943 = sadd.s32 %s942, 1
    %p946 = scmp.eq.s32.totalorder %s89, 1
    %p947 = scmp.ne.s32.totalorder %s942, %s944
    %p948 = scmp.eq.s32.totalorder %s89, 0
    %p949 = por %p947, %p948
    %p950 = scmp.ne.s32.totalorder %s942, %s944
    %p951 = scmp.eq.s32.totalorder %s94, 1
    %p952 = por %p950, %p951
    %p953 = scmp.ne.s32.totalorder %s944, %s945
    %p954 = scmp.eq.s32.totalorder %s94, 0
    %p955 = por %p953, %p954
    %p956 = scmp.ne.s32.totalorder %s944, %s945
    %p957 = scmp.eq.s32.totalorder %s95, 1
    %p958 = por %p956, %p957
    %p960 = scmp.ne.s32.totalorder %s945, %s959
    %p961 = scmp.eq.s32.totalorder %s95, 0
    %p962 = por %p960, %p961
    %s963 = ssub.s32 %s89, %s96
    %p964 = scmp.eq.s32.totalorder %s963, 0
    %s966 = sadd.s32 %s965, 1
    %s967 = scalar_select %p964, %s965, %s966
    %p970 = pneg %p964
    %p971 = scmp.eq.s32.totalorder %s89, 1
    %p972 = por %p970, %p971
    %p973 = scmp.ne.s32.totalorder %s965, %s968
    %p974 = scmp.eq.s32.totalorder %s89, 0
    %p975 = por %p973, %p974
    %p976 = scmp.ne.s32.totalorder %s965, %s968
    %p977 = scmp.eq.s32.totalorder %s94, 1
    %p978 = por %p976, %p977
    %p979 = scmp.ne.s32.totalorder %s968, %s969
    %p980 = scmp.eq.s32.totalorder %s94, 0
    %p981 = por %p979, %p980
    %p982 = scmp.ne.s32.totalorder %s968, %s969
    %p983 = scmp.eq.s32.totalorder %s95, 1
    %p984 = por %p982, %p983
    %p986 = scmp.ne.s32.totalorder %s969, %s985
    %p987 = scmp.eq.s32.totalorder %s95, 0
    %p988 = por %p986, %p987
    %p989 = scmp.le.s32.totalorder 1, %s89
    %p990 = scmp.lt.s32.totalorder %s89, 3
    %p991 = pnand %p989, %p990
    %p992 = pneg %p991
    // Predicated region
    $region9: #{tpu_custom_call.1} parent=5 // pred_check
      _
    $region10: #{tpu_custom_call.1} parent=5 // pred_check_branch
      %994 = sbr.rel (%p991) target = $region12
    $region11: #{tpu_custom_call.1} parent=5 // pred_region
      %s995 = ssub.s32 %s89, 1
      // Predicated region
      $region13: #{tpu_custom_call.1} parent=11 // pred_check
        %p996 = pneg %p136
      $region14: #{tpu_custom_call.1} parent=11 // pred_check_branch
        %998 = sbr.rel (%p996) target = $region16
      $region15: #{tpu_custom_call.1} parent=11 // pred_region
        _
      $region16: #{tpu_custom_call.1} parent=11 // pred_fallthru
        _
      // Predicated region
      $region17: #{tpu_custom_call.1} parent=11 // pred_check
        %p999 = pneg %p157
      $region18: #{tpu_custom_call.1} parent=11 // pred_check_branch
        %1001 = sbr.rel (%p999) target = $region20
      $region19: #{tpu_custom_call.1} parent=11 // pred_region
        _
      $region20: #{tpu_custom_call.1} parent=11 // pred_fallthru
        _
      // Predicated region
      $region21: #{tpu_custom_call.1} parent=11 // pred_check
        %p1002 = pneg %p178
      $region22: #{tpu_custom_call.1} parent=11 // pred_check_branch
        %1004 = sbr.rel (%p1002) target = $region24
      $region23: #{tpu_custom_call.1} parent=11 // pred_region
        _
      $region24: #{tpu_custom_call.1} parent=11 // pred_fallthru
        _
      // Predicated region
      $region25: #{tpu_custom_call.1} parent=11 // pred_check
        %p1005 = pneg %p199
      $region26: #{tpu_custom_call.1} parent=11 // pred_check_branch
        %1007 = sbr.rel (%p1005) target = $region28
      $region27: #{tpu_custom_call.1} parent=11 // pred_region
        _
      $region28: #{tpu_custom_call.1} parent=11 // pred_fallthru
        _
      // Predicated region
      $region29: #{tpu_custom_call.1} parent=11 // pred_check
        %p1008 = pneg %p220
      $region30: #{tpu_custom_call.1} parent=11 // pred_check_branch
        %1010 = sbr.rel (%p1008) target = $region32
      $region31: #{tpu_custom_call.1} parent=11 // pred_region
        _
      $region32: #{tpu_custom_call.1} parent=11 // pred_fallthru
        _
      // Predicated region
      $region33: #{tpu_custom_call.1} parent=11 // pred_check
        %p1011 = pneg %p241
      $region34: #{tpu_custom_call.1} parent=11 // pred_check_branch
        %1013 = sbr.rel (%p1011) target = $region36
      $region35: #{tpu_custom_call.1} parent=11 // pred_region
        _
      $region36: #{tpu_custom_call.1} parent=11 // pred_fallthru
        _
      // Predicated region
      $region37: #{tpu_custom_call.1} parent=11 // pred_check
        %p1014 = pneg %p262
      $region38: #{tpu_custom_call.1} parent=11 // pred_check_branch
        %1016 = sbr.rel (%p1014) target = $region40
      $region39: #{tpu_custom_call.1} parent=11 // pred_region
        _
      $region40: #{tpu_custom_call.1} parent=11 // pred_fallthru
        _
      // Predicated region
      $region41: #{tpu_custom_call.1} parent=11 // pred_check
        %p1017 = pneg %p283
      $region42: #{tpu_custom_call.1} parent=11 // pred_check_branch
        %1019 = sbr.rel (%p1017) target = $region44
      $region43: #{tpu_custom_call.1} parent=11 // pred_region
        _
      $region44: #{tpu_custom_call.1} parent=11 // pred_fallthru
        _
      // Predicated region
      $region45: #{tpu_custom_call.1} parent=11 // pred_check
        %p1020 = pneg %p304
      $region46: #{tpu_custom_call.1} parent=11 // pred_check_branch
        %1022 = sbr.rel (%p1020) target = $region48
      $region47: #{tpu_custom_call.1} parent=11 // pred_region
        _
      $region48: #{tpu_custom_call.1} parent=11 // pred_fallthru
        _
      // Predicated region
      $region49: #{tpu_custom_call.1} parent=11 // pred_check
        %p1023 = pneg %p325
      $region50: #{tpu_custom_call.1} parent=11 // pred_check_branch
        %1025 = sbr.rel (%p1023) target = $region52
      $region51: #{tpu_custom_call.1} parent=11 // pred_region
        _
      $region52: #{tpu_custom_call.1} parent=11 // pred_fallthru
        _
      // Predicated region
      $region53: #{tpu_custom_call.1} parent=11 // pred_check
        %p1026 = pneg %p346
      $region54: #{tpu_custom_call.1} parent=11 // pred_check_branch
        %1028 = sbr.rel (%p1026) target = $region56
      $region55: #{tpu_custom_call.1} parent=11 // pred_region
        _
      $region56: #{tpu_custom_call.1} parent=11 // pred_fallthru
        _
      // Predicated region
      $region57: #{tpu_custom_call.1} parent=11 // pred_check
        %p1029 = pneg %p367
      $region58: #{tpu_custom_call.1} parent=11 // pred_check_branch
        %1031 = sbr.rel (%p1029) target = $region60
      $region59: #{tpu_custom_call.1} parent=11 // pred_region
        _
      $region60: #{tpu_custom_call.1} parent=11 // pred_fallthru
        _
      // Predicated region
      $region61: #{tpu_custom_call.1} parent=11 // pred_check
        %p1032 = pneg %p388
      $region62: #{tpu_custom_call.1} parent=11 // pred_check_branch
        %1034 = sbr.rel (%p1032) target = $region64
      $region63: #{tpu_custom_call.1} parent=11 // pred_region
        _
      $region64: #{tpu_custom_call.1} parent=11 // pred_fallthru
        _
      // Predicated region
      $region65: #{tpu_custom_call.1} parent=11 // pred_check
        %p1035 = pneg %p409
      $region66: #{tpu_custom_call.1} parent=11 // pred_check_branch
        %1037 = sbr.rel (%p1035) target = $region68
      $region67: #{tpu_custom_call.1} parent=11 // pred_region
        _
      $region68: #{tpu_custom_call.1} parent=11 // pred_fallthru
        _
      // Predicated region
      $region69: #{tpu_custom_call.1} parent=11 // pred_check
        %p1038 = pneg %p430
      $region70: #{tpu_custom_call.1} parent=11 // pred_check_branch
        %1040 = sbr.rel (%p1038) target = $region72
      $region71: #{tpu_custom_call.1} parent=11 // pred_region
        _
      $region72: #{tpu_custom_call.1} parent=11 // pred_fallthru
        _
      // Predicated region
      $region73: #{tpu_custom_call.1} parent=11 // pred_check
        %p1041 = pneg %p451
      $region74: #{tpu_custom_call.1} parent=11 // pred_check_branch
        %1043 = sbr.rel (%p1041) target = $region76
      $region75: #{tpu_custom_call.1} parent=11 // pred_region
        _
      $region76: #{tpu_custom_call.1} parent=11 // pred_fallthru
        _
      // Predicated region
      $region77: #{tpu_custom_call.1} parent=11 // pred_check
        %p1044 = pneg %p472
      $region78: #{tpu_custom_call.1} parent=11 // pred_check_branch
        %1046 = sbr.rel (%p1044) target = $region80
      $region79: #{tpu_custom_call.1} parent=11 // pred_region
        _
      $region80: #{tpu_custom_call.1} parent=11 // pred_fallthru
        _
      // Predicated region
      $region81: #{tpu_custom_call.1} parent=11 // pred_check
        %p1047 = pneg %p493
      $region82: #{tpu_custom_call.1} parent=11 // pred_check_branch
        %1049 = sbr.rel (%p1047) target = $region84
      $region83: #{tpu_custom_call.1} parent=11 // pred_region
        _
      $region84: #{tpu_custom_call.1} parent=11 // pred_fallthru
        _
      // Predicated region
      $region85: #{tpu_custom_call.1} parent=11 // pred_check
        %p1050 = pneg %p514
      $region86: #{tpu_custom_call.1} parent=11 // pred_check_branch
        %1052 = sbr.rel (%p1050) target = $region88
      $region87: #{tpu_custom_call.1} parent=11 // pred_region
        _
      $region88: #{tpu_custom_call.1} parent=11 // pred_fallthru
        _
      // Predicated region
      $region89: #{tpu_custom_call.1} parent=11 // pred_check
        %p1053 = pneg %p535
      $region90: #{tpu_custom_call.1} parent=11 // pred_check_branch
        %1055 = sbr.rel (%p1053) target = $region92
      $region91: #{tpu_custom_call.1} parent=11 // pred_region
        _
      $region92: #{tpu_custom_call.1} parent=11 // pred_fallthru
        _
      // Predicated region
      $region93: #{tpu_custom_call.1} parent=11 // pred_check
        %p1056 = pneg %p556
      $region94: #{tpu_custom_call.1} parent=11 // pred_check_branch
        %1058 = sbr.rel (%p1056) target = $region96
      $region95: #{tpu_custom_call.1} parent=11 // pred_region
        _
      $region96: #{tpu_custom_call.1} parent=11 // pred_fallthru
        _
      // Predicated region
      $region97: #{tpu_custom_call.1} parent=11 // pred_check
        %p1059 = pneg %p577
      $region98: #{tpu_custom_call.1} parent=11 // pred_check_branch
        %1061 = sbr.rel (%p1059) target = $region100
      $region99: #{tpu_custom_call.1} parent=11 // pred_region
        _
      $region100: #{tpu_custom_call.1} parent=11 // pred_fallthru
        _
      // Predicated region
      $region101: #{tpu_custom_call.1} parent=11 // pred_check
        %p1062 = pneg %p598
      $region102: #{tpu_custom_call.1} parent=11 // pred_check_branch
        %1064 = sbr.rel (%p1062) target = $region104
      $region103: #{tpu_custom_call.1} parent=11 // pred_region
        _
      $region104: #{tpu_custom_call.1} parent=11 // pred_fallthru
        _
      // Predicated region
      $region105: #{tpu_custom_call.1} parent=11 // pred_check
        %p1065 = pneg %p619
      $region106: #{tpu_custom_call.1} parent=11 // pred_check_branch
        %1067 = sbr.rel (%p1065) target = $region108
      $region107: #{tpu_custom_call.1} parent=11 // pred_region
        _
      $region108: #{tpu_custom_call.1} parent=11 // pred_fallthru
        _
      // Predicated region
      $region109: #{tpu_custom_call.1} parent=11 // pred_check
        %p1068 = pneg %p640
      $region110: #{tpu_custom_call.1} parent=11 // pred_check_branch
        %1070 = sbr.rel (%p1068) target = $region112
      $region111: #{tpu_custom_call.1} parent=11 // pred_region
        _
      $region112: #{tpu_custom_call.1} parent=11 // pred_fallthru
        _
      // Predicated region
      $region113: #{tpu_custom_call.1} parent=11 // pred_check
        %p1071 = pneg %p661
      $region114: #{tpu_custom_call.1} parent=11 // pred_check_branch
        %1073 = sbr.rel (%p1071) target = $region116
      $region115: #{tpu_custom_call.1} parent=11 // pred_region
        _
      $region116: #{tpu_custom_call.1} parent=11 // pred_fallthru
        _
      // Predicated region
      $region117: #{tpu_custom_call.1} parent=11 // pred_check
        %p1074 = pneg %p682
      $region118: #{tpu_custom_call.1} parent=11 // pred_check_branch
        %1076 = sbr.rel (%p1074) target = $region120
      $region119: #{tpu_custom_call.1} parent=11 // pred_region
        _
      $region120: #{tpu_custom_call.1} parent=11 // pred_fallthru
        _
      // Predicated region
      $region121: #{tpu_custom_call.1} parent=11 // pred_check
        %p1077 = pneg %p703
      $region122: #{tpu_custom_call.1} parent=11 // pred_check_branch
        %1079 = sbr.rel (%p1077) target = $region124
      $region123: #{tpu_custom_call.1} parent=11 // pred_region
        _
      $region124: #{tpu_custom_call.1} parent=11 // pred_fallthru
        _
      // Predicated region
      $region125: #{tpu_custom_call.1} parent=11 // pred_check
        %p1080 = pneg %p724
      $region126: #{tpu_custom_call.1} parent=11 // pred_check_branch
        %1082 = sbr.rel (%p1080) target = $region128
      $region127: #{tpu_custom_call.1} parent=11 // pred_region
        _
      $region128: #{tpu_custom_call.1} parent=11 // pred_fallthru
        _
      // Predicated region
      $region129: #{tpu_custom_call.1} parent=11 // pred_check
        %p1083 = pneg %p745
      $region130: #{tpu_custom_call.1} parent=11 // pred_check_branch
        %1085 = sbr.rel (%p1083) target = $region132
      $region131: #{tpu_custom_call.1} parent=11 // pred_region
        _
      $region132: #{tpu_custom_call.1} parent=11 // pred_fallthru
        _
      // Predicated region
      $region133: #{tpu_custom_call.1} parent=11 // pred_check
        %p1086 = pneg %p766
      $region134: #{tpu_custom_call.1} parent=11 // pred_check_branch
        %1088 = sbr.rel (%p1086) target = $region136
      $region135: #{tpu_custom_call.1} parent=11 // pred_region
        _
      $region136: #{tpu_custom_call.1} parent=11 // pred_fallthru
        _
      // Predicated region
      $region137: #{tpu_custom_call.1} parent=11 // pred_check
        %p1089 = pneg %p787
      $region138: #{tpu_custom_call.1} parent=11 // pred_check_branch
        %1091 = sbr.rel (%p1089) target = $region140
      $region139: #{tpu_custom_call.1} parent=11 // pred_region
        _
      $region140: #{tpu_custom_call.1} parent=11 // pred_fallthru
        _
      // Predicated region
      $region141: #{tpu_custom_call.1} parent=11 // pred_check
        %p1092 = pneg %p808
      $region142: #{tpu_custom_call.1} parent=11 // pred_check_branch
        %1094 = sbr.rel (%p1092) target = $region144
      $region143: #{tpu_custom_call.1} parent=11 // pred_region
        _
      $region144: #{tpu_custom_call.1} parent=11 // pred_fallthru
        _
      // Predicated region
      $region145: #{tpu_custom_call.1} parent=11 // pred_check
        %p1095 = pneg %p829
      $region146: #{tpu_custom_call.1} parent=11 // pred_check_branch
        %1097 = sbr.rel (%p1095) target = $region148
      $region147: #{tpu_custom_call.1} parent=11 // pred_region
        _
      $region148: #{tpu_custom_call.1} parent=11 // pred_fallthru
        _
      // Predicated region
      $region149: #{tpu_custom_call.1} parent=11 // pred_check
        %p1098 = pneg %p850
      $region150: #{tpu_custom_call.1} parent=11 // pred_check_branch
        %1100 = sbr.rel (%p1098) target = $region152
      $region151: #{tpu_custom_call.1} parent=11 // pred_region
        _
      $region152: #{tpu_custom_call.1} parent=11 // pred_fallthru
        _
      // Predicated region
      $region153: #{tpu_custom_call.1} parent=11 // pred_check
        %p1101 = pneg %p871
      $region154: #{tpu_custom_call.1} parent=11 // pred_check_branch
        %1103 = sbr.rel (%p1101) target = $region156
      $region155: #{tpu_custom_call.1} parent=11 // pred_region
        _
      $region156: #{tpu_custom_call.1} parent=11 // pred_fallthru
        _
      // Predicated region
      $region157: #{tpu_custom_call.1} parent=11 // pred_check
        %p1104 = pneg %p892
      $region158: #{tpu_custom_call.1} parent=11 // pred_check_branch
        %1106 = sbr.rel (%p1104) target = $region160
      $region159: #{tpu_custom_call.1} parent=11 // pred_region
        _
      $region160: #{tpu_custom_call.1} parent=11 // pred_fallthru
        _
      // Predicated region
      $region161: #{tpu_custom_call.1} parent=11 // pred_check
        %p1107 = pneg %p913
      $region162: #{tpu_custom_call.1} parent=11 // pred_check_branch
        %1109 = sbr.rel (%p1107) target = $region164
      $region163: #{tpu_custom_call.1} parent=11 // pred_region
        _
      $region164: #{tpu_custom_call.1} parent=11 // pred_fallthru
        _
      // Predicated region
      $region165: #{tpu_custom_call.1} parent=11 // pred_check
        %p1110 = pneg %p934
      $region166: #{tpu_custom_call.1} parent=11 // pred_check_branch
        %1112 = sbr.rel (%p1110) target = $region168
      $region167: #{tpu_custom_call.1} parent=11 // pred_region
        _
      $region168: #{tpu_custom_call.1} parent=11 // pred_fallthru
        _
      // Predicated region
      $region169: #{tpu_custom_call.1} parent=11 // pred_check
        %p1113 = pneg %p955
      $region170: #{tpu_custom_call.1} parent=11 // pred_check_branch
        %1115 = sbr.rel (%p1113) target = $region172
      $region171: #{tpu_custom_call.1} parent=11 // pred_region
        _
      $region172: #{tpu_custom_call.1} parent=11 // pred_fallthru
        _
    $region12: #{tpu_custom_call.1} parent=5 // pred_fallthru
      _
    %p1116 = scmp.lt.s32.totalorder %s89, 2
    // Predicated region
    $region173: #{tpu_custom_call.1} parent=5 // pred_check
      %p1117 = pneg %p1116
    $region174: #{tpu_custom_call.1} parent=5 // pred_check_branch
      %1119 = sbr.rel (%p1117) target = $region176
    $region175: #{tpu_custom_call.1} parent=5 // pred_region
      // Predicated region
      $region177: #{tpu_custom_call.1} parent=175 // pred_check
        %p1120 = pneg %p109
      $region178: #{tpu_custom_call.1} parent=175 // pred_check_branch
        %1122 = sbr.rel (%p1120) target = $region180
      $region179: #{tpu_custom_call.1} parent=175 // pred_region
        %p1123 = scmp.lt.s32.totalorder %s89, 1
        %s1124 = scalar_select %p1123, %s89, 1
        %s1125 = smul.addr %s1124, 6
        %s1126 = smul.addr %s1125, 8
        %s1127 = scalar_lea.vmem %s1, %s1126
      $region180: #{tpu_custom_call.1} parent=175 // pred_fallthru
        _
    $region176: #{tpu_custom_call.1} parent=5 // pred_fallthru
      _
    %p1128 = scmp.le.s32.totalorder 1, %s89
    %p1129 = scmp.lt.s32.totalorder %s89, 3
    %p1130 = pnand %p1128, %p1129
    %p1131 = pneg %p1130
    // Predicated region
    $region181: #{tpu_custom_call.1} parent=5 // pred_check
      _
    $region182: #{tpu_custom_call.1} parent=5 // pred_check_branch
      %1133 = sbr.rel (%p1130) target = $region184
    $region183: #{tpu_custom_call.1} parent=5 // pred_region
      %s1134 = ssub.s32 %s89, 1
      %p1135 = scmp.lt.s32.totalorder %s94, 1
      %s1136 = scalar_select %p1135, %s94, 1
      %s1137 = smul.addr %s1136, 6
      %s1138 = smul.addr %s1137, 8
      %s1139 = scalar_lea.vmem %s1, %s1138
      %p1140 = pneg %p115
      %p1141 = pneg %p112
      %p1142 = pneg %p136
      %p1143 = pneg %p133
      %p1144 = pneg %p157
      %p1145 = pneg %p154
      %p1146 = pneg %p178
      %p1147 = pneg %p175
      %p1148 = pneg %p199
      %p1149 = pneg %p196
      %p1150 = pneg %p220
      %p1151 = pneg %p217
      %p1152 = pneg %p241
      %p1153 = pneg %p238
      %p1154 = pneg %p262
      %p1155 = pneg %p259
      %p1156 = pneg %p283
      %p1157 = pneg %p280
      %p1158 = pneg %p304
      %p1159 = pneg %p301
      %p1160 = pneg %p325
      %p1161 = pneg %p322
      %p1162 = pneg %p346
      %p1163 = pneg %p343
      %p1164 = pneg %p367
      %p1165 = pneg %p364
      %p1166 = pneg %p388
      %p1167 = pneg %p385
      %p1168 = pneg %p409
      %p1169 = pneg %p406
      %p1170 = pneg %p430
      %p1171 = pneg %p427
      %p1172 = pneg %p451
      %p1173 = pneg %p448
      %p1174 = pneg %p472
      %p1175 = pneg %p469
      %p1176 = pneg %p493
      %p1177 = pneg %p490
      %p1178 = pneg %p514
      %p1179 = pneg %p511
      %p1180 = pneg %p535
      %p1181 = pneg %p532
      %p1182 = pneg %p556
      %p1183 = pneg %p553
      %p1184 = pneg %p577
      %p1185 = pneg %p574
      %p1186 = pneg %p598
      %p1187 = pneg %p595
      %p1188 = pneg %p619
      %p1189 = pneg %p616
      %p1190 = pneg %p640
      %p1191 = pneg %p637
      %p1192 = pneg %p661
      %p1193 = pneg %p658
      %p1194 = pneg %p682
      %p1195 = pneg %p679
      %p1196 = pneg %p703
      %p1197 = pneg %p700
      %p1198 = pneg %p724
      %p1199 = pneg %p721
      %p1200 = pneg %p745
      %p1201 = pneg %p742
      %p1202 = pneg %p766
      %p1203 = pneg %p763
      %p1204 = pneg %p787
      %p1205 = pneg %p784
      %p1206 = pneg %p808
      %p1207 = pneg %p805
      %p1208 = pneg %p829
      %p1209 = pneg %p826
      %p1210 = pneg %p850
      %p1211 = pneg %p847
      %p1212 = pneg %p871
      %p1213 = pneg %p868
      %p1214 = pneg %p892
      %p1215 = pneg %p889
      %p1216 = pneg %p913
      %p1217 = pneg %p910
      %p1218 = pneg %p934
      %p1219 = pneg %p931
      %p1220 = pneg %p955
      %p1221 = pneg %p952
      %p1222 = pneg %p981
      %p1223 = pneg %p978
      %p1224 = scmp.lt.s32.totalorder %s94, 1
      %s1225 = scalar_select %p1224, %s94, 1
      %s1226 = smul.addr %s1225, 3
      %s1227 = smul.addr %s1226, 8
      %s1228 = scalar_lea.vmem %s83, %s1227
      %p1229 = scmp.lt.s32.totalorder %s94, 1
      %s1230 = scalar_select %p1229, %s94, 1
      %s1231 = smul.addr %s1230, 6
      %s1232 = smul.addr %s1231, 8
      %s1233 = scalar_lea.vmem %s1, %s1232
      %p1234 = scmp.lt.s32.totalorder %s94, 1
      %s1235 = scalar_select %p1234, %s94, 1
      %s1236 = smul.addr %s1235, 3
      %s1237 = smul.addr %s1236, 8
      %s1238 = scalar_lea.vmem %s83, %s1237
      %v1240 = vld [vmem:[%s1233] sm:$0xff]
      %v1241 = vld [vmem:[%s1233 + $0x8] sm:$0xff]
      %v1242 = vld [vmem:[%s1233 + $0x10] sm:$0xff]
      %v1243 = vld [vmem:[%s1233 + $0x18] sm:$0xff]
      %v1244 = vld [vmem:[%s1233 + $0x20] sm:$0xff]
      %v1245 = vld [vmem:[%s1233 + $0x28] sm:$0xff]
      %v1246 = vpack.c.bf16 %v1241, %v1240
      %v1247 = vpack.c.bf16 %v1243, %v1242
      %v1248 = vpack.c.bf16 %v1245, %v1244
      %v1249 = vld [vmem:[%s3] sm:$0x3]
      %v1250 = vld [vmem:[%s5] sm:$0x1]
      %v1252 = vlaneseq
      %v1253 = vshrl.u32 %v1252, 7
      %v1254 = vsub.s32 0, %v1253
      %v1255 = vrot.slane %v1250, %v1254
      %vm1257 = vcmask 31744
      %v1259 = vsel %vm1257, %v1246, 0
      %v1262 = vsel %vm1257, %v1247, 0
      %v1265 = vsel %vm1257, %v1248, 0
      %vm1267 = vcmask 1041408
      %v1269 = vsel %vm1267, %v1249, 0
      %1271 = vmatprep.subr.bf16.mxu0 0
      %1272 = vmatpush1.bf16.msra.mxu0 0
      %1273 = vmatprep.subr.bf16.mxu0 0
      %1274 = vmatpush1.bf16.msra.mxu0 0
      %1275 = vmatprep.subr.bf16.mxu0 0
      %1276 = vmatpush1.bf16.msra.mxu0 0
      %1277 = vmatprep.subr.bf16.mxu0 0
      %1278 = vmatpush1.bf16.msra.mxu0 0
      %1279 = vmatprep.subr.bf16.mxu0 0
      %1280 = vmatpush1.bf16.msra.mxu0 0
      %1281 = vmatprep.subr.bf16.mxu0 0
      %1282 = vmatpush1.bf16.msra.mxu0 0
      %1283 = vmatprep.subr.bf16.mxu0 0
      %1284 = vmatpush1.bf16.msra.mxu0 0
      %1285 = vmatprep.subr.bf16.mxu0 0
      %1286 = vmatpush1.bf16.msra.mxu0 %v1269
      %1287 = vmatprep.subr.bf16.mxu0 0
      %1288 = vmatpush2.bf16.msra.mxu0 0
      %1289 = vmatprep.subr.bf16.mxu0 0
      %1290 = vmatpush2.bf16.msra.mxu0 0
      %1291 = vmatprep.subr.bf16.mxu0 0
      %1292 = vmatpush2.bf16.msra.mxu0 0
      %1293 = vmatprep.subr.bf16.mxu0 0
      %1294 = vmatpush2.bf16.msra.mxu0 0
      %1295 = vmatprep.subr.bf16.mxu0 0
      %1296 = vmatpush2.bf16.msra.mxu0 0
      %1297 = vmatprep.subr.bf16.mxu0 0
      %1298 = vmatpush2.bf16.msra.mxu0 0
      %1299 = vmatprep.subr.bf16.mxu0 0
      %1300 = vmatpush2.bf16.msra.mxu0 0
      %1301 = vmatprep.subr.bf16.mxu0 0
      %1302 = vmatpush2.bf16.msra.mxu0 0
      %1303 = vmatprep.mubr.bf16.mxu0 0
      %1304 = vmatmul.mubr.bf16.gmra.mxu0 %v1259
      %v1305 = vpop.f32.mrf.mxu0
      %v1306 = vadd.f32 %v1255, %v1305
      %v1307 = vpop.f32.mrf.mxu0
      %v1308 = vpop.f32.mrf.mxu0
      %v1309 = vadd.f32 %v1255, %v1308
      %v1310 = vpop.f32.mrf.mxu0
      %1311 = vmatprep.mubr.bf16.mxu0 0
      %1312 = vmatmul.mubr.bf16.gmra.mxu0 %v1262
      %v1313 = vpop.f32.mrf.mxu0
      %v1314 = vadd.f32 %v1255, %v1313
      %v1315 = vpop.f32.mrf.mxu0
      %v1316 = vpop.f32.mrf.mxu0
      %v1317 = vadd.f32 %v1255, %v1316
      %v1318 = vpop.f32.mrf.mxu0
      %1319 = vmatprep.mubr.bf16.mxu0 0
      %1320 = vmatmul.mubr.bf16.gmra.mxu0 %v1265
      %v1321 = vpop.f32.mrf.mxu0
      %v1322 = vadd.f32 %v1255, %v1321
      %v1323 = vpop.f32.mrf.mxu0
      %v1324 = vpop.f32.mrf.mxu0
      %v1325 = vadd.f32 %v1255, %v1324
      %v1326 = vpop.f32.mrf.mxu0
      %1327 = vdwg.mxu0
      %v1328 = vpack.c.bf16 %v1309, %v1306
      %v1329 = vpack.c.bf16 %v1317, %v1314
      %v1330 = vpack.c.bf16 %v1325, %v1322
      %v1331 = vld [vmem:[%s7] sm:$0xf]
      %v1332 = vld [vmem:[%s7 + $0x4] sm:$0xf]
      %v1333 = vld [vmem:[%s7 + $0x8] sm:$0xf]
      %v1334 = vld [vmem:[%s7 + $0xc] sm:$0xf]
      %v1335 = vld [vmem:[%s9] sm:$0x1]
      %v1337 = vlaneseq
      %v1338 = vshrl.u32 %v1337, 7
      %v1339 = vsub.s32 0, %v1338
      %v1340 = vrot.slane %v1335, %v1339
      %v1346 = vunpack.c.l.b16 %v1331
      %v1347 = vunpack.c.l.b16 %v1332
      %v1348 = vunpack.c.l.b16 %v1333
      %v1349 = vunpack.c.l.b16 %v1334
      %v1350 = vpack.c.b16 %v1347, %v1346
      %v1351 = vpack.c.b16 %v1349, %v1348
      %vm1354 = vcmask 261120
      %v1356 = vsel %vm1354, %v1328, 0
      %v1359 = vsel %vm1354, %v1329, 0
      %v1362 = vsel %vm1354, %v1330, 0
      %1364 = vmatprep.subr.bf16.mxu0 0
      %1365 = vmatpush1.bf16.msra.mxu0 0
      %1366 = vmatprep.subr.bf16.mxu0 0
      %1367 = vmatpush1.bf16.msra.mxu0 0
      %1368 = vmatprep.subr.bf16.mxu0 0
      %1369 = vmatpush1.bf16.msra.mxu0 0
      %1370 = vmatprep.subr.bf16.mxu0 0
      %1371 = vmatpush1.bf16.msra.mxu0 0
      %1372 = vmatprep.subr.bf16.mxu0 0
      %1373 = vmatpush1.bf16.msra.mxu0 0
      %1374 = vmatprep.subr.bf16.mxu0 0
      %1375 = vmatpush1.bf16.msra.mxu0 0
      %1376 = vmatprep.subr.bf16.mxu0 0
      %1377 = vmatpush1.bf16.msra.mxu0 %v1351
      %1378 = vmatprep.subr.bf16.mxu0 0
      %1379 = vmatpush1.bf16.msra.mxu0 %v1350
      %1380 = vmatprep.subr.bf16.mxu0 0
      %1381 = vmatpush2.bf16.msra.mxu0 0
      %1382 = vmatprep.subr.bf16.mxu0 0
      %1383 = vmatpush2.bf16.msra.mxu0 0
      %1384 = vmatprep.subr.bf16.mxu0 0
      %1385 = vmatpush2.bf16.msra.mxu0 0
      %1386 = vmatprep.subr.bf16.mxu0 0
      %1387 = vmatpush2.bf16.msra.mxu0 0
      %1388 = vmatprep.subr.bf16.mxu0 0
      %1389 = vmatpush2.bf16.msra.mxu0 0
      %1390 = vmatprep.subr.bf16.mxu0 0
      %1391 = vmatpush2.bf16.msra.mxu0 0
      %1392 = vmatprep.subr.bf16.mxu0 0
      %1393 = vmatpush2.bf16.msra.mxu0 0
      %1394 = vmatprep.subr.bf16.mxu0 0
      %1395 = vmatpush2.bf16.msra.mxu0 0
      %1396 = vmatprep.mubr.bf16.mxu0 0
      %1397 = vmatmul.mubr.bf16.gmra.mxu0 %v1356
      %v1398 = vpop.f32.mrf.mxu0
      %v1399 = vpop.f32.mrf.mxu0
      %v1400 = vpop.f32.mrf.mxu0
      %v1401 = vadd.f32 %v1340, %v1400
      %v1402 = vpop.f32.mrf.mxu0
      %1403 = vmatprep.mubr.bf16.mxu0 0
      %1404 = vmatmul.mubr.bf16.gmra.mxu0 %v1359
      %v1405 = vpop.f32.mrf.mxu0
      %v1406 = vadd.f32 %v1340, %v1405
      %v1407 = vpop.f32.mrf.mxu0
      %v1408 = vpop.f32.mrf.mxu0
      %v1409 = vadd.f32 %v1340, %v1408
      %v1410 = vpop.f32.mrf.mxu0
      %1411 = vmatprep.mubr.bf16.mxu0 0
      %1412 = vmatmul.mubr.bf16.gmra.mxu0 %v1362
      %v1413 = vpop.f32.mrf.mxu0
      %v1414 = vadd.f32 %v1340, %v1413
      %v1415 = vpop.f32.mrf.mxu0
      %v1416 = vpop.f32.mrf.mxu0
      %v1417 = vpop.f32.mrf.mxu0
      %1418 = vdwg.mxu0
      %1419 = vst.msk [vmem:[#allocation2] sm:$0xff] %vm1354, 0.0
      %1420 = vst.msk [vmem:[#allocation2 + $0x38] sm:$0xff] %vm1354, 0.0
      %v1421 = vld [vmem:[%s11] sm:$0x1]
      %v1423 = vlaneseq
      %v1424 = vshrl.u32 %v1423, 7
      %v1425 = vsub.s32 0, %v1424
      %v1426 = vrot.slane %v1421, %v1425
      %v1428 = vmul.f32 %v1306, %v1426
      %v1429 = vmul.f32 %v1309, %v1426
      %v1430 = vmul.f32 %v1314, %v1426
      %v1431 = vmul.f32 %v1317, %v1426
      %v1432 = vmul.f32 %v1322, %v1426
      %v1433 = vmul.f32 %v1325, %v1426
      %v1434 = vld [vmem:[%s13] sm:$0x1]
      %v1436 = vlaneseq
      %v1437 = vshrl.u32 %v1436, 7
      %v1438 = vsub.s32 0, %v1437
      %v1439 = vrot.slane %v1434, %v1438
      %v1441 = vadd.f32 %v1428, %v1439
      %v1442 = vadd.f32 %v1429, %v1439
      %v1443 = vadd.f32 %v1430, %v1439
      %v1444 = vadd.f32 %v1431, %v1439
      %v1445 = vadd.f32 %v1432, %v1439
      %v1446 = vadd.f32 %v1433, %v1439
      %v1447 = vmax.f32 %v1441, 0.0
      %v1448 = vmax.f32 %v1442, 0.0
      %v1449 = vmax.f32 %v1443, 0.0
      %v1450 = vmax.f32 %v1444, 0.0
      %v1451 = vmax.f32 %v1445, 0.0
      %v1452 = vmax.f32 %v1446, 0.0
      %1453 = vst.msk [vmem:[#allocation2 + $0x8] sm:$0xff] %vm1354, %v1447
      %1454 = vst.msk [vmem:[#allocation2 + $0x10] sm:$0xff] %vm1354, %v1448
      %1455 = vst.msk [vmem:[#allocation2 + $0x18] sm:$0xff] %vm1354, %v1449
      %1456 = vst.msk [vmem:[#allocation2 + $0x20] sm:$0xff] %vm1354, %v1450
      %1457 = vst.msk [vmem:[#allocation2 + $0x28] sm:$0xff] %vm1354, %v1451
      %1458 = vst.msk [vmem:[#allocation2 + $0x30] sm:$0xff] %vm1354, %v1452
      %v1459 = vld [vmem:[#allocation2 + $0x7] sm:$0xff]
      %v1460 = vld [vmem:[#allocation2 + $0xf] sm:$0xff]
      %v1461 = vld [vmem:[#allocation2 + $0x17] sm:$0xff]
      %v1462 = vld [vmem:[#allocation2 + $0x1f] sm:$0xff]
      %v1463 = vld [vmem:[#allocation2 + $0x27] sm:$0xff]
      %v1464 = vld [vmem:[#allocation2 + $0x2f] sm:$0xff]
      %v1465 = vld [vmem:[#allocation2 + $0x8] sm:$0xff]
      %v1466 = vld [vmem:[#allocation2 + $0x10] sm:$0xff]
      %v1467 = vld [vmem:[#allocation2 + $0x18] sm:$0xff]
      %v1468 = vld [vmem:[#allocation2 + $0x20] sm:$0xff]
      %v1469 = vld [vmem:[#allocation2 + $0x28] sm:$0xff]
      %v1470 = vld [vmem:[#allocation2 + $0x30] sm:$0xff]
      %v1471 = vld [vmem:[#allocation2 + $0x9] sm:$0xff]
      %v1472 = vld [vmem:[#allocation2 + $0x11] sm:$0xff]
      %v1473 = vld [vmem:[#allocation2 + $0x19] sm:$0xff]
      %v1474 = vld [vmem:[#allocation2 + $0x21] sm:$0xff]
      %v1475 = vld [vmem:[#allocation2 + $0x29] sm:$0xff]
      %v1476 = vld [vmem:[#allocation2 + $0x31] sm:$0xff]
      %1483 = vrot.lane.b32.xlu0 %v1465, 32
      %v1484 = vpop.permute.xlu0 %1483
      %1485 = vrot.lane.b32.xlu0 %v1466, 32
      %v1486 = vpop.permute.xlu0 %1485
      %1487 = vrot.lane.b32.xlu0 %v1467, 32
      %v1488 = vpop.permute.xlu0 %1487
      %1489 = vrot.lane.b32.xlu0 %v1468, 32
      %v1490 = vpop.permute.xlu0 %1489
      %1491 = vrot.lane.b32.xlu0 %v1469, 32
      %v1492 = vpop.permute.xlu0 %1491
      %1493 = vrot.lane.b32.xlu0 %v1470, 32
      %v1494 = vpop.permute.xlu0 %1493
      %1507 = vrot.lane.b32.xlu0 %v1471, 64
      %v1508 = vpop.permute.xlu0 %1507
      %1509 = vrot.lane.b32.xlu0 %v1472, 64
      %v1510 = vpop.permute.xlu0 %1509
      %1511 = vrot.lane.b32.xlu0 %v1473, 64
      %v1512 = vpop.permute.xlu0 %1511
      %1513 = vrot.lane.b32.xlu0 %v1474, 64
      %v1514 = vpop.permute.xlu0 %1513
      %1515 = vrot.lane.b32.xlu0 %v1475, 64
      %v1516 = vpop.permute.xlu0 %1515
      %1517 = vrot.lane.b32.xlu0 %v1476, 64
      %v1518 = vpop.permute.xlu0 %1517
      %v1525 = vsel %vm1354, %v1459, %v1484
      %v1526 = vsel %vm1354, %v1460, %v1486
      %v1527 = vsel %vm1354, %v1461, %v1488
      %v1528 = vsel %vm1354, %v1462, %v1490
      %v1529 = vsel %vm1354, %v1463, %v1492
      %v1530 = vsel %vm1354, %v1464, %v1494
      %vm1531 = vcmask 523264
      %v1532 = vsel %vm1531, %v1525, %v1508
      %v1533 = vsel %vm1531, %v1526, %v1510
      %v1534 = vsel %vm1531, %v1527, %v1512
      %v1535 = vsel %vm1531, %v1528, %v1514
      %v1536 = vsel %vm1531, %v1529, %v1516
      %v1537 = vsel %vm1531, %v1530, %v1518
      %v1538 = vpack.c.bf16 %v1533, %v1532
      %v1539 = vpack.c.bf16 %v1535, %v1534
      %v1540 = vpack.c.bf16 %v1537, %v1536
      %v1541 = vld [vmem:[%s15] sm:$0xf]
      %v1542 = vld [vmem:[%s15 + $0x4] sm:$0xf]
      %v1543 = vld [vmem:[%s15 + $0x8] sm:$0xf]
      %v1544 = vld [vmem:[%s15 + $0xc] sm:$0xf]
      %v1545 = vld [vmem:[%s15 + $0x10] sm:$0xf]
      %v1546 = vld [vmem:[%s15 + $0x14] sm:$0xf]
      %v1547 = vld [vmem:[%s15 + $0x18] sm:$0xf]
      %v1548 = vld [vmem:[%s15 + $0x1c] sm:$0xf]
      %v1549 = vld [vmem:[%s15 + $0x20] sm:$0xf]
      %v1550 = vld [vmem:[%s15 + $0x24] sm:$0xf]
      %v1551 = vld [vmem:[%s15 + $0x28] sm:$0xf]
      %v1552 = vld [vmem:[%s15 + $0x2c] sm:$0xf]
      %v1553 = vld [vmem:[%s17] sm:$0x1]
      %v1555 = vlaneseq
      %v1556 = vshrl.u32 %v1555, 7
      %v1557 = vsub.s32 0, %v1556
      %v1558 = vrot.slane %v1553, %v1557
      %v1572 = vunpack.c.l.b16 %v1541
      %v1573 = vunpack.c.l.b16 %v1542
      %v1574 = vunpack.c.l.b16 %v1543
      %v1575 = vunpack.c.l.b16 %v1544
      %v1576 = vunpack.c.l.b16 %v1545
      %v1577 = vunpack.c.l.b16 %v1546
      %v1578 = vunpack.c.l.b16 %v1547
      %v1579 = vunpack.c.l.b16 %v1548
      %v1580 = vunpack.c.l.b16 %v1549
      %v1581 = vunpack.c.l.b16 %v1550
      %v1582 = vunpack.c.l.b16 %v1551
      %v1583 = vunpack.c.l.b16 %v1552
      %v1584 = vpack.c.b16 %v1573, %v1572
      %v1585 = vpack.c.b16 %v1575, %v1574
      %v1586 = vpack.c.b16 %v1577, %v1576
      %v1587 = vpack.c.b16 %v1579, %v1578
      %v1588 = vpack.c.b16 %v1581, %v1580
      %v1589 = vpack.c.b16 %v1583, %v1582
      %vm1596 = vcmask 785408
      %v1598 = vsel %vm1596, %v1538, 0
      %v1601 = vsel %vm1596, %v1539, 0
      %v1604 = vsel %vm1596, %v1540, 0
      %1606 = vmatprep.subr.bf16.mxu0 0
      %1607 = vmatpush1.bf16.msra.mxu0 0
      %1608 = vmatprep.subr.bf16.mxu0 0
      %1609 = vmatpush1.bf16.msra.mxu0 0
      %1610 = vmatprep.subr.bf16.mxu0 0
      %1611 = vmatpush1.bf16.msra.mxu0 %v1589
      %1612 = vmatprep.subr.bf16.mxu0 0
      %1613 = vmatpush1.bf16.msra.mxu0 %v1588
      %1614 = vmatprep.subr.bf16.mxu0 0
      %1615 = vmatpush1.bf16.msra.mxu0 %v1587
      %1616 = vmatprep.subr.bf16.mxu0 0
      %1617 = vmatpush1.bf16.msra.mxu0 %v1586
      %1618 = vmatprep.subr.bf16.mxu0 0
      %1619 = vmatpush1.bf16.msra.mxu0 %v1585
      %1620 = vmatprep.subr.bf16.mxu0 0
      %1621 = vmatpush1.bf16.msra.mxu0 %v1584
      %1622 = vmatprep.subr.bf16.mxu0 0
      %1623 = vmatpush2.bf16.msra.mxu0 0
      %1624 = vmatprep.subr.bf16.mxu0 0
      %1625 = vmatpush2.bf16.msra.mxu0 0
      %1626 = vmatprep.subr.bf16.mxu0 0
      %1627 = vmatpush2.bf16.msra.mxu0 0
      %1628 = vmatprep.subr.bf16.mxu0 0
      %1629 = vmatpush2.bf16.msra.mxu0 0
      %1630 = vmatprep.subr.bf16.mxu0 0
      %1631 = vmatpush2.bf16.msra.mxu0 0
      %1632 = vmatprep.subr.bf16.mxu0 0
      %1633 = vmatpush2.bf16.msra.mxu0 0
      %1634 = vmatprep.subr.bf16.mxu0 0
      %1635 = vmatpush2.bf16.msra.mxu0 0
      %1636 = vmatprep.subr.bf16.mxu0 0
      %1637 = vmatpush2.bf16.msra.mxu0 0
      %1638 = vmatprep.mubr.bf16.mxu0 0
      %1639 = vmatmul.mubr.bf16.gmra.mxu0 %v1598
      %v1640 = vpop.f32.mrf.mxu0
      %v1641 = vadd.f32 %v1558, %v1640
      %v1642 = vpop.f32.mrf.mxu0
      %v1643 = vpop.f32.mrf.mxu0
      %v1644 = vadd.f32 %v1558, %v1643
      %v1645 = vpop.f32.mrf.mxu0
      %1646 = vmatprep.mubr.bf16.mxu0 0
      %1647 = vmatmul.mubr.bf16.gmra.mxu0 %v1601
      %v1648 = vpop.f32.mrf.mxu0
      %v1649 = vadd.f32 %v1558, %v1648
      %v1650 = vpop.f32.mrf.mxu0
      %v1651 = vpop.f32.mrf.mxu0
      %v1652 = vadd.f32 %v1558, %v1651
      %v1653 = vpop.f32.mrf.mxu0
      %1654 = vmatprep.mubr.bf16.mxu0 0
      %1655 = vmatmul.mubr.bf16.gmra.mxu0 %v1604
      %v1656 = vpop.f32.mrf.mxu0
      %v1657 = vadd.f32 %v1558, %v1656
      %v1658 = vpop.f32.mrf.mxu0
      %v1659 = vpop.f32.mrf.mxu0
      %v1660 = vadd.f32 %v1558, %v1659
      %v1661 = vpop.f32.mrf.mxu0
      %1662 = vdwg.mxu0
      %v1663 = vld [vmem:[%s19] sm:$0x1]
      %v1665 = vlaneseq
      %v1666 = vshrl.u32 %v1665, 7
      %v1667 = vsub.s32 0, %v1666
      %v1668 = vrot.slane %v1663, %v1667
      %v1670 = vmul.f32 %v1641, %v1668
      %v1671 = vmul.f32 %v1644, %v1668
      %v1672 = vmul.f32 %v1649, %v1668
      %v1673 = vmul.f32 %v1652, %v1668
      %v1674 = vmul.f32 %v1657, %v1668
      %v1675 = vmul.f32 %v1660, %v1668
      %v1676 = vld [vmem:[%s21] sm:$0x1]
      %v1678 = vlaneseq
      %v1679 = vshrl.u32 %v1678, 7
      %v1680 = vsub.s32 0, %v1679
      %v1681 = vrot.slane %v1676, %v1680
      %v1683 = vadd.f32 %v1670, %v1681
      %v1684 = vadd.f32 %v1671, %v1681
      %v1685 = vadd.f32 %v1672, %v1681
      %v1686 = vadd.f32 %v1673, %v1681
      %v1687 = vadd.f32 %v1674, %v1681
      %v1688 = vadd.f32 %v1675, %v1681
      %v1689 = vmax.f32 %v1683, 0.0
      %v1690 = vmax.f32 %v1684, 0.0
      %v1691 = vmax.f32 %v1685, 0.0
      %v1692 = vmax.f32 %v1686, 0.0
      %v1693 = vmax.f32 %v1687, 0.0
      %v1694 = vmax.f32 %v1688, 0.0
      %1695 = vst.msk [vmem:[#allocation2 + $0x8] sm:$0xff] %vm1354, %v1689
      %1696 = vst.msk [vmem:[#allocation2 + $0x10] sm:$0xff] %vm1354, %v1690
      %1697 = vst.msk [vmem:[#allocation2 + $0x18] sm:$0xff] %vm1354, %v1691
      %1698 = vst.msk [vmem:[#allocation2 + $0x20] sm:$0xff] %vm1354, %v1692
      %1699 = vst.msk [vmem:[#allocation2 + $0x28] sm:$0xff] %vm1354, %v1693
      %1700 = vst.msk [vmem:[#allocation2 + $0x30] sm:$0xff] %vm1354, %v1694
      %v1701 = vld [vmem:[#allocation2 + $0x7] sm:$0xff]
      %v1702 = vld [vmem:[#allocation2 + $0xf] sm:$0xff]
      %v1703 = vld [vmem:[#allocation2 + $0x17] sm:$0xff]
      %v1704 = vld [vmem:[#allocation2 + $0x1f] sm:$0xff]
      %v1705 = vld [vmem:[#allocation2 + $0x27] sm:$0xff]
      %v1706 = vld [vmem:[#allocation2 + $0x2f] sm:$0xff]
      %v1707 = vld [vmem:[#allocation2 + $0x8] sm:$0xff]
      %v1708 = vld [vmem:[#allocation2 + $0x10] sm:$0xff]
      %v1709 = vld [vmem:[#allocation2 + $0x18] sm:$0xff]
      %v1710 = vld [vmem:[#allocation2 + $0x20] sm:$0xff]
      %v1711 = vld [vmem:[#allocation2 + $0x28] sm:$0xff]
      %v1712 = vld [vmem:[#allocation2 + $0x30] sm:$0xff]
      %v1713 = vld [vmem:[#allocation2 + $0x9] sm:$0xff]
      %v1714 = vld [vmem:[#allocation2 + $0x11] sm:$0xff]
      %v1715 = vld [vmem:[#allocation2 + $0x19] sm:$0xff]
      %v1716 = vld [vmem:[#allocation2 + $0x21] sm:$0xff]
      %v1717 = vld [vmem:[#allocation2 + $0x29] sm:$0xff]
      %v1718 = vld [vmem:[#allocation2 + $0x31] sm:$0xff]
      %1725 = vrot.lane.b32.xlu0 %v1707, 32
      %v1726 = vpop.permute.xlu0 %1725
      %1727 = vrot.lane.b32.xlu0 %v1708, 32
      %v1728 = vpop.permute.xlu0 %1727
      %1729 = vrot.lane.b32.xlu0 %v1709, 32
      %v1730 = vpop.permute.xlu0 %1729
      %1731 = vrot.lane.b32.xlu0 %v1710, 32
      %v1732 = vpop.permute.xlu0 %1731
      %1733 = vrot.lane.b32.xlu0 %v1711, 32
      %v1734 = vpop.permute.xlu0 %1733
      %1735 = vrot.lane.b32.xlu0 %v1712, 32
      %v1736 = vpop.permute.xlu0 %1735
      %1749 = vrot.lane.b32.xlu0 %v1713, 64
      %v1750 = vpop.permute.xlu0 %1749
      %1751 = vrot.lane.b32.xlu0 %v1714, 64
      %v1752 = vpop.permute.xlu0 %1751
      %1753 = vrot.lane.b32.xlu0 %v1715, 64
      %v1754 = vpop.permute.xlu0 %1753
      %1755 = vrot.lane.b32.xlu0 %v1716, 64
      %v1756 = vpop.permute.xlu0 %1755
      %1757 = vrot.lane.b32.xlu0 %v1717, 64
      %v1758 = vpop.permute.xlu0 %1757
      %1759 = vrot.lane.b32.xlu0 %v1718, 64
      %v1760 = vpop.permute.xlu0 %1759
      %v1767 = vsel %vm1354, %v1701, %v1726
      %v1768 = vsel %vm1354, %v1702, %v1728
      %v1769 = vsel %vm1354, %v1703, %v1730
      %v1770 = vsel %vm1354, %v1704, %v1732
      %v1771 = vsel %vm1354, %v1705, %v1734
      %v1772 = vsel %vm1354, %v1706, %v1736
      %v1773 = vsel %vm1531, %v1767, %v1750
      %v1774 = vsel %vm1531, %v1768, %v1752
      %v1775 = vsel %vm1531, %v1769, %v1754
      %v1776 = vsel %vm1531, %v1770, %v1756
      %v1777 = vsel %vm1531, %v1771, %v1758
      %v1778 = vsel %vm1531, %v1772, %v1760
      %v1779 = vpack.c.bf16 %v1774, %v1773
      %v1780 = vpack.c.bf16 %v1776, %v1775
      %v1781 = vpack.c.bf16 %v1778, %v1777
      %v1782 = vld [vmem:[%s23] sm:$0xf]
      %v1783 = vld [vmem:[%s23 + $0x4] sm:$0xf]
      %v1784 = vld [vmem:[%s23 + $0x8] sm:$0xf]
      %v1785 = vld [vmem:[%s23 + $0xc] sm:$0xf]
      %v1786 = vld [vmem:[%s23 + $0x10] sm:$0xf]
      %v1787 = vld [vmem:[%s23 + $0x14] sm:$0xf]
      %v1788 = vld [vmem:[%s23 + $0x18] sm:$0xf]
      %v1789 = vld [vmem:[%s23 + $0x1c] sm:$0xf]
      %v1790 = vld [vmem:[%s23 + $0x20] sm:$0xf]
      %v1791 = vld [vmem:[%s23 + $0x24] sm:$0xf]
      %v1792 = vld [vmem:[%s23 + $0x28] sm:$0xf]
      %v1793 = vld [vmem:[%s23 + $0x2c] sm:$0xf]
      %v1794 = vld [vmem:[%s25] sm:$0x1]
      %v1796 = vlaneseq
      %v1797 = vshrl.u32 %v1796, 7
      %v1798 = vsub.s32 0, %v1797
      %v1799 = vrot.slane %v1794, %v1798
      %v1813 = vunpack.c.l.b16 %v1782
      %v1814 = vunpack.c.l.b16 %v1783
      %v1815 = vunpack.c.l.b16 %v1784
      %v1816 = vunpack.c.l.b16 %v1785
      %v1817 = vunpack.c.l.b16 %v1786
      %v1818 = vunpack.c.l.b16 %v1787
      %v1819 = vunpack.c.l.b16 %v1788
      %v1820 = vunpack.c.l.b16 %v1789
      %v1821 = vunpack.c.l.b16 %v1790
      %v1822 = vunpack.c.l.b16 %v1791
      %v1823 = vunpack.c.l.b16 %v1792
      %v1824 = vunpack.c.l.b16 %v1793
      %v1825 = vpack.c.b16 %v1814, %v1813
      %v1826 = vpack.c.b16 %v1816, %v1815
      %v1827 = vpack.c.b16 %v1818, %v1817
      %v1828 = vpack.c.b16 %v1820, %v1819
      %v1829 = vpack.c.b16 %v1822, %v1821
      %v1830 = vpack.c.b16 %v1824, %v1823
      %v1838 = vsel %vm1596, %v1779, 0
      %v1841 = vsel %vm1596, %v1780, 0
      %v1844 = vsel %vm1596, %v1781, 0
      %1846 = vmatprep.subr.bf16.mxu0 0
      %1847 = vmatpush1.bf16.msra.mxu0 0
      %1848 = vmatprep.subr.bf16.mxu0 0
      %1849 = vmatpush1.bf16.msra.mxu0 0
      %1850 = vmatprep.subr.bf16.mxu0 0
      %1851 = vmatpush1.bf16.msra.mxu0 %v1830
      %1852 = vmatprep.subr.bf16.mxu0 0
      %1853 = vmatpush1.bf16.msra.mxu0 %v1829
      %1854 = vmatprep.subr.bf16.mxu0 0
      %1855 = vmatpush1.bf16.msra.mxu0 %v1828
      %1856 = vmatprep.subr.bf16.mxu0 0
      %1857 = vmatpush1.bf16.msra.mxu0 %v1827
      %1858 = vmatprep.subr.bf16.mxu0 0
      %1859 = vmatpush1.bf16.msra.mxu0 %v1826
      %1860 = vmatprep.subr.bf16.mxu0 0
      %1861 = vmatpush1.bf16.msra.mxu0 %v1825
      %1862 = vmatprep.subr.bf16.mxu0 0
      %1863 = vmatpush2.bf16.msra.mxu0 0
      %1864 = vmatprep.subr.bf16.mxu0 0
      %1865 = vmatpush2.bf16.msra.mxu0 0
      %1866 = vmatprep.subr.bf16.mxu0 0
      %1867 = vmatpush2.bf16.msra.mxu0 0
      %1868 = vmatprep.subr.bf16.mxu0 0
      %1869 = vmatpush2.bf16.msra.mxu0 0
      %1870 = vmatprep.subr.bf16.mxu0 0
      %1871 = vmatpush2.bf16.msra.mxu0 0
      %1872 = vmatprep.subr.bf16.mxu0 0
      %1873 = vmatpush2.bf16.msra.mxu0 0
      %1874 = vmatprep.subr.bf16.mxu0 0
      %1875 = vmatpush2.bf16.msra.mxu0 0
      %1876 = vmatprep.subr.bf16.mxu0 0
      %1877 = vmatpush2.bf16.msra.mxu0 0
      %1878 = vmatprep.mubr.bf16.mxu0 0
      %1879 = vmatmul.mubr.bf16.gmra.mxu0 %v1838
      %v1880 = vpop.f32.mrf.mxu0
      %v1881 = vadd.f32 %v1799, %v1880
      %v1882 = vpop.f32.mrf.mxu0
      %v1883 = vpop.f32.mrf.mxu0
      %v1884 = vadd.f32 %v1799, %v1883
      %v1885 = vpop.f32.mrf.mxu0
      %1886 = vmatprep.mubr.bf16.mxu0 0
      %1887 = vmatmul.mubr.bf16.gmra.mxu0 %v1841
      %v1888 = vpop.f32.mrf.mxu0
      %v1889 = vadd.f32 %v1799, %v1888
      %v1890 = vpop.f32.mrf.mxu0
      %v1891 = vpop.f32.mrf.mxu0
      %v1892 = vadd.f32 %v1799, %v1891
      %v1893 = vpop.f32.mrf.mxu0
      %1894 = vmatprep.mubr.bf16.mxu0 0
      %1895 = vmatmul.mubr.bf16.gmra.mxu0 %v1844
      %v1896 = vpop.f32.mrf.mxu0
      %v1897 = vadd.f32 %v1799, %v1896
      %v1898 = vpop.f32.mrf.mxu0
      %v1899 = vpop.f32.mrf.mxu0
      %v1900 = vadd.f32 %v1799, %v1899
      %v1901 = vpop.f32.mrf.mxu0
      %1902 = vdwg.mxu0
      %v1903 = vadd.f32 %v1306, %v1881
      %v1904 = vadd.f32 %v1309, %v1884
      %v1905 = vadd.f32 %v1314, %v1889
      %v1906 = vadd.f32 %v1317, %v1892
      %v1907 = vadd.f32 %v1322, %v1897
      %v1908 = vadd.f32 %v1325, %v1900
      %v1909 = vld [vmem:[%s27] sm:$0x1]
      %v1911 = vlaneseq
      %v1912 = vshrl.u32 %v1911, 7
      %v1913 = vsub.s32 0, %v1912
      %v1914 = vrot.slane %v1909, %v1913
      %v1916 = vmul.f32 %v1903, %v1914
      %v1917 = vmul.f32 %v1904, %v1914
      %v1918 = vmul.f32 %v1905, %v1914
      %v1919 = vmul.f32 %v1906, %v1914
      %v1920 = vmul.f32 %v1907, %v1914
      %v1921 = vmul.f32 %v1908, %v1914
      %v1922 = vld [vmem:[%s29] sm:$0x1]
      %v1924 = vlaneseq
      %v1925 = vshrl.u32 %v1924, 7
      %v1926 = vsub.s32 0, %v1925
      %v1927 = vrot.slane %v1922, %v1926
      %v1929 = vadd.f32 %v1916, %v1927
      %v1930 = vadd.f32 %v1917, %v1927
      %v1931 = vadd.f32 %v1918, %v1927
      %v1932 = vadd.f32 %v1919, %v1927
      %v1933 = vadd.f32 %v1920, %v1927
      %v1934 = vadd.f32 %v1921, %v1927
      %v1935 = vmax.f32 %v1929, 0.0
      %v1936 = vmax.f32 %v1930, 0.0
      %v1937 = vmax.f32 %v1931, 0.0
      %v1938 = vmax.f32 %v1932, 0.0
      %v1939 = vmax.f32 %v1933, 0.0
      %v1940 = vmax.f32 %v1934, 0.0
      %1941 = vst.msk [vmem:[#allocation2 + $0x8] sm:$0xff] %vm1354, %v1935
      %1942 = vst.msk [vmem:[#allocation2 + $0x10] sm:$0xff] %vm1354, %v1936
      %1943 = vst.msk [vmem:[#allocation2 + $0x18] sm:$0xff] %vm1354, %v1937
      %1944 = vst.msk [vmem:[#allocation2 + $0x20] sm:$0xff] %vm1354, %v1938
      %1945 = vst.msk [vmem:[#allocation2 + $0x28] sm:$0xff] %vm1354, %v1939
      %1946 = vst.msk [vmem:[#allocation2 + $0x30] sm:$0xff] %vm1354, %v1940
      %v1947 = vld [vmem:[#allocation2 + $0x7] sm:$0xff]
      %v1948 = vld [vmem:[#allocation2 + $0xf] sm:$0xff]
      %v1949 = vld [vmem:[#allocation2 + $0x17] sm:$0xff]
      %v1950 = vld [vmem:[#allocation2 + $0x1f] sm:$0xff]
      %v1951 = vld [vmem:[#allocation2 + $0x27] sm:$0xff]
      %v1952 = vld [vmem:[#allocation2 + $0x2f] sm:$0xff]
      %v1953 = vld [vmem:[#allocation2 + $0x8] sm:$0xff]
      %v1954 = vld [vmem:[#allocation2 + $0x10] sm:$0xff]
      %v1955 = vld [vmem:[#allocation2 + $0x18] sm:$0xff]
      %v1956 = vld [vmem:[#allocation2 + $0x20] sm:$0xff]
      %v1957 = vld [vmem:[#allocation2 + $0x28] sm:$0xff]
      %v1958 = vld [vmem:[#allocation2 + $0x30] sm:$0xff]
      %v1959 = vld [vmem:[#allocation2 + $0x9] sm:$0xff]
      %v1960 = vld [vmem:[#allocation2 + $0x11] sm:$0xff]
      %v1961 = vld [vmem:[#allocation2 + $0x19] sm:$0xff]
      %v1962 = vld [vmem:[#allocation2 + $0x21] sm:$0xff]
      %v1963 = vld [vmem:[#allocation2 + $0x29] sm:$0xff]
      %v1964 = vld [vmem:[#allocation2 + $0x31] sm:$0xff]
      %1971 = vrot.lane.b32.xlu0 %v1953, 32
      %v1972 = vpop.permute.xlu0 %1971
      %1973 = vrot.lane.b32.xlu0 %v1954, 32
      %v1974 = vpop.permute.xlu0 %1973
      %1975 = vrot.lane.b32.xlu0 %v1955, 32
      %v1976 = vpop.permute.xlu0 %1975
      %1977 = vrot.lane.b32.xlu0 %v1956, 32
      %v1978 = vpop.permute.xlu0 %1977
      %1979 = vrot.lane.b32.xlu0 %v1957, 32
      %v1980 = vpop.permute.xlu0 %1979
      %1981 = vrot.lane.b32.xlu0 %v1958, 32
      %v1982 = vpop.permute.xlu0 %1981
      %1995 = vrot.lane.b32.xlu0 %v1959, 64
      %v1996 = vpop.permute.xlu0 %1995
      %1997 = vrot.lane.b32.xlu0 %v1960, 64
      %v1998 = vpop.permute.xlu0 %1997
      %1999 = vrot.lane.b32.xlu0 %v1961, 64
      %v2000 = vpop.permute.xlu0 %1999
      %2001 = vrot.lane.b32.xlu0 %v1962, 64
      %v2002 = vpop.permute.xlu0 %2001
      %2003 = vrot.lane.b32.xlu0 %v1963, 64
      %v2004 = vpop.permute.xlu0 %2003
      %2005 = vrot.lane.b32.xlu0 %v1964, 64
      %v2006 = vpop.permute.xlu0 %2005
      %v2013 = vsel %vm1354, %v1947, %v1972
      %v2014 = vsel %vm1354, %v1948, %v1974
      %v2015 = vsel %vm1354, %v1949, %v1976
      %v2016 = vsel %vm1354, %v1950, %v1978
      %v2017 = vsel %vm1354, %v1951, %v1980
      %v2018 = vsel %vm1354, %v1952, %v1982
      %v2019 = vsel %vm1531, %v2013, %v1996
      %v2020 = vsel %vm1531, %v2014, %v1998
      %v2021 = vsel %vm1531, %v2015, %v2000
      %v2022 = vsel %vm1531, %v2016, %v2002
      %v2023 = vsel %vm1531, %v2017, %v2004
      %v2024 = vsel %vm1531, %v2018, %v2006
      %v2025 = vpack.c.bf16 %v2020, %v2019
      %v2026 = vpack.c.bf16 %v2022, %v2021
      %v2027 = vpack.c.bf16 %v2024, %v2023
      %v2028 = vld [vmem:[%s31] sm:$0xf]
      %v2029 = vld [vmem:[%s31 + $0x4] sm:$0xf]
      %v2030 = vld [vmem:[%s31 + $0x8] sm:$0xf]
      %v2031 = vld [vmem:[%s31 + $0xc] sm:$0xf]
      %v2032 = vld [vmem:[%s31 + $0x10] sm:$0xf]
      %v2033 = vld [vmem:[%s31 + $0x14] sm:$0xf]
      %v2034 = vld [vmem:[%s31 + $0x18] sm:$0xf]
      %v2035 = vld [vmem:[%s31 + $0x1c] sm:$0xf]
      %v2036 = vld [vmem:[%s31 + $0x20] sm:$0xf]
      %v2037 = vld [vmem:[%s31 + $0x24] sm:$0xf]
      %v2038 = vld [vmem:[%s31 + $0x28] sm:$0xf]
      %v2039 = vld [vmem:[%s31 + $0x2c] sm:$0xf]
      %v2040 = vld [vmem:[%s33] sm:$0x1]
      %v2042 = vlaneseq
      %v2043 = vshrl.u32 %v2042, 7
      %v2044 = vsub.s32 0, %v2043
      %v2045 = vrot.slane %v2040, %v2044
      %v2059 = vunpack.c.l.b16 %v2028
      %v2060 = vunpack.c.l.b16 %v2029
      %v2061 = vunpack.c.l.b16 %v2030
      %v2062 = vunpack.c.l.b16 %v2031
      %v2063 = vunpack.c.l.b16 %v2032
      %v2064 = vunpack.c.l.b16 %v2033
      %v2065 = vunpack.c.l.b16 %v2034
      %v2066 = vunpack.c.l.b16 %v2035
      %v2067 = vunpack.c.l.b16 %v2036
      %v2068 = vunpack.c.l.b16 %v2037
      %v2069 = vunpack.c.l.b16 %v2038
      %v2070 = vunpack.c.l.b16 %v2039
      %v2071 = vpack.c.b16 %v2060, %v2059
      %v2072 = vpack.c.b16 %v2062, %v2061
      %v2073 = vpack.c.b16 %v2064, %v2063
      %v2074 = vpack.c.b16 %v2066, %v2065
      %v2075 = vpack.c.b16 %v2068, %v2067
      %v2076 = vpack.c.b16 %v2070, %v2069
      %v2084 = vsel %vm1596, %v2025, 0
      %v2087 = vsel %vm1596, %v2026, 0
      %v2090 = vsel %vm1596, %v2027, 0
      %2092 = vmatprep.subr.bf16.mxu0 0
      %2093 = vmatpush1.bf16.msra.mxu0 0
      %2094 = vmatprep.subr.bf16.mxu0 0
      %2095 = vmatpush1.bf16.msra.mxu0 0
      %2096 = vmatprep.subr.bf16.mxu0 0
      %2097 = vmatpush1.bf16.msra.mxu0 %v2076
      %2098 = vmatprep.subr.bf16.mxu0 0
      %2099 = vmatpush1.bf16.msra.mxu0 %v2075
      %2100 = vmatprep.subr.bf16.mxu0 0
      %2101 = vmatpush1.bf16.msra.mxu0 %v2074
      %2102 = vmatprep.subr.bf16.mxu0 0
      %2103 = vmatpush1.bf16.msra.mxu0 %v2073
      %2104 = vmatprep.subr.bf16.mxu0 0
      %2105 = vmatpush1.bf16.msra.mxu0 %v2072
      %2106 = vmatprep.subr.bf16.mxu0 0
      %2107 = vmatpush1.bf16.msra.mxu0 %v2071
      %2108 = vmatprep.subr.bf16.mxu0 0
      %2109 = vmatpush2.bf16.msra.mxu0 0
      %2110 = vmatprep.subr.bf16.mxu0 0
      %2111 = vmatpush2.bf16.msra.mxu0 0
      %2112 = vmatprep.subr.bf16.mxu0 0
      %2113 = vmatpush2.bf16.msra.mxu0 0
      %2114 = vmatprep.subr.bf16.mxu0 0
      %2115 = vmatpush2.bf16.msra.mxu0 0
      %2116 = vmatprep.subr.bf16.mxu0 0
      %2117 = vmatpush2.bf16.msra.mxu0 0
      %2118 = vmatprep.subr.bf16.mxu0 0
      %2119 = vmatpush2.bf16.msra.mxu0 0
      %2120 = vmatprep.subr.bf16.mxu0 0
      %2121 = vmatpush2.bf16.msra.mxu0 0
      %2122 = vmatprep.subr.bf16.mxu0 0
      %2123 = vmatpush2.bf16.msra.mxu0 0
      %2124 = vmatprep.mubr.bf16.mxu0 0
      %2125 = vmatmul.mubr.bf16.gmra.mxu0 %v2084
      %v2126 = vpop.f32.mrf.mxu0
      %v2127 = vadd.f32 %v2045, %v2126
      %v2128 = vpop.f32.mrf.mxu0
      %v2129 = vpop.f32.mrf.mxu0
      %v2130 = vadd.f32 %v2045, %v2129
      %v2131 = vpop.f32.mrf.mxu0
      %2132 = vmatprep.mubr.bf16.mxu0 0
      %2133 = vmatmul.mubr.bf16.gmra.mxu0 %v2087
      %v2134 = vpop.f32.mrf.mxu0
      %v2135 = vadd.f32 %v2045, %v2134
      %v2136 = vpop.f32.mrf.mxu0
      %v2137 = vpop.f32.mrf.mxu0
      %v2138 = vadd.f32 %v2045, %v2137
      %v2139 = vpop.f32.mrf.mxu0
      %2140 = vmatprep.mubr.bf16.mxu0 0
      %2141 = vmatmul.mubr.bf16.gmra.mxu0 %v2090
      %v2142 = vpop.f32.mrf.mxu0
      %v2143 = vadd.f32 %v2045, %v2142
      %v2144 = vpop.f32.mrf.mxu0
      %v2145 = vpop.f32.mrf.mxu0
      %v2146 = vadd.f32 %v2045, %v2145
      %v2147 = vpop.f32.mrf.mxu0
      %2148 = vdwg.mxu0
      %v2149 = vld [vmem:[%s35] sm:$0x1]
      %v2151 = vlaneseq
      %v2152 = vshrl.u32 %v2151, 7
      %v2153 = vsub.s32 0, %v2152
      %v2154 = vrot.slane %v2149, %v2153
      %v2156 = vmul.f32 %v2127, %v2154
      %v2157 = vmul.f32 %v2130, %v2154
      %v2158 = vmul.f32 %v2135, %v2154
      %v2159 = vmul.f32 %v2138, %v2154
      %v2160 = vmul.f32 %v2143, %v2154
      %v2161 = vmul.f32 %v2146, %v2154
      %v2162 = vld [vmem:[%s37] sm:$0x1]
      %v2164 = vlaneseq
      %v2165 = vshrl.u32 %v2164, 7
      %v2166 = vsub.s32 0, %v2165
      %v2167 = vrot.slane %v2162, %v2166
      %v2169 = vadd.f32 %v2156, %v2167
      %v2170 = vadd.f32 %v2157, %v2167
      %v2171 = vadd.f32 %v2158, %v2167
      %v2172 = vadd.f32 %v2159, %v2167
      %v2173 = vadd.f32 %v2160, %v2167
      %v2174 = vadd.f32 %v2161, %v2167
      %v2175 = vmax.f32 %v2169, 0.0
      %v2176 = vmax.f32 %v2170, 0.0
      %v2177 = vmax.f32 %v2171, 0.0
      %v2178 = vmax.f32 %v2172, 0.0
      %v2179 = vmax.f32 %v2173, 0.0
      %v2180 = vmax.f32 %v2174, 0.0
      %2181 = vst.msk [vmem:[#allocation2 + $0x8] sm:$0xff] %vm1354, %v2175
      %2182 = vst.msk [vmem:[#allocation2 + $0x10] sm:$0xff] %vm1354, %v2176
      %2183 = vst.msk [vmem:[#allocation2 + $0x18] sm:$0xff] %vm1354, %v2177
      %2184 = vst.msk [vmem:[#allocation2 + $0x20] sm:$0xff] %vm1354, %v2178
      %2185 = vst.msk [vmem:[#allocation2 + $0x28] sm:$0xff] %vm1354, %v2179
      %2186 = vst.msk [vmem:[#allocation2 + $0x30] sm:$0xff] %vm1354, %v2180
      %v2187 = vld [vmem:[#allocation2 + $0x7] sm:$0xff]
      %v2188 = vld [vmem:[#allocation2 + $0xf] sm:$0xff]
      %v2189 = vld [vmem:[#allocation2 + $0x17] sm:$0xff]
      %v2190 = vld [vmem:[#allocation2 + $0x1f] sm:$0xff]
      %v2191 = vld [vmem:[#allocation2 + $0x27] sm:$0xff]
      %v2192 = vld [vmem:[#allocation2 + $0x2f] sm:$0xff]
      %v2193 = vld [vmem:[#allocation2 + $0x8] sm:$0xff]
      %v2194 = vld [vmem:[#allocation2 + $0x10] sm:$0xff]
      %v2195 = vld [vmem:[#allocation2 + $0x18] sm:$0xff]
      %v2196 = vld [vmem:[#allocation2 + $0x20] sm:$0xff]
      %v2197 = vld [vmem:[#allocation2 + $0x28] sm:$0xff]
      %v2198 = vld [vmem:[#allocation2 + $0x30] sm:$0xff]
      %v2199 = vld [vmem:[#allocation2 + $0x9] sm:$0xff]
      %v2200 = vld [vmem:[#allocation2 + $0x11] sm:$0xff]
      %v2201 = vld [vmem:[#allocation2 + $0x19] sm:$0xff]
      %v2202 = vld [vmem:[#allocation2 + $0x21] sm:$0xff]
      %v2203 = vld [vmem:[#allocation2 + $0x29] sm:$0xff]
      %v2204 = vld [vmem:[#allocation2 + $0x31] sm:$0xff]
      %2211 = vrot.lane.b32.xlu0 %v2193, 32
      %v2212 = vpop.permute.xlu0 %2211
      %2213 = vrot.lane.b32.xlu0 %v2194, 32
      %v2214 = vpop.permute.xlu0 %2213
      %2215 = vrot.lane.b32.xlu0 %v2195, 32
      %v2216 = vpop.permute.xlu0 %2215
      %2217 = vrot.lane.b32.xlu0 %v2196, 32
      %v2218 = vpop.permute.xlu0 %2217
      %2219 = vrot.lane.b32.xlu0 %v2197, 32
      %v2220 = vpop.permute.xlu0 %2219
      %2221 = vrot.lane.b32.xlu0 %v2198, 32
      %v2222 = vpop.permute.xlu0 %2221
      %2235 = vrot.lane.b32.xlu0 %v2199, 64
      %v2236 = vpop.permute.xlu0 %2235
      %2237 = vrot.lane.b32.xlu0 %v2200, 64
      %v2238 = vpop.permute.xlu0 %2237
      %2239 = vrot.lane.b32.xlu0 %v2201, 64
      %v2240 = vpop.permute.xlu0 %2239
      %2241 = vrot.lane.b32.xlu0 %v2202, 64
      %v2242 = vpop.permute.xlu0 %2241
      %2243 = vrot.lane.b32.xlu0 %v2203, 64
      %v2244 = vpop.permute.xlu0 %2243
      %2245 = vrot.lane.b32.xlu0 %v2204, 64
      %v2246 = vpop.permute.xlu0 %2245
      %v2253 = vsel %vm1354, %v2187, %v2212
      %v2254 = vsel %vm1354, %v2188, %v2214
      %v2255 = vsel %vm1354, %v2189, %v2216
      %v2256 = vsel %vm1354, %v2190, %v2218
      %v2257 = vsel %vm1354, %v2191, %v2220
      %v2258 = vsel %vm1354, %v2192, %v2222
      %v2259 = vsel %vm1531, %v2253, %v2236
      %v2260 = vsel %vm1531, %v2254, %v2238
      %v2261 = vsel %vm1531, %v2255, %v2240
      %v2262 = vsel %vm1531, %v2256, %v2242
      %v2263 = vsel %vm1531, %v2257, %v2244
      %v2264 = vsel %vm1531, %v2258, %v2246
      %v2265 = vpack.c.bf16 %v2260, %v2259
      %v2266 = vpack.c.bf16 %v2262, %v2261
      %v2267 = vpack.c.bf16 %v2264, %v2263
      %v2268 = vld [vmem:[%s39] sm:$0xf]
      %v2269 = vld [vmem:[%s39 + $0x4] sm:$0xf]
      %v2270 = vld [vmem:[%s39 + $0x8] sm:$0xf]
      %v2271 = vld [vmem:[%s39 + $0xc] sm:$0xf]
      %v2272 = vld [vmem:[%s39 + $0x10] sm:$0xf]
      %v2273 = vld [vmem:[%s39 + $0x14] sm:$0xf]
      %v2274 = vld [vmem:[%s39 + $0x18] sm:$0xf]
      %v2275 = vld [vmem:[%s39 + $0x1c] sm:$0xf]
      %v2276 = vld [vmem:[%s39 + $0x20] sm:$0xf]
      %v2277 = vld [vmem:[%s39 + $0x24] sm:$0xf]
      %v2278 = vld [vmem:[%s39 + $0x28] sm:$0xf]
      %v2279 = vld [vmem:[%s39 + $0x2c] sm:$0xf]
      %v2280 = vld [vmem:[%s41] sm:$0x1]
      %v2282 = vlaneseq
      %v2283 = vshrl.u32 %v2282, 7
      %v2284 = vsub.s32 0, %v2283
      %v2285 = vrot.slane %v2280, %v2284
      %v2299 = vunpack.c.l.b16 %v2268
      %v2300 = vunpack.c.l.b16 %v2269
      %v2301 = vunpack.c.l.b16 %v2270
      %v2302 = vunpack.c.l.b16 %v2271
      %v2303 = vunpack.c.l.b16 %v2272
      %v2304 = vunpack.c.l.b16 %v2273
      %v2305 = vunpack.c.l.b16 %v2274
      %v2306 = vunpack.c.l.b16 %v2275
      %v2307 = vunpack.c.l.b16 %v2276
      %v2308 = vunpack.c.l.b16 %v2277
      %v2309 = vunpack.c.l.b16 %v2278
      %v2310 = vunpack.c.l.b16 %v2279
      %v2311 = vpack.c.b16 %v2300, %v2299
      %v2312 = vpack.c.b16 %v2302, %v2301
      %v2313 = vpack.c.b16 %v2304, %v2303
      %v2314 = vpack.c.b16 %v2306, %v2305
      %v2315 = vpack.c.b16 %v2308, %v2307
      %v2316 = vpack.c.b16 %v2310, %v2309
      %v2324 = vsel %vm1596, %v2265, 0
      %v2327 = vsel %vm1596, %v2266, 0
      %v2330 = vsel %vm1596, %v2267, 0
      %2332 = vmatprep.subr.bf16.mxu0 0
      %2333 = vmatpush1.bf16.msra.mxu0 0
      %2334 = vmatprep.subr.bf16.mxu0 0
      %2335 = vmatpush1.bf16.msra.mxu0 0
      %2336 = vmatprep.subr.bf16.mxu0 0
      %2337 = vmatpush1.bf16.msra.mxu0 %v2316
      %2338 = vmatprep.subr.bf16.mxu0 0
      %2339 = vmatpush1.bf16.msra.mxu0 %v2315
      %2340 = vmatprep.subr.bf16.mxu0 0
      %2341 = vmatpush1.bf16.msra.mxu0 %v2314
      %2342 = vmatprep.subr.bf16.mxu0 0
      %2343 = vmatpush1.bf16.msra.mxu0 %v2313
      %2344 = vmatprep.subr.bf16.mxu0 0
      %2345 = vmatpush1.bf16.msra.mxu0 %v2312
      %2346 = vmatprep.subr.bf16.mxu0 0
      %2347 = vmatpush1.bf16.msra.mxu0 %v2311
      %2348 = vmatprep.subr.bf16.mxu0 0
      %2349 = vmatpush2.bf16.msra.mxu0 0
      %2350 = vmatprep.subr.bf16.mxu0 0
      %2351 = vmatpush2.bf16.msra.mxu0 0
      %2352 = vmatprep.subr.bf16.mxu0 0
      %2353 = vmatpush2.bf16.msra.mxu0 0
      %2354 = vmatprep.subr.bf16.mxu0 0
      %2355 = vmatpush2.bf16.msra.mxu0 0
      %2356 = vmatprep.subr.bf16.mxu0 0
      %2357 = vmatpush2.bf16.msra.mxu0 0
      %2358 = vmatprep.subr.bf16.mxu0 0
      %2359 = vmatpush2.bf16.msra.mxu0 0
      %2360 = vmatprep.subr.bf16.mxu0 0
      %2361 = vmatpush2.bf16.msra.mxu0 0
      %2362 = vmatprep.subr.bf16.mxu0 0
      %2363 = vmatpush2.bf16.msra.mxu0 0
      %2364 = vmatprep.mubr.bf16.mxu0 0
      %2365 = vmatmul.mubr.bf16.gmra.mxu0 %v2324
      %v2366 = vpop.f32.mrf.mxu0
      %v2367 = vadd.f32 %v2285, %v2366
      %v2368 = vpop.f32.mrf.mxu0
      %v2369 = vpop.f32.mrf.mxu0
      %v2370 = vadd.f32 %v2285, %v2369
      %v2371 = vpop.f32.mrf.mxu0
      %2372 = vmatprep.mubr.bf16.mxu0 0
      %2373 = vmatmul.mubr.bf16.gmra.mxu0 %v2327
      %v2374 = vpop.f32.mrf.mxu0
      %v2375 = vadd.f32 %v2285, %v2374
      %v2376 = vpop.f32.mrf.mxu0
      %v2377 = vpop.f32.mrf.mxu0
      %v2378 = vadd.f32 %v2285, %v2377
      %v2379 = vpop.f32.mrf.mxu0
      %2380 = vmatprep.mubr.bf16.mxu0 0
      %2381 = vmatmul.mubr.bf16.gmra.mxu0 %v2330
      %v2382 = vpop.f32.mrf.mxu0
      %v2383 = vadd.f32 %v2285, %v2382
      %v2384 = vpop.f32.mrf.mxu0
      %v2385 = vpop.f32.mrf.mxu0
      %v2386 = vadd.f32 %v2285, %v2385
      %v2387 = vpop.f32.mrf.mxu0
      %2388 = vdwg.mxu0
      %v2389 = vadd.f32 %v1903, %v2367
      %v2390 = vadd.f32 %v1904, %v2370
      %v2391 = vadd.f32 %v1905, %v2375
      %v2392 = vadd.f32 %v1906, %v2378
      %v2393 = vadd.f32 %v1907, %v2383
      %v2394 = vadd.f32 %v1908, %v2386
      %v2395 = vld [vmem:[%s43] sm:$0x1]
      %v2397 = vlaneseq
      %v2398 = vshrl.u32 %v2397, 7
      %v2399 = vsub.s32 0, %v2398
      %v2400 = vrot.slane %v2395, %v2399
      %v2402 = vmul.f32 %v2389, %v2400
      %v2403 = vmul.f32 %v2390, %v2400
      %v2404 = vmul.f32 %v2391, %v2400
      %v2405 = vmul.f32 %v2392, %v2400
      %v2406 = vmul.f32 %v2393, %v2400
      %v2407 = vmul.f32 %v2394, %v2400
      %v2408 = vld [vmem:[%s45] sm:$0x1]
      %v2410 = vlaneseq
      %v2411 = vshrl.u32 %v2410, 7
      %v2412 = vsub.s32 0, %v2411
      %v2413 = vrot.slane %v2408, %v2412
      %v2415 = vadd.f32 %v2402, %v2413
      %v2416 = vadd.f32 %v2403, %v2413
      %v2417 = vadd.f32 %v2404, %v2413
      %v2418 = vadd.f32 %v2405, %v2413
      %v2419 = vadd.f32 %v2406, %v2413
      %v2420 = vadd.f32 %v2407, %v2413
      %v2421 = vmax.f32 %v2415, 0.0
      %v2422 = vmax.f32 %v2416, 0.0
      %v2423 = vmax.f32 %v2417, 0.0
      %v2424 = vmax.f32 %v2418, 0.0
      %v2425 = vmax.f32 %v2419, 0.0
      %v2426 = vmax.f32 %v2420, 0.0
      %2427 = vst.msk [vmem:[#allocation2 + $0x8] sm:$0xff] %vm1354, %v2421
      %2428 = vst.msk [vmem:[#allocation2 + $0x10] sm:$0xff] %vm1354, %v2422
      %2429 = vst.msk [vmem:[#allocation2 + $0x18] sm:$0xff] %vm1354, %v2423
      %2430 = vst.msk [vmem:[#allocation2 + $0x20] sm:$0xff] %vm1354, %v2424
      %2431 = vst.msk [vmem:[#allocation2 + $0x28] sm:$0xff] %vm1354, %v2425
      %2432 = vst.msk [vmem:[#allocation2 + $0x30] sm:$0xff] %vm1354, %v2426
      %v2433 = vld [vmem:[#allocation2 + $0x6] sm:$0xff]
      %v2434 = vld [vmem:[#allocation2 + $0xe] sm:$0xff]
      %v2435 = vld [vmem:[#allocation2 + $0x16] sm:$0xff]
      %v2436 = vld [vmem:[#allocation2 + $0x1e] sm:$0xff]
      %v2437 = vld [vmem:[#allocation2 + $0x26] sm:$0xff]
      %v2438 = vld [vmem:[#allocation2 + $0x2e] sm:$0xff]
      %v2439 = vld [vmem:[#allocation2 + $0x8] sm:$0xff]
      %v2440 = vld [vmem:[#allocation2 + $0x10] sm:$0xff]
      %v2441 = vld [vmem:[#allocation2 + $0x18] sm:$0xff]
      %v2442 = vld [vmem:[#allocation2 + $0x20] sm:$0xff]
      %v2443 = vld [vmem:[#allocation2 + $0x28] sm:$0xff]
      %v2444 = vld [vmem:[#allocation2 + $0x30] sm:$0xff]
      %v2445 = vld [vmem:[#allocation2 + $0xa] sm:$0xff]
      %v2446 = vld [vmem:[#allocation2 + $0x12] sm:$0xff]
      %v2447 = vld [vmem:[#allocation2 + $0x1a] sm:$0xff]
      %v2448 = vld [vmem:[#allocation2 + $0x22] sm:$0xff]
      %v2449 = vld [vmem:[#allocation2 + $0x2a] sm:$0xff]
      %v2450 = vld [vmem:[#allocation2 + $0x32] sm:$0xff]
      %2457 = vrot.lane.b32.xlu0 %v2439, 32
      %v2458 = vpop.permute.xlu0 %2457
      %2459 = vrot.lane.b32.xlu0 %v2440, 32
      %v2460 = vpop.permute.xlu0 %2459
      %2461 = vrot.lane.b32.xlu0 %v2441, 32
      %v2462 = vpop.permute.xlu0 %2461
      %2463 = vrot.lane.b32.xlu0 %v2442, 32
      %v2464 = vpop.permute.xlu0 %2463
      %2465 = vrot.lane.b32.xlu0 %v2443, 32
      %v2466 = vpop.permute.xlu0 %2465
      %2467 = vrot.lane.b32.xlu0 %v2444, 32
      %v2468 = vpop.permute.xlu0 %2467
      %2481 = vrot.lane.b32.xlu0 %v2445, 64
      %v2482 = vpop.permute.xlu0 %2481
      %2483 = vrot.lane.b32.xlu0 %v2446, 64
      %v2484 = vpop.permute.xlu0 %2483
      %2485 = vrot.lane.b32.xlu0 %v2447, 64
      %v2486 = vpop.permute.xlu0 %2485
      %2487 = vrot.lane.b32.xlu0 %v2448, 64
      %v2488 = vpop.permute.xlu0 %2487
      %2489 = vrot.lane.b32.xlu0 %v2449, 64
      %v2490 = vpop.permute.xlu0 %2489
      %2491 = vrot.lane.b32.xlu0 %v2450, 64
      %v2492 = vpop.permute.xlu0 %2491
      %v2499 = vsel %vm1354, %v2433, %v2458
      %v2500 = vsel %vm1354, %v2434, %v2460
      %v2501 = vsel %vm1354, %v2435, %v2462
      %v2502 = vsel %vm1354, %v2436, %v2464
      %v2503 = vsel %vm1354, %v2437, %v2466
      %v2504 = vsel %vm1354, %v2438, %v2468
      %v2505 = vsel %vm1531, %v2499, %v2482
      %v2506 = vsel %vm1531, %v2500, %v2484
      %v2507 = vsel %vm1531, %v2501, %v2486
      %v2508 = vsel %vm1531, %v2502, %v2488
      %v2509 = vsel %vm1531, %v2503, %v2490
      %v2510 = vsel %vm1531, %v2504, %v2492
      %v2511 = vpack.c.bf16 %v2506, %v2505
      %v2512 = vpack.c.bf16 %v2508, %v2507
      %v2513 = vpack.c.bf16 %v2510, %v2509
      %v2514 = vld [vmem:[%s47] sm:$0xf]
      %v2515 = vld [vmem:[%s47 + $0x4] sm:$0xf]
      %v2516 = vld [vmem:[%s47 + $0x8] sm:$0xf]
      %v2517 = vld [vmem:[%s47 + $0xc] sm:$0xf]
      %v2518 = vld [vmem:[%s47 + $0x10] sm:$0xf]
      %v2519 = vld [vmem:[%s47 + $0x14] sm:$0xf]
      %v2520 = vld [vmem:[%s47 + $0x18] sm:$0xf]
      %v2521 = vld [vmem:[%s47 + $0x1c] sm:$0xf]
      %v2522 = vld [vmem:[%s47 + $0x20] sm:$0xf]
      %v2523 = vld [vmem:[%s47 + $0x24] sm:$0xf]
      %v2524 = vld [vmem:[%s47 + $0x28] sm:$0xf]
      %v2525 = vld [vmem:[%s47 + $0x2c] sm:$0xf]
      %v2526 = vld [vmem:[%s49] sm:$0x1]
      %v2528 = vlaneseq
      %v2529 = vshrl.u32 %v2528, 7
      %v2530 = vsub.s32 0, %v2529
      %v2531 = vrot.slane %v2526, %v2530
      %v2545 = vunpack.c.l.b16 %v2514
      %v2546 = vunpack.c.l.b16 %v2515
      %v2547 = vunpack.c.l.b16 %v2516
      %v2548 = vunpack.c.l.b16 %v2517
      %v2549 = vunpack.c.l.b16 %v2518
      %v2550 = vunpack.c.l.b16 %v2519
      %v2551 = vunpack.c.l.b16 %v2520
      %v2552 = vunpack.c.l.b16 %v2521
      %v2553 = vunpack.c.l.b16 %v2522
      %v2554 = vunpack.c.l.b16 %v2523
      %v2555 = vunpack.c.l.b16 %v2524
      %v2556 = vunpack.c.l.b16 %v2525
      %v2557 = vpack.c.b16 %v2546, %v2545
      %v2558 = vpack.c.b16 %v2548, %v2547
      %v2559 = vpack.c.b16 %v2550, %v2549
      %v2560 = vpack.c.b16 %v2552, %v2551
      %v2561 = vpack.c.b16 %v2554, %v2553
      %v2562 = vpack.c.b16 %v2556, %v2555
      %v2570 = vsel %vm1596, %v2511, 0
      %v2573 = vsel %vm1596, %v2512, 0
      %v2576 = vsel %vm1596, %v2513, 0
      %2578 = vmatprep.subr.bf16.mxu0 0
      %2579 = vmatpush1.bf16.msra.mxu0 0
      %2580 = vmatprep.subr.bf16.mxu0 0
      %2581 = vmatpush1.bf16.msra.mxu0 0
      %2582 = vmatprep.subr.bf16.mxu0 0
      %2583 = vmatpush1.bf16.msra.mxu0 %v2562
      %2584 = vmatprep.subr.bf16.mxu0 0
      %2585 = vmatpush1.bf16.msra.mxu0 %v2561
      %2586 = vmatprep.subr.bf16.mxu0 0
      %2587 = vmatpush1.bf16.msra.mxu0 %v2560
      %2588 = vmatprep.subr.bf16.mxu0 0
      %2589 = vmatpush1.bf16.msra.mxu0 %v2559
      %2590 = vmatprep.subr.bf16.mxu0 0
      %2591 = vmatpush1.bf16.msra.mxu0 %v2558
      %2592 = vmatprep.subr.bf16.mxu0 0
      %2593 = vmatpush1.bf16.msra.mxu0 %v2557
      %2594 = vmatprep.subr.bf16.mxu0 0
      %2595 = vmatpush2.bf16.msra.mxu0 0
      %2596 = vmatprep.subr.bf16.mxu0 0
      %2597 = vmatpush2.bf16.msra.mxu0 0
      %2598 = vmatprep.subr.bf16.mxu0 0
      %2599 = vmatpush2.bf16.msra.mxu0 0
      %2600 = vmatprep.subr.bf16.mxu0 0
      %2601 = vmatpush2.bf16.msra.mxu0 0
      %2602 = vmatprep.subr.bf16.mxu0 0
      %2603 = vmatpush2.bf16.msra.mxu0 0
      %2604 = vmatprep.subr.bf16.mxu0 0
      %2605 = vmatpush2.bf16.msra.mxu0 0
      %2606 = vmatprep.subr.bf16.mxu0 0
      %2607 = vmatpush2.bf16.msra.mxu0 0
      %2608 = vmatprep.subr.bf16.mxu0 0
      %2609 = vmatpush2.bf16.msra.mxu0 0
      %2610 = vmatprep.mubr.bf16.mxu0 0
      %2611 = vmatmul.mubr.bf16.gmra.mxu0 %v2570
      %v2612 = vpop.f32.mrf.mxu0
      %v2613 = vadd.f32 %v2531, %v2612
      %v2614 = vpop.f32.mrf.mxu0
      %v2615 = vpop.f32.mrf.mxu0
      %v2616 = vadd.f32 %v2531, %v2615
      %v2617 = vpop.f32.mrf.mxu0
      %2618 = vmatprep.mubr.bf16.mxu0 0
      %2619 = vmatmul.mubr.bf16.gmra.mxu0 %v2573
      %v2620 = vpop.f32.mrf.mxu0
      %v2621 = vadd.f32 %v2531, %v2620
      %v2622 = vpop.f32.mrf.mxu0
      %v2623 = vpop.f32.mrf.mxu0
      %v2624 = vadd.f32 %v2531, %v2623
      %v2625 = vpop.f32.mrf.mxu0
      %2626 = vmatprep.mubr.bf16.mxu0 0
      %2627 = vmatmul.mubr.bf16.gmra.mxu0 %v2576
      %v2628 = vpop.f32.mrf.mxu0
      %v2629 = vadd.f32 %v2531, %v2628
      %v2630 = vpop.f32.mrf.mxu0
      %v2631 = vpop.f32.mrf.mxu0
      %v2632 = vadd.f32 %v2531, %v2631
      %v2633 = vpop.f32.mrf.mxu0
      %2634 = vdwg.mxu0
      %v2635 = vld [vmem:[%s51] sm:$0x1]
      %v2637 = vlaneseq
      %v2638 = vshrl.u32 %v2637, 7
      %v2639 = vsub.s32 0, %v2638
      %v2640 = vrot.slane %v2635, %v2639
      %v2642 = vmul.f32 %v2613, %v2640
      %v2643 = vmul.f32 %v2616, %v2640
      %v2644 = vmul.f32 %v2621, %v2640
      %v2645 = vmul.f32 %v2624, %v2640
      %v2646 = vmul.f32 %v2629, %v2640
      %v2647 = vmul.f32 %v2632, %v2640
      %v2648 = vld [vmem:[%s53] sm:$0x1]
      %v2650 = vlaneseq
      %v2651 = vshrl.u32 %v2650, 7
      %v2652 = vsub.s32 0, %v2651
      %v2653 = vrot.slane %v2648, %v2652
      %v2655 = vadd.f32 %v2642, %v2653
      %v2656 = vadd.f32 %v2643, %v2653
      %v2657 = vadd.f32 %v2644, %v2653
      %v2658 = vadd.f32 %v2645, %v2653
      %v2659 = vadd.f32 %v2646, %v2653
      %v2660 = vadd.f32 %v2647, %v2653
      %v2661 = vmax.f32 %v2655, 0.0
      %v2662 = vmax.f32 %v2656, 0.0
      %v2663 = vmax.f32 %v2657, 0.0
      %v2664 = vmax.f32 %v2658, 0.0
      %v2665 = vmax.f32 %v2659, 0.0
      %v2666 = vmax.f32 %v2660, 0.0
      %2667 = vst.msk [vmem:[#allocation2 + $0x8] sm:$0xff] %vm1354, %v2661
      %2668 = vst.msk [vmem:[#allocation2 + $0x10] sm:$0xff] %vm1354, %v2662
      %2669 = vst.msk [vmem:[#allocation2 + $0x18] sm:$0xff] %vm1354, %v2663
      %2670 = vst.msk [vmem:[#allocation2 + $0x20] sm:$0xff] %vm1354, %v2664
      %2671 = vst.msk [vmem:[#allocation2 + $0x28] sm:$0xff] %vm1354, %v2665
      %2672 = vst.msk [vmem:[#allocation2 + $0x30] sm:$0xff] %vm1354, %v2666
      %v2673 = vld [vmem:[#allocation2 + $0x6] sm:$0xff]
      %v2674 = vld [vmem:[#allocation2 + $0xe] sm:$0xff]
      %v2675 = vld [vmem:[#allocation2 + $0x16] sm:$0xff]
      %v2676 = vld [vmem:[#allocation2 + $0x1e] sm:$0xff]
      %v2677 = vld [vmem:[#allocation2 + $0x26] sm:$0xff]
      %v2678 = vld [vmem:[#allocation2 + $0x2e] sm:$0xff]
      %v2679 = vld [vmem:[#allocation2 + $0x8] sm:$0xff]
      %v2680 = vld [vmem:[#allocation2 + $0x10] sm:$0xff]
      %v2681 = vld [vmem:[#allocation2 + $0x18] sm:$0xff]
      %v2682 = vld [vmem:[#allocation2 + $0x20] sm:$0xff]
      %v2683 = vld [vmem:[#allocation2 + $0x28] sm:$0xff]
      %v2684 = vld [vmem:[#allocation2 + $0x30] sm:$0xff]
      %v2685 = vld [vmem:[#allocation2 + $0xa] sm:$0xff]
      %v2686 = vld [vmem:[#allocation2 + $0x12] sm:$0xff]
      %v2687 = vld [vmem:[#allocation2 + $0x1a] sm:$0xff]
      %v2688 = vld [vmem:[#allocation2 + $0x22] sm:$0xff]
      %v2689 = vld [vmem:[#allocation2 + $0x2a] sm:$0xff]
      %v2690 = vld [vmem:[#allocation2 + $0x32] sm:$0xff]
      %2697 = vrot.lane.b32.xlu0 %v2679, 32
      %v2698 = vpop.permute.xlu0 %2697
      %2699 = vrot.lane.b32.xlu0 %v2680, 32
      %v2700 = vpop.permute.xlu0 %2699
      %2701 = vrot.lane.b32.xlu0 %v2681, 32
      %v2702 = vpop.permute.xlu0 %2701
      %2703 = vrot.lane.b32.xlu0 %v2682, 32
      %v2704 = vpop.permute.xlu0 %2703
      %2705 = vrot.lane.b32.xlu0 %v2683, 32
      %v2706 = vpop.permute.xlu0 %2705
      %2707 = vrot.lane.b32.xlu0 %v2684, 32
      %v2708 = vpop.permute.xlu0 %2707
      %2721 = vrot.lane.b32.xlu0 %v2685, 64
      %v2722 = vpop.permute.xlu0 %2721
      %2723 = vrot.lane.b32.xlu0 %v2686, 64
      %v2724 = vpop.permute.xlu0 %2723
      %2725 = vrot.lane.b32.xlu0 %v2687, 64
      %v2726 = vpop.permute.xlu0 %2725
      %2727 = vrot.lane.b32.xlu0 %v2688, 64
      %v2728 = vpop.permute.xlu0 %2727
      %2729 = vrot.lane.b32.xlu0 %v2689, 64
      %v2730 = vpop.permute.xlu0 %2729
      %2731 = vrot.lane.b32.xlu0 %v2690, 64
      %v2732 = vpop.permute.xlu0 %2731
      %v2739 = vsel %vm1354, %v2673, %v2698
      %v2740 = vsel %vm1354, %v2674, %v2700
      %v2741 = vsel %vm1354, %v2675, %v2702
      %v2742 = vsel %vm1354, %v2676, %v2704
      %v2743 = vsel %vm1354, %v2677, %v2706
      %v2744 = vsel %vm1354, %v2678, %v2708
      %v2745 = vsel %vm1531, %v2739, %v2722
      %v2746 = vsel %vm1531, %v2740, %v2724
      %v2747 = vsel %vm1531, %v2741, %v2726
      %v2748 = vsel %vm1531, %v2742, %v2728
      %v2749 = vsel %vm1531, %v2743, %v2730
      %v2750 = vsel %vm1531, %v2744, %v2732
      %v2751 = vpack.c.bf16 %v2746, %v2745
      %v2752 = vpack.c.bf16 %v2748, %v2747
      %v2753 = vpack.c.bf16 %v2750, %v2749
      %v2754 = vld [vmem:[%s55] sm:$0xf]
      %v2755 = vld [vmem:[%s55 + $0x4] sm:$0xf]
      %v2756 = vld [vmem:[%s55 + $0x8] sm:$0xf]
      %v2757 = vld [vmem:[%s55 + $0xc] sm:$0xf]
      %v2758 = vld [vmem:[%s55 + $0x10] sm:$0xf]
      %v2759 = vld [vmem:[%s55 + $0x14] sm:$0xf]
      %v2760 = vld [vmem:[%s55 + $0x18] sm:$0xf]
      %v2761 = vld [vmem:[%s55 + $0x1c] sm:$0xf]
      %v2762 = vld [vmem:[%s55 + $0x20] sm:$0xf]
      %v2763 = vld [vmem:[%s55 + $0x24] sm:$0xf]
      %v2764 = vld [vmem:[%s55 + $0x28] sm:$0xf]
      %v2765 = vld [vmem:[%s55 + $0x2c] sm:$0xf]
      %v2766 = vld [vmem:[%s57] sm:$0x1]
      %v2768 = vlaneseq
      %v2769 = vshrl.u32 %v2768, 7
      %v2770 = vsub.s32 0, %v2769
      %v2771 = vrot.slane %v2766, %v2770
      %v2785 = vunpack.c.l.b16 %v2754
      %v2786 = vunpack.c.l.b16 %v2755
      %v2787 = vunpack.c.l.b16 %v2756
      %v2788 = vunpack.c.l.b16 %v2757
      %v2789 = vunpack.c.l.b16 %v2758
      %v2790 = vunpack.c.l.b16 %v2759
      %v2791 = vunpack.c.l.b16 %v2760
      %v2792 = vunpack.c.l.b16 %v2761
      %v2793 = vunpack.c.l.b16 %v2762
      %v2794 = vunpack.c.l.b16 %v2763
      %v2795 = vunpack.c.l.b16 %v2764
      %v2796 = vunpack.c.l.b16 %v2765
      %v2797 = vpack.c.b16 %v2786, %v2785
      %v2798 = vpack.c.b16 %v2788, %v2787
      %v2799 = vpack.c.b16 %v2790, %v2789
      %v2800 = vpack.c.b16 %v2792, %v2791
      %v2801 = vpack.c.b16 %v2794, %v2793
      %v2802 = vpack.c.b16 %v2796, %v2795
      %v2810 = vsel %vm1596, %v2751, 0
      %v2813 = vsel %vm1596, %v2752, 0
      %v2816 = vsel %vm1596, %v2753, 0
      %2818 = vmatprep.subr.bf16.mxu0 0
      %2819 = vmatpush1.bf16.msra.mxu0 0
      %2820 = vmatprep.subr.bf16.mxu0 0
      %2821 = vmatpush1.bf16.msra.mxu0 0
      %2822 = vmatprep.subr.bf16.mxu0 0
      %2823 = vmatpush1.bf16.msra.mxu0 %v2802
      %2824 = vmatprep.subr.bf16.mxu0 0
      %2825 = vmatpush1.bf16.msra.mxu0 %v2801
      %2826 = vmatprep.subr.bf16.mxu0 0
      %2827 = vmatpush1.bf16.msra.mxu0 %v2800
      %2828 = vmatprep.subr.bf16.mxu0 0
      %2829 = vmatpush1.bf16.msra.mxu0 %v2799
      %2830 = vmatprep.subr.bf16.mxu0 0
      %2831 = vmatpush1.bf16.msra.mxu0 %v2798
      %2832 = vmatprep.subr.bf16.mxu0 0
      %2833 = vmatpush1.bf16.msra.mxu0 %v2797
      %2834 = vmatprep.subr.bf16.mxu0 0
      %2835 = vmatpush2.bf16.msra.mxu0 0
      %2836 = vmatprep.subr.bf16.mxu0 0
      %2837 = vmatpush2.bf16.msra.mxu0 0
      %2838 = vmatprep.subr.bf16.mxu0 0
      %2839 = vmatpush2.bf16.msra.mxu0 0
      %2840 = vmatprep.subr.bf16.mxu0 0
      %2841 = vmatpush2.bf16.msra.mxu0 0
      %2842 = vmatprep.subr.bf16.mxu0 0
      %2843 = vmatpush2.bf16.msra.mxu0 0
      %2844 = vmatprep.subr.bf16.mxu0 0
      %2845 = vmatpush2.bf16.msra.mxu0 0
      %2846 = vmatprep.subr.bf16.mxu0 0
      %2847 = vmatpush2.bf16.msra.mxu0 0
      %2848 = vmatprep.subr.bf16.mxu0 0
      %2849 = vmatpush2.bf16.msra.mxu0 0
      %2850 = vmatprep.mubr.bf16.mxu0 0
      %2851 = vmatmul.mubr.bf16.gmra.mxu0 %v2810
      %v2852 = vpop.f32.mrf.mxu0
      %v2853 = vadd.f32 %v2771, %v2852
      %v2854 = vpop.f32.mrf.mxu0
      %v2855 = vpop.f32.mrf.mxu0
      %v2856 = vadd.f32 %v2771, %v2855
      %v2857 = vpop.f32.mrf.mxu0
      %2858 = vmatprep.mubr.bf16.mxu0 0
      %2859 = vmatmul.mubr.bf16.gmra.mxu0 %v2813
      %v2860 = vpop.f32.mrf.mxu0
      %v2861 = vadd.f32 %v2771, %v2860
      %v2862 = vpop.f32.mrf.mxu0
      %v2863 = vpop.f32.mrf.mxu0
      %v2864 = vadd.f32 %v2771, %v2863
      %v2865 = vpop.f32.mrf.mxu0
      %2866 = vmatprep.mubr.bf16.mxu0 0
      %2867 = vmatmul.mubr.bf16.gmra.mxu0 %v2816
      %v2868 = vpop.f32.mrf.mxu0
      %v2869 = vadd.f32 %v2771, %v2868
      %v2870 = vpop.f32.mrf.mxu0
      %v2871 = vpop.f32.mrf.mxu0
      %v2872 = vadd.f32 %v2771, %v2871
      %v2873 = vpop.f32.mrf.mxu0
      %2874 = vdwg.mxu0
      %v2875 = vadd.f32 %v2389, %v2853
      %v2876 = vadd.f32 %v2390, %v2856
      %v2877 = vadd.f32 %v2391, %v2861
      %v2878 = vadd.f32 %v2392, %v2864
      %v2879 = vadd.f32 %v2393, %v2869
      %v2880 = vadd.f32 %v2394, %v2872
      %v2881 = vld [vmem:[%s59] sm:$0x1]
      %v2883 = vlaneseq
      %v2884 = vshrl.u32 %v2883, 7
      %v2885 = vsub.s32 0, %v2884
      %v2886 = vrot.slane %v2881, %v2885
      %v2888 = vmul.f32 %v2875, %v2886
      %v2889 = vmul.f32 %v2876, %v2886
      %v2890 = vmul.f32 %v2877, %v2886
      %v2891 = vmul.f32 %v2878, %v2886
      %v2892 = vmul.f32 %v2879, %v2886
      %v2893 = vmul.f32 %v2880, %v2886
      %v2894 = vld [vmem:[%s61] sm:$0x1]
      %v2896 = vlaneseq
      %v2897 = vshrl.u32 %v2896, 7
      %v2898 = vsub.s32 0, %v2897
      %v2899 = vrot.slane %v2894, %v2898
      %v2901 = vadd.f32 %v2888, %v2899
      %v2902 = vadd.f32 %v2889, %v2899
      %v2903 = vadd.f32 %v2890, %v2899
      %v2904 = vadd.f32 %v2891, %v2899
      %v2905 = vadd.f32 %v2892, %v2899
      %v2906 = vadd.f32 %v2893, %v2899
      %v2907 = vmax.f32 %v2901, 0.0
      %v2908 = vmax.f32 %v2902, 0.0
      %v2909 = vmax.f32 %v2903, 0.0
      %v2910 = vmax.f32 %v2904, 0.0
      %v2911 = vmax.f32 %v2905, 0.0
      %v2912 = vmax.f32 %v2906, 0.0
      %2913 = vst.msk [vmem:[#allocation2 + $0x8] sm:$0xff] %vm1354, %v2907
      %2914 = vst.msk [vmem:[#allocation2 + $0x10] sm:$0xff] %vm1354, %v2908
      %2915 = vst.msk [vmem:[#allocation2 + $0x18] sm:$0xff] %vm1354, %v2909
      %2916 = vst.msk [vmem:[#allocation2 + $0x20] sm:$0xff] %vm1354, %v2910
      %2917 = vst.msk [vmem:[#allocation2 + $0x28] sm:$0xff] %vm1354, %v2911
      %2918 = vst.msk [vmem:[#allocation2 + $0x30] sm:$0xff] %vm1354, %v2912
      %v2919 = vld [vmem:[#allocation2 + $0x6] sm:$0xff]
      %v2920 = vld [vmem:[#allocation2 + $0xe] sm:$0xff]
      %v2921 = vld [vmem:[#allocation2 + $0x16] sm:$0xff]
      %v2922 = vld [vmem:[#allocation2 + $0x1e] sm:$0xff]
      %v2923 = vld [vmem:[#allocation2 + $0x26] sm:$0xff]
      %v2924 = vld [vmem:[#allocation2 + $0x2e] sm:$0xff]
      %v2925 = vld [vmem:[#allocation2 + $0x8] sm:$0xff]
      %v2926 = vld [vmem:[#allocation2 + $0x10] sm:$0xff]
      %v2927 = vld [vmem:[#allocation2 + $0x18] sm:$0xff]
      %v2928 = vld [vmem:[#allocation2 + $0x20] sm:$0xff]
      %v2929 = vld [vmem:[#allocation2 + $0x28] sm:$0xff]
      %v2930 = vld [vmem:[#allocation2 + $0x30] sm:$0xff]
      %v2931 = vld [vmem:[#allocation2 + $0xa] sm:$0xff]
      %v2932 = vld [vmem:[#allocation2 + $0x12] sm:$0xff]
      %v2933 = vld [vmem:[#allocation2 + $0x1a] sm:$0xff]
      %v2934 = vld [vmem:[#allocation2 + $0x22] sm:$0xff]
      %v2935 = vld [vmem:[#allocation2 + $0x2a] sm:$0xff]
      %v2936 = vld [vmem:[#allocation2 + $0x32] sm:$0xff]
      %2943 = vrot.lane.b32.xlu0 %v2925, 32
      %v2944 = vpop.permute.xlu0 %2943
      %2945 = vrot.lane.b32.xlu0 %v2926, 32
      %v2946 = vpop.permute.xlu0 %2945
      %2947 = vrot.lane.b32.xlu0 %v2927, 32
      %v2948 = vpop.permute.xlu0 %2947
      %2949 = vrot.lane.b32.xlu0 %v2928, 32
      %v2950 = vpop.permute.xlu0 %2949
      %2951 = vrot.lane.b32.xlu0 %v2929, 32
      %v2952 = vpop.permute.xlu0 %2951
      %2953 = vrot.lane.b32.xlu0 %v2930, 32
      %v2954 = vpop.permute.xlu0 %2953
      %2967 = vrot.lane.b32.xlu0 %v2931, 64
      %v2968 = vpop.permute.xlu0 %2967
      %2969 = vrot.lane.b32.xlu0 %v2932, 64
      %v2970 = vpop.permute.xlu0 %2969
      %2971 = vrot.lane.b32.xlu0 %v2933, 64
      %v2972 = vpop.permute.xlu0 %2971
      %2973 = vrot.lane.b32.xlu0 %v2934, 64
      %v2974 = vpop.permute.xlu0 %2973
      %2975 = vrot.lane.b32.xlu0 %v2935, 64
      %v2976 = vpop.permute.xlu0 %2975
      %2977 = vrot.lane.b32.xlu0 %v2936, 64
      %v2978 = vpop.permute.xlu0 %2977
      %v2985 = vsel %vm1354, %v2919, %v2944
      %v2986 = vsel %vm1354, %v2920, %v2946
      %v2987 = vsel %vm1354, %v2921, %v2948
      %v2988 = vsel %vm1354, %v2922, %v2950
      %v2989 = vsel %vm1354, %v2923, %v2952
      %v2990 = vsel %vm1354, %v2924, %v2954
      %v2991 = vsel %vm1531, %v2985, %v2968
      %v2992 = vsel %vm1531, %v2986, %v2970
      %v2993 = vsel %vm1531, %v2987, %v2972
      %v2994 = vsel %vm1531, %v2988, %v2974
      %v2995 = vsel %vm1531, %v2989, %v2976
      %v2996 = vsel %vm1531, %v2990, %v2978
      %v2997 = vpack.c.bf16 %v2992, %v2991
      %v2998 = vpack.c.bf16 %v2994, %v2993
      %v2999 = vpack.c.bf16 %v2996, %v2995
      %v3000 = vld [vmem:[%s63] sm:$0xf]
      %v3001 = vld [vmem:[%s63 + $0x4] sm:$0xf]
      %v3002 = vld [vmem:[%s63 + $0x8] sm:$0xf]
      %v3003 = vld [vmem:[%s63 + $0xc] sm:$0xf]
      %v3004 = vld [vmem:[%s63 + $0x10] sm:$0xf]
      %v3005 = vld [vmem:[%s63 + $0x14] sm:$0xf]
      %v3006 = vld [vmem:[%s63 + $0x18] sm:$0xf]
      %v3007 = vld [vmem:[%s63 + $0x1c] sm:$0xf]
      %v3008 = vld [vmem:[%s63 + $0x20] sm:$0xf]
      %v3009 = vld [vmem:[%s63 + $0x24] sm:$0xf]
      %v3010 = vld [vmem:[%s63 + $0x28] sm:$0xf]
      %v3011 = vld [vmem:[%s63 + $0x2c] sm:$0xf]
      %v3012 = vld [vmem:[%s65] sm:$0x1]
      %v3014 = vlaneseq
      %v3015 = vshrl.u32 %v3014, 7
      %v3016 = vsub.s32 0, %v3015
      %v3017 = vrot.slane %v3012, %v3016
      %v3031 = vunpack.c.l.b16 %v3000
      %v3032 = vunpack.c.l.b16 %v3001
      %v3033 = vunpack.c.l.b16 %v3002
      %v3034 = vunpack.c.l.b16 %v3003
      %v3035 = vunpack.c.l.b16 %v3004
      %v3036 = vunpack.c.l.b16 %v3005
      %v3037 = vunpack.c.l.b16 %v3006
      %v3038 = vunpack.c.l.b16 %v3007
      %v3039 = vunpack.c.l.b16 %v3008
      %v3040 = vunpack.c.l.b16 %v3009
      %v3041 = vunpack.c.l.b16 %v3010
      %v3042 = vunpack.c.l.b16 %v3011
      %v3043 = vpack.c.b16 %v3032, %v3031
      %v3044 = vpack.c.b16 %v3034, %v3033
      %v3045 = vpack.c.b16 %v3036, %v3035
      %v3046 = vpack.c.b16 %v3038, %v3037
      %v3047 = vpack.c.b16 %v3040, %v3039
      %v3048 = vpack.c.b16 %v3042, %v3041
      %v3056 = vsel %vm1596, %v2997, 0
      %v3059 = vsel %vm1596, %v2998, 0
      %v3062 = vsel %vm1596, %v2999, 0
      %3064 = vmatprep.subr.bf16.mxu0 0
      %3065 = vmatpush1.bf16.msra.mxu0 0
      %3066 = vmatprep.subr.bf16.mxu0 0
      %3067 = vmatpush1.bf16.msra.mxu0 0
      %3068 = vmatprep.subr.bf16.mxu0 0
      %3069 = vmatpush1.bf16.msra.mxu0 %v3048
      %3070 = vmatprep.subr.bf16.mxu0 0
      %3071 = vmatpush1.bf16.msra.mxu0 %v3047
      %3072 = vmatprep.subr.bf16.mxu0 0
      %3073 = vmatpush1.bf16.msra.mxu0 %v3046
      %3074 = vmatprep.subr.bf16.mxu0 0
      %3075 = vmatpush1.bf16.msra.mxu0 %v3045
      %3076 = vmatprep.subr.bf16.mxu0 0
      %3077 = vmatpush1.bf16.msra.mxu0 %v3044
      %3078 = vmatprep.subr.bf16.mxu0 0
      %3079 = vmatpush1.bf16.msra.mxu0 %v3043
      %3080 = vmatprep.subr.bf16.mxu0 0
      %3081 = vmatpush2.bf16.msra.mxu0 0
      %3082 = vmatprep.subr.bf16.mxu0 0
      %3083 = vmatpush2.bf16.msra.mxu0 0
      %3084 = vmatprep.subr.bf16.mxu0 0
      %3085 = vmatpush2.bf16.msra.mxu0 0
      %3086 = vmatprep.subr.bf16.mxu0 0
      %3087 = vmatpush2.bf16.msra.mxu0 0
      %3088 = vmatprep.subr.bf16.mxu0 0
      %3089 = vmatpush2.bf16.msra.mxu0 0
      %3090 = vmatprep.subr.bf16.mxu0 0
      %3091 = vmatpush2.bf16.msra.mxu0 0
      %3092 = vmatprep.subr.bf16.mxu0 0
      %3093 = vmatpush2.bf16.msra.mxu0 0
      %3094 = vmatprep.subr.bf16.mxu0 0
      %3095 = vmatpush2.bf16.msra.mxu0 0
      %3096 = vmatprep.mubr.bf16.mxu0 0
      %3097 = vmatmul.mubr.bf16.gmra.mxu0 %v3056
      %v3098 = vpop.f32.mrf.mxu0
      %v3099 = vadd.f32 %v3017, %v3098
      %v3100 = vpop.f32.mrf.mxu0
      %v3101 = vpop.f32.mrf.mxu0
      %v3102 = vadd.f32 %v3017, %v3101
      %v3103 = vpop.f32.mrf.mxu0
      %3104 = vmatprep.mubr.bf16.mxu0 0
      %3105 = vmatmul.mubr.bf16.gmra.mxu0 %v3059
      %v3106 = vpop.f32.mrf.mxu0
      %v3107 = vadd.f32 %v3017, %v3106
      %v3108 = vpop.f32.mrf.mxu0
      %v3109 = vpop.f32.mrf.mxu0
      %v3110 = vadd.f32 %v3017, %v3109
      %v3111 = vpop.f32.mrf.mxu0
      %3112 = vmatprep.mubr.bf16.mxu0 0
      %3113 = vmatmul.mubr.bf16.gmra.mxu0 %v3062
      %v3114 = vpop.f32.mrf.mxu0
      %v3115 = vadd.f32 %v3017, %v3114
      %v3116 = vpop.f32.mrf.mxu0
      %v3117 = vpop.f32.mrf.mxu0
      %v3118 = vadd.f32 %v3017, %v3117
      %v3119 = vpop.f32.mrf.mxu0
      %3120 = vdwg.mxu0
      %v3121 = vld [vmem:[%s67] sm:$0x1]
      %v3123 = vlaneseq
      %v3124 = vshrl.u32 %v3123, 7
      %v3125 = vsub.s32 0, %v3124
      %v3126 = vrot.slane %v3121, %v3125
      %v3128 = vmul.f32 %v3099, %v3126
      %v3129 = vmul.f32 %v3102, %v3126
      %v3130 = vmul.f32 %v3107, %v3126
      %v3131 = vmul.f32 %v3110, %v3126
      %v3132 = vmul.f32 %v3115, %v3126
      %v3133 = vmul.f32 %v3118, %v3126
      %v3134 = vld [vmem:[%s69] sm:$0x1]
      %v3136 = vlaneseq
      %v3137 = vshrl.u32 %v3136, 7
      %v3138 = vsub.s32 0, %v3137
      %v3139 = vrot.slane %v3134, %v3138
      %v3141 = vadd.f32 %v3128, %v3139
      %v3142 = vadd.f32 %v3129, %v3139
      %v3143 = vadd.f32 %v3130, %v3139
      %v3144 = vadd.f32 %v3131, %v3139
      %v3145 = vadd.f32 %v3132, %v3139
      %v3146 = vadd.f32 %v3133, %v3139
      %v3147 = vmax.f32 %v3141, 0.0
      %v3148 = vmax.f32 %v3142, 0.0
      %v3149 = vmax.f32 %v3143, 0.0
      %v3150 = vmax.f32 %v3144, 0.0
      %v3151 = vmax.f32 %v3145, 0.0
      %v3152 = vmax.f32 %v3146, 0.0
      %3153 = vst.msk [vmem:[#allocation2 + $0x8] sm:$0xff] %vm1354, %v3147
      %3154 = vst.msk [vmem:[#allocation2 + $0x10] sm:$0xff] %vm1354, %v3148
      %3155 = vst.msk [vmem:[#allocation2 + $0x18] sm:$0xff] %vm1354, %v3149
      %3156 = vst.msk [vmem:[#allocation2 + $0x20] sm:$0xff] %vm1354, %v3150
      %3157 = vst.msk [vmem:[#allocation2 + $0x28] sm:$0xff] %vm1354, %v3151
      %3158 = vst.msk [vmem:[#allocation2 + $0x30] sm:$0xff] %vm1354, %v3152
      %v3159 = vld [vmem:[#allocation2 + $0x6] sm:$0xff]
      %v3160 = vld [vmem:[#allocation2 + $0xe] sm:$0xff]
      %v3161 = vld [vmem:[#allocation2 + $0x16] sm:$0xff]
      %v3162 = vld [vmem:[#allocation2 + $0x1e] sm:$0xff]
      %v3163 = vld [vmem:[#allocation2 + $0x26] sm:$0xff]
      %v3164 = vld [vmem:[#allocation2 + $0x2e] sm:$0xff]
      %v3165 = vld [vmem:[#allocation2 + $0x8] sm:$0xff]
      %v3166 = vld [vmem:[#allocation2 + $0x10] sm:$0xff]
      %v3167 = vld [vmem:[#allocation2 + $0x18] sm:$0xff]
      %v3168 = vld [vmem:[#allocation2 + $0x20] sm:$0xff]
      %v3169 = vld [vmem:[#allocation2 + $0x28] sm:$0xff]
      %v3170 = vld [vmem:[#allocation2 + $0x30] sm:$0xff]
      %v3171 = vld [vmem:[#allocation2 + $0xa] sm:$0xff]
      %v3172 = vld [vmem:[#allocation2 + $0x12] sm:$0xff]
      %v3173 = vld [vmem:[#allocation2 + $0x1a] sm:$0xff]
      %v3174 = vld [vmem:[#allocation2 + $0x22] sm:$0xff]
      %v3175 = vld [vmem:[#allocation2 + $0x2a] sm:$0xff]
      %v3176 = vld [vmem:[#allocation2 + $0x32] sm:$0xff]
      %3183 = vrot.lane.b32.xlu0 %v3165, 32
      %v3184 = vpop.permute.xlu0 %3183
      %3185 = vrot.lane.b32.xlu0 %v3166, 32
      %v3186 = vpop.permute.xlu0 %3185
      %3187 = vrot.lane.b32.xlu0 %v3167, 32
      %v3188 = vpop.permute.xlu0 %3187
      %3189 = vrot.lane.b32.xlu0 %v3168, 32
      %v3190 = vpop.permute.xlu0 %3189
      %3191 = vrot.lane.b32.xlu0 %v3169, 32
      %v3192 = vpop.permute.xlu0 %3191
      %3193 = vrot.lane.b32.xlu0 %v3170, 32
      %v3194 = vpop.permute.xlu0 %3193
      %3207 = vrot.lane.b32.xlu0 %v3171, 64
      %v3208 = vpop.permute.xlu0 %3207
      %3209 = vrot.lane.b32.xlu0 %v3172, 64
      %v3210 = vpop.permute.xlu0 %3209
      %3211 = vrot.lane.b32.xlu0 %v3173, 64
      %v3212 = vpop.permute.xlu0 %3211
      %3213 = vrot.lane.b32.xlu0 %v3174, 64
      %v3214 = vpop.permute.xlu0 %3213
      %3215 = vrot.lane.b32.xlu0 %v3175, 64
      %v3216 = vpop.permute.xlu0 %3215
      %3217 = vrot.lane.b32.xlu0 %v3176, 64
      %v3218 = vpop.permute.xlu0 %3217
      %v3225 = vsel %vm1354, %v3159, %v3184
      %v3226 = vsel %vm1354, %v3160, %v3186
      %v3227 = vsel %vm1354, %v3161, %v3188
      %v3228 = vsel %vm1354, %v3162, %v3190
      %v3229 = vsel %vm1354, %v3163, %v3192
      %v3230 = vsel %vm1354, %v3164, %v3194
      %v3231 = vsel %vm1531, %v3225, %v3208
      %v3232 = vsel %vm1531, %v3226, %v3210
      %v3233 = vsel %vm1531, %v3227, %v3212
      %v3234 = vsel %vm1531, %v3228, %v3214
      %v3235 = vsel %vm1531, %v3229, %v3216
      %v3236 = vsel %vm1531, %v3230, %v3218
      %v3237 = vpack.c.bf16 %v3232, %v3231
      %v3238 = vpack.c.bf16 %v3234, %v3233
      %v3239 = vpack.c.bf16 %v3236, %v3235
      %v3240 = vld [vmem:[%s71] sm:$0xf]
      %v3241 = vld [vmem:[%s71 + $0x4] sm:$0xf]
      %v3242 = vld [vmem:[%s71 + $0x8] sm:$0xf]
      %v3243 = vld [vmem:[%s71 + $0xc] sm:$0xf]
      %v3244 = vld [vmem:[%s71 + $0x10] sm:$0xf]
      %v3245 = vld [vmem:[%s71 + $0x14] sm:$0xf]
      %v3246 = vld [vmem:[%s71 + $0x18] sm:$0xf]
      %v3247 = vld [vmem:[%s71 + $0x1c] sm:$0xf]
      %v3248 = vld [vmem:[%s71 + $0x20] sm:$0xf]
      %v3249 = vld [vmem:[%s71 + $0x24] sm:$0xf]
      %v3250 = vld [vmem:[%s71 + $0x28] sm:$0xf]
      %v3251 = vld [vmem:[%s71 + $0x2c] sm:$0xf]
      %v3252 = vld [vmem:[%s73] sm:$0x1]
      %v3254 = vlaneseq
      %v3255 = vshrl.u32 %v3254, 7
      %v3256 = vsub.s32 0, %v3255
      %v3257 = vrot.slane %v3252, %v3256
      %v3271 = vunpack.c.l.b16 %v3240
      %v3272 = vunpack.c.l.b16 %v3241
      %v3273 = vunpack.c.l.b16 %v3242
      %v3274 = vunpack.c.l.b16 %v3243
      %v3275 = vunpack.c.l.b16 %v3244
      %v3276 = vunpack.c.l.b16 %v3245
      %v3277 = vunpack.c.l.b16 %v3246
      %v3278 = vunpack.c.l.b16 %v3247
      %v3279 = vunpack.c.l.b16 %v3248
      %v3280 = vunpack.c.l.b16 %v3249
      %v3281 = vunpack.c.l.b16 %v3250
      %v3282 = vunpack.c.l.b16 %v3251
      %v3283 = vpack.c.b16 %v3272, %v3271
      %v3284 = vpack.c.b16 %v3274, %v3273
      %v3285 = vpack.c.b16 %v3276, %v3275
      %v3286 = vpack.c.b16 %v3278, %v3277
      %v3287 = vpack.c.b16 %v3280, %v3279
      %v3288 = vpack.c.b16 %v3282, %v3281
      %v3296 = vsel %vm1596, %v3237, 0
      %v3299 = vsel %vm1596, %v3238, 0
      %v3302 = vsel %vm1596, %v3239, 0
      %3304 = vmatprep.subr.bf16.mxu0 0
      %3305 = vmatpush1.bf16.msra.mxu0 0
      %3306 = vmatprep.subr.bf16.mxu0 0
      %3307 = vmatpush1.bf16.msra.mxu0 0
      %3308 = vmatprep.subr.bf16.mxu0 0
      %3309 = vmatpush1.bf16.msra.mxu0 %v3288
      %3310 = vmatprep.subr.bf16.mxu0 0
      %3311 = vmatpush1.bf16.msra.mxu0 %v3287
      %3312 = vmatprep.subr.bf16.mxu0 0
      %3313 = vmatpush1.bf16.msra.mxu0 %v3286
      %3314 = vmatprep.subr.bf16.mxu0 0
      %3315 = vmatpush1.bf16.msra.mxu0 %v3285
      %3316 = vmatprep.subr.bf16.mxu0 0
      %3317 = vmatpush1.bf16.msra.mxu0 %v3284
      %3318 = vmatprep.subr.bf16.mxu0 0
      %3319 = vmatpush1.bf16.msra.mxu0 %v3283
      %3320 = vmatprep.subr.bf16.mxu0 0
      %3321 = vmatpush2.bf16.msra.mxu0 0
      %3322 = vmatprep.subr.bf16.mxu0 0
      %3323 = vmatpush2.bf16.msra.mxu0 0
      %3324 = vmatprep.subr.bf16.mxu0 0
      %3325 = vmatpush2.bf16.msra.mxu0 0
      %3326 = vmatprep.subr.bf16.mxu0 0
      %3327 = vmatpush2.bf16.msra.mxu0 0
      %3328 = vmatprep.subr.bf16.mxu0 0
      %3329 = vmatpush2.bf16.msra.mxu0 0
      %3330 = vmatprep.subr.bf16.mxu0 0
      %3331 = vmatpush2.bf16.msra.mxu0 0
      %3332 = vmatprep.subr.bf16.mxu0 0
      %3333 = vmatpush2.bf16.msra.mxu0 0
      %3334 = vmatprep.subr.bf16.mxu0 0
      %3335 = vmatpush2.bf16.msra.mxu0 0
      %3336 = vmatprep.mubr.bf16.mxu0 0
      %3337 = vmatmul.mubr.bf16.gmra.mxu0 %v3296
      %v3338 = vpop.f32.mrf.mxu0
      %v3339 = vadd.f32 %v3257, %v3338
      %v3340 = vpop.f32.mrf.mxu0
      %v3341 = vpop.f32.mrf.mxu0
      %v3342 = vadd.f32 %v3257, %v3341
      %v3343 = vpop.f32.mrf.mxu0
      %3344 = vmatprep.mubr.bf16.mxu0 0
      %3345 = vmatmul.mubr.bf16.gmra.mxu0 %v3299
      %v3346 = vpop.f32.mrf.mxu0
      %v3347 = vadd.f32 %v3257, %v3346
      %v3348 = vpop.f32.mrf.mxu0
      %v3349 = vpop.f32.mrf.mxu0
      %v3350 = vadd.f32 %v3257, %v3349
      %v3351 = vpop.f32.mrf.mxu0
      %3352 = vmatprep.mubr.bf16.mxu0 0
      %3353 = vmatmul.mubr.bf16.gmra.mxu0 %v3302
      %v3354 = vpop.f32.mrf.mxu0
      %v3355 = vadd.f32 %v3257, %v3354
      %v3356 = vpop.f32.mrf.mxu0
      %v3357 = vpop.f32.mrf.mxu0
      %v3358 = vadd.f32 %v3257, %v3357
      %v3359 = vpop.f32.mrf.mxu0
      %3360 = vdwg.mxu0
      %v3361 = vadd.f32 %v2875, %v3339
      %v3362 = vadd.f32 %v2876, %v3342
      %v3363 = vadd.f32 %v2877, %v3347
      %v3364 = vadd.f32 %v2878, %v3350
      %v3365 = vadd.f32 %v2879, %v3355
      %v3366 = vadd.f32 %v2880, %v3358
      %v3367 = vpack.c.bf16 %v3362, %v3361
      %v3368 = vpack.c.bf16 %v3364, %v3363
      %v3369 = vpack.c.bf16 %v3366, %v3365
      %v3370 = vld [vmem:[%s75] sm:$0xf]
      %v3371 = vld [vmem:[%s75 + $0x4] sm:$0xf]
      %v3372 = vld [vmem:[%s75 + $0x8] sm:$0xf]
      %v3373 = vld [vmem:[%s75 + $0xc] sm:$0xf]
      %v3374 = vld [vmem:[%s77] sm:$0x1]
      %v3376 = vlaneseq
      %v3377 = vshrl.u32 %v3376, 7
      %v3378 = vsub.s32 0, %v3377
      %v3379 = vrot.slane %v3374, %v3378
      %v3385 = vunpack.c.l.b16 %v3370
      %v3386 = vunpack.c.l.b16 %v3371
      %v3387 = vunpack.c.l.b16 %v3372
      %v3388 = vunpack.c.l.b16 %v3373
      %v3389 = vpack.c.b16 %v3386, %v3385
      %v3390 = vpack.c.b16 %v3388, %v3387
      %v3394 = vsel %vm1354, %v3367, 0
      %v3397 = vsel %vm1354, %v3368, 0
      %v3400 = vsel %vm1354, %v3369, 0
      %3402 = vmatprep.subr.bf16.mxu0 0
      %3403 = vmatpush1.bf16.msra.mxu0 0
      %3404 = vmatprep.subr.bf16.mxu0 0
      %3405 = vmatpush1.bf16.msra.mxu0 0
      %3406 = vmatprep.subr.bf16.mxu0 0
      %3407 = vmatpush1.bf16.msra.mxu0 0
      %3408 = vmatprep.subr.bf16.mxu0 0
      %3409 = vmatpush1.bf16.msra.mxu0 0
      %3410 = vmatprep.subr.bf16.mxu0 0
      %3411 = vmatpush1.bf16.msra.mxu0 0
      %3412 = vmatprep.subr.bf16.mxu0 0
      %3413 = vmatpush1.bf16.msra.mxu0 0
      %3414 = vmatprep.subr.bf16.mxu0 0
      %3415 = vmatpush1.bf16.msra.mxu0 %v3390
      %3416 = vmatprep.subr.bf16.mxu0 0
      %3417 = vmatpush1.bf16.msra.mxu0 %v3389
      %3418 = vmatprep.subr.bf16.mxu0 0
      %3419 = vmatpush2.bf16.msra.mxu0 0
      %3420 = vmatprep.subr.bf16.mxu0 0
      %3421 = vmatpush2.bf16.msra.mxu0 0
      %3422 = vmatprep.subr.bf16.mxu0 0
      %3423 = vmatpush2.bf16.msra.mxu0 0
      %3424 = vmatprep.subr.bf16.mxu0 0
      %3425 = vmatpush2.bf16.msra.mxu0 0
      %3426 = vmatprep.subr.bf16.mxu0 0
      %3427 = vmatpush2.bf16.msra.mxu0 0
      %3428 = vmatprep.subr.bf16.mxu0 0
      %3429 = vmatpush2.bf16.msra.mxu0 0
      %3430 = vmatprep.subr.bf16.mxu0 0
      %3431 = vmatpush2.bf16.msra.mxu0 0
      %3432 = vmatprep.subr.bf16.mxu0 0
      %3433 = vmatpush2.bf16.msra.mxu0 0
      %3434 = vmatprep.mubr.bf16.mxu0 0
      %3435 = vmatmul.mubr.bf16.gmra.mxu0 %v3394
      %v3436 = vpop.f32.mrf.mxu0
      %v3437 = vpop.f32.mrf.mxu0
      %v3438 = vpop.f32.mrf.mxu0
      %v3439 = vadd.f32 %v3379, %v3438
      %v3440 = vpop.f32.mrf.mxu0
      %3441 = vmatprep.mubr.bf16.mxu0 0
      %3442 = vmatmul.mubr.bf16.gmra.mxu0 %v3397
      %v3443 = vpop.f32.mrf.mxu0
      %v3444 = vadd.f32 %v3379, %v3443
      %v3445 = vpop.f32.mrf.mxu0
      %v3446 = vpop.f32.mrf.mxu0
      %v3447 = vadd.f32 %v3379, %v3446
      %v3448 = vpop.f32.mrf.mxu0
      %3449 = vmatprep.mubr.bf16.mxu0 0
      %3450 = vmatmul.mubr.bf16.gmra.mxu0 %v3400
      %v3451 = vpop.f32.mrf.mxu0
      %v3452 = vadd.f32 %v3379, %v3451
      %v3453 = vpop.f32.mrf.mxu0
      %v3454 = vpop.f32.mrf.mxu0
      %v3455 = vpop.f32.mrf.mxu0
      %3456 = vdwg.mxu0
      %v3457 = vadd.f32 %v1401, %v3439
      %v3458 = vadd.f32 %v1406, %v3444
      %v3459 = vadd.f32 %v1409, %v3447
      %v3460 = vadd.f32 %v1414, %v3452
      %v3461 = vpack.c.bf16 %v3458, %v3457
      %v3462 = vpack.c.bf16 %v3460, %v3459
      %v3463 = vld [vmem:[%s79] sm:$0xf]
      %v3464 = vld [vmem:[%s79 + $0x4] sm:$0xf]
      %v3465 = vld [vmem:[%s79 + $0x8] sm:$0xf]
      %v3466 = vld [vmem:[%s79 + $0xc] sm:$0xf]
      %v3467 = vld [vmem:[%s81] sm:$0x1]
      %v3469 = vlaneseq
      %v3470 = vshrl.u32 %v3469, 7
      %v3471 = vsub.s32 0, %v3470
      %v3472 = vrot.slane %v3467, %v3471
      %vm3476 = vcmask 1045504
      %v3477 = vrot.slane %v3461, 2
      %v3478 = vrot.slane %v3462, 2
      %v3479 = vsel %vm3476, %v3477, %v3478
      %v3484 = vunpack.c.l.b16 %v3463
      %v3485 = vunpack.c.l.b16 %v3464
      %v3486 = vunpack.c.l.b16 %v3465
      %v3487 = vunpack.c.l.b16 %v3466
      %v3488 = vpack.c.b16 %v3485, %v3484
      %v3489 = vpack.c.b16 %v3487, %v3486
      %v3493 = vsel %vm1354, %v3479, 0
      %v3496 = vsel %vm1354, %v3478, 0
      %3498 = vmatprep.subr.bf16.mxu0 0
      %3499 = vmatpush1.bf16.msra.mxu0 0
      %3500 = vmatprep.subr.bf16.mxu0 0
      %3501 = vmatpush1.bf16.msra.mxu0 0
      %3502 = vmatprep.subr.bf16.mxu0 0
      %3503 = vmatpush1.bf16.msra.mxu0 0
      %3504 = vmatprep.subr.bf16.mxu0 0
      %3505 = vmatpush1.bf16.msra.mxu0 0
      %3506 = vmatprep.subr.bf16.mxu0 0
      %3507 = vmatpush1.bf16.msra.mxu0 0
      %3508 = vmatprep.subr.bf16.mxu0 0
      %3509 = vmatpush1.bf16.msra.mxu0 0
      %3510 = vmatprep.subr.bf16.mxu0 0
      %3511 = vmatpush1.bf16.msra.mxu0 %v3489
      %3512 = vmatprep.subr.bf16.mxu0 0
      %3513 = vmatpush1.bf16.msra.mxu0 %v3488
      %3514 = vmatprep.subr.bf16.mxu0 0
      %3515 = vmatpush2.bf16.msra.mxu0 0
      %3516 = vmatprep.subr.bf16.mxu0 0
      %3517 = vmatpush2.bf16.msra.mxu0 0
      %3518 = vmatprep.subr.bf16.mxu0 0
      %3519 = vmatpush2.bf16.msra.mxu0 0
      %3520 = vmatprep.subr.bf16.mxu0 0
      %3521 = vmatpush2.bf16.msra.mxu0 0
      %3522 = vmatprep.subr.bf16.mxu0 0
      %3523 = vmatpush2.bf16.msra.mxu0 0
      %3524 = vmatprep.subr.bf16.mxu0 0
      %3525 = vmatpush2.bf16.msra.mxu0 0
      %3526 = vmatprep.subr.bf16.mxu0 0
      %3527 = vmatpush2.bf16.msra.mxu0 0
      %3528 = vmatprep.subr.bf16.mxu0 0
      %3529 = vmatpush2.bf16.msra.mxu0 0
      %3530 = vmatprep.mubr.bf16.mxu0 0
      %3531 = vmatmul.mubr.bf16.gmra.mxu0 %v3493
      %v3532 = vpop.f32.mrf.mxu0
      %v3533 = vadd.f32 %v3472, %v3532
      %v3534 = vpop.f32.mrf.mxu0
      %v3535 = vpop.f32.mrf.mxu0
      %v3536 = vadd.f32 %v3472, %v3535
      %v3537 = vpop.f32.mrf.mxu0
      %3538 = vmatprep.mubr.bf16.mxu0 0
      %3539 = vmatmul.mubr.bf16.gmra.mxu0 %v3496
      %v3540 = vpop.f32.mrf.mxu0
      %v3541 = vadd.f32 %v3472, %v3540
      %v3542 = vpop.f32.mrf.mxu0
      %v3543 = vpop.f32.mrf.mxu0
      %v3544 = vpop.f32.mrf.mxu0
      %3545 = vdwg.mxu0
      %vm3546 = vcmask 23552
      %3547 = vst.msk [vmem:[%s1238] sm:$0xff] %vm3546, %v3533
      %3548 = vst.msk [vmem:[%s1238 + $0x8] sm:$0xff] %vm3546, %v3536
      %3549 = vst.msk [vmem:[%s1238 + $0x10] sm:$0xff] %vm3546, %v3541
      %p3550 = scmp.lt.s32.totalorder %s94, 1
      %s3551 = scalar_select %p3550, %s94, 1
      %s3552 = smul.addr %s3551, 3
      %s3553 = smul.addr %s3552, 8
      %s3554 = scalar_lea.vmem %s83, %s3553
      // Predicated region
      $region185: #{tpu_custom_call.1} parent=183 // pred_check
        %p3555 = pneg %p978
      $region186: #{tpu_custom_call.1} parent=183 // pred_check_branch
        %3557 = sbr.rel (%p3555) target = $region188
      $region187: #{tpu_custom_call.1} parent=183 // pred_region
        _
      $region188: #{tpu_custom_call.1} parent=183 // pred_fallthru
        _
    $region184: #{tpu_custom_call.1} parent=5 // pred_fallthru
      _
    %p3558 = scmp.le.s32.totalorder 2, %s89
    // Predicated region
    $region189: #{tpu_custom_call.1} parent=5 // pred_check
      %p3559 = pneg %p3558
    $region190: #{tpu_custom_call.1} parent=5 // pred_check_branch
      %3561 = sbr.rel (%p3559) target = $region192
    $region191: #{tpu_custom_call.1} parent=5 // pred_region
      %s3562 = ssub.s32 %s89, 2
      // Predicated region
      $region193: #{tpu_custom_call.1} parent=191 // pred_check
        %p3563 = pneg %p984
      $region194: #{tpu_custom_call.1} parent=191 // pred_check_branch
        %3565 = sbr.rel (%p3563) target = $region196
      $region195: #{tpu_custom_call.1} parent=191 // pred_region
        %p3566 = scmp.lt.s32.totalorder %s95, 1
        %s3567 = scalar_select %p3566, %s95, 1
        %s3568 = smul.addr %s3567, 3
        %s3569 = smul.addr %s3568, 8
        %s3570 = scalar_lea.vmem %s83, %s3569
      $region196: #{tpu_custom_call.1} parent=191 // pred_fallthru
        _
    $region192: #{tpu_custom_call.1} parent=5 // pred_fallthru
      _
  $region6: #{tpu_custom_call.1} parent=0 // loop_footer
    %s93 = sadd.s32 1, %s89
  $region7: #{tpu_custom_call.1} parent=0 // loop_footer_branch
    %88 = sbr.rel target = $region3
  $region8: #{tpu_custom_call.1} parent=0 // loop_exit
    _

</llo_original>
